<compile_context>
chip_gen: v7x
topology: tpu7x:2x2x1
jax: 0.10.0
libtpu: 0.0.40
codegen_flags: <defaults>
</compile_context>

<pallas_src>
import functools

import jax
import jax.numpy as jnp
from jax.experimental import pallas as pl
from jax.experimental.pallas import tpu as pltpu

NUM_CLASSES = 16
CPAD = 128          # every channel dim zero-padded to one full lane tile
KPAD = 128          # stem im2col K (3*3*3 = 27) zero-padded lane-dense
HW = 8              # post-stem spatial size (16x16 input, stride-2 stem)
HW2 = HW * HW       # 64 spatial positions per image
B_TILE = 4          # images per grid step (matmul M = 4*64 = 256 fills MXU)

# Bias-bank row indices (one (1,128) f32 row per folded-BN / FC bias).
_B_STEM, _B_1E, _B_1D, _B_1P, _B_2E, _B_2D, _B_2P, _B_FIN, _B_FC = range(9)

# Off-centre depthwise taps: (tap index t, flat spatial shift s = oy*HW + ox).
_DW_TAPS = tuple((t, (t // 3 - 1) * HW + (t % 3 - 1)) for t in range(9) if t != 4)

_PACK_ORDER = ("w_stem", "w1e", "w1d", "w1p", "w2e", "w2d", "w2p",
               "w_fin", "w_fc", "bias")


def _act(y, kind):
    if kind == "relu6":
        return jnp.clip(y, 0.0, 6.0)
    if kind == "hswish":
        return y * jnp.clip(y + 3.0, 0.0, 6.0) * (1.0 / 6.0)
    return y


# ------------------------------ fused kernel --------------------------------

def _fused_supernet_kernel(
    patches_ref,
    w_stem_ref, w1e_ref, w1d_ref, w1p_ref,
    w2e_ref, w2d_ref, w2p_ref, w_fin_ref, w_fc_ref, bias_ref,
    out_ref, act_scr, res_scr,
):
    """One grid step = B_TILE images; every intermediate stays on-chip."""
    f32, bf16 = jnp.float32, jnp.bfloat16
    bsz = patches_ref.shape[0]                         # B_TILE (static)

    def mm_bias_act(a, w_ref, brow, kind):
        # bf16 operands into the MXU, f32 accumulation, BN scale pre-folded.
        y = jnp.dot(a.astype(bf16), w_ref[...], preferred_element_type=f32)
        return _act(y + bias_ref[brow:brow + 1, :], kind)

    def dw3x3(w_ref, brow):
        # Per-image roll-based depthwise 3x3 (stride 1, pad 1) on act_scr,
        # in-place.  w_ref: (9, 64, 128) f32 with BN scale + border masks
        # folded in, so each tap is a full-vreg multiply; the roll goes to the
        # XLU.  fori_loop bounds the vreg live set to ~32 regs per image.
        bias = bias_ref[brow:brow + 1, :]

        def body(b, carry):
            yb = act_scr[b]                            # (64, 128) f32
            acc = yb * w_ref[4]                        # centre tap init
            for t, s in _DW_TAPS:
                acc = acc + pltpu.roll(yb, (-s) % HW2, axis=0) * w_ref[t]
            act_scr[b] = _act(acc + bias, "relu6")
            return carry

        jax.lax.fori_loop(0, bsz, body, 0)

    # --- stem: 3x3 stride-2 conv (im2col patches @ W) + bias + hswish ---
    x = patches_ref[...].reshape(bsz * HW2, KPAD)      # (256, 128) bf16
    x = mm_bias_act(x, w_stem_ref, _B_STEM, "hswish")  # (256, 128) f32

    # --- stage1: MBConv (1x1 expand -> dw3x3 -> 1x1 project), no residual ---
    y = mm_bias_act(x, w1e_ref, _B_1E, "relu6")
    act_scr[...] = y.reshape(bsz, HW2, CPAD)
    dw3x3(w1d_ref, _B_1D)
    y = act_scr[...].reshape(bsz * HW2, CPAD)
    x = mm_bias_act(y, w1p_ref, _B_1P, "none")         # projection: identity act

    # --- stage2: MBConv with residual (cin == cout) ---
    res_scr[...] = x.reshape(bsz, HW2, CPAD)           # park residual in VMEM
    y = mm_bias_act(x, w2e_ref, _B_2E, "relu6")
    act_scr[...] = y.reshape(bsz, HW2, CPAD)
    dw3x3(w2d_ref, _B_2D)
    y = act_scr[...].reshape(bsz * HW2, CPAD)
    x = mm_bias_act(y, w2p_ref, _B_2P, "none") + res_scr[...].reshape(bsz * HW2, CPAD)

    # --- final 1x1 expand + bias + hswish ---
    y = mm_bias_act(x, w_fin_ref, _B_FIN, "hswish")    # (256, 128) f32

    # --- logits: global avg-pool + linear; 1/(H*W) folded into w_fc on host ---
    pooled = jnp.sum(y.reshape(bsz, HW2, CPAD), axis=1)            # (B_TILE, 128)
    logits = jnp.dot(pooled.astype(bf16), w_fc_ref[...], preferred_element_type=f32)
    out_ref[0] = (logits + bias_ref[_B_FC:_B_FC + 1, :]).astype(out_ref.dtype)


def fused_supernet(patches, packed, b_tile=B_TILE):
    """patches: (N, HW2, KPAD) bf16 with N % b_tile == 0 -> (N, CPAD) f32."""
    N = patches.shape[0]
    assert N % b_tile == 0
    steps = N // b_tile
    in_specs = [pl.BlockSpec((b_tile, HW2, KPAD), lambda n: (n, 0, 0))]
    args = [patches]
    for name in _PACK_ORDER:
        arr = packed[name]
        in_specs.append(pl.BlockSpec(arr.shape, lambda n, nd=arr.ndim: (0,) * nd))
        args.append(arr)
    out = pl.pallas_call(
        _fused_supernet_kernel,
        grid=(steps,),
        in_specs=in_specs,
        out_specs=pl.BlockSpec((1, b_tile, CPAD), lambda n: (n, 0, 0)),
        out_shape=jax.ShapeDtypeStruct((steps, b_tile, CPAD), jnp.float32),
        scratch_shapes=[pltpu.VMEM((b_tile, HW2, CPAD), jnp.float32),   # act slab
                        pltpu.VMEM((b_tile, HW2, CPAD), jnp.float32)],  # residual
        # TODO(synk): on v7x use pltpu.CORE_PARALLEL here so the batch axis is
        # split across the two TensorCores; "parallel" is a no-op on v5e/v6e.
        compiler_params=pltpu.CompilerParams(dimension_semantics=("parallel",)),
    )(*args)
    return out.reshape(N, CPAD)


# ------------------------------ host-side glue -------------------------------

def stem_patches(x_nhwc):
    """3x3 / stride-2 / pad-1 im2col for the stem: (N,16,16,3) -> (N,64,128) bf16.

    # TODO(synk): at real supernet resolutions this patch extraction should move
    # in-kernel to avoid the HBM patch buffer; at 16x16 it is a ~16 KiB/image
    # lane-dense layout prep feeding the fully fused kernel.
    """
    N, H, W, C = x_nhwc.shape
    Ho, Wo = H // 2, W // 2
    xp = jnp.pad(x_nhwc, ((0, 0), (1, 1), (1, 1), (0, 0)))
    cols = []
    for dy in range(3):
        for dx in range(3):
            cols.append(xp[:, dy:dy + 2 * Ho:2, dx:dx + 2 * Wo:2, :])
    p = jnp.stack(cols, axis=3).reshape(N, Ho * Wo, 9 * C)     # (N, 64, 27)
    p = jnp.pad(p, ((0, 0), (0, 0), (0, KPAD - 9 * C)))
    return p.astype(jnp.bfloat16)


def supernet_forward(packed, x, active_resolution=16, b_tile=B_TILE):
    """x: (N, C, H, W) NCHW like the PyTorch module; returns (N, NUM_CLASSES)."""
    if x.shape[-1] != active_resolution:
        # TODO(synk): torch bicubic uses the a=-0.75 cubic; jax bicubic uses Keys
        # a=-0.5, so resized values differ slightly from F.interpolate.
        x = jax.image.resize(
            x, (x.shape[0], x.shape[1], active_resolution, active_resolution),
            method="bicubic", antialias=False)
    x = jnp.transpose(x, (0, 2, 3, 1))                        # NCHW -> NHWC
    patches = stem_patches(x)
    N = patches.shape[0]
    n_pad = (-N) % b_tile
    if n_pad:
        patches = jnp.pad(patches, ((0, n_pad), (0, 0), (0, 0)))
    logits = fused_supernet(patches, packed, b_tile=b_tile)
    # TODO(synk): dropout in the logits stage is identity at inference; omitted.
    return logits[:N, :NUM_CLASSES]


# ---------------------------- parameter init/packing --------------------------

def _bn_fold(key, c):
    k1, k2, k3, k4 = jax.random.split(key, 4)
    gamma = 1.0 + 0.1 * jax.random.normal(k1, (c,), jnp.float32)
    beta = 0.1 * jax.random.normal(k2, (c,), jnp.float32)
    mean = 0.05 * jax.random.normal(k3, (c,), jnp.float32)
    var = 1.0 + 0.1 * jax.random.uniform(k4, (c,), jnp.float32)
    scale = gamma * jax.lax.rsqrt(var + 1e-5)
    bias = beta - mean * scale
    return scale, bias


def _conv_w(key, k, cin, cout):
    fan_in = k * k * cin
    w = jax.random.normal(key, (k, k, cin, cout), jnp.float32) * (2.0 / fan_in) ** 0.5
    return w.reshape(k * k * cin, cout)


def init_raw_params(key):
    keys = jax.random.split(key, 18)
    params = {}
    params["first_conv"] = dict(w=_conv_w(keys[0], 3, 3, 16))
    params["first_conv"]["scale"], params["first_conv"]["bias"] = _bn_fold(keys[1], 16)
    s1 = dict(w_exp=_conv_w(keys[2], 1, 16, 64),
              w_dw=jax.random.normal(keys[3], (3, 3, 64), jnp.float32) * 0.1,
              w_proj=_conv_w(keys[4], 1, 64, 32))
    s1["s_exp"], s1["b_exp"] = _bn_fold(keys[5], 64)
    s1["s_dw"], s1["b_dw"] = _bn_fold(keys[6], 64)
    s1["s_proj"], s1["b_proj"] = _bn_fold(keys[7], 32)
    params["stage1_block0"] = s1
    s2 = dict(w_exp=_conv_w(keys[8], 1, 32, 128),
              w_dw=jax.random.normal(keys[9], (3, 3, 128), jnp.float32) * 0.1,
              w_proj=_conv_w(keys[10], 1, 128, 32))
    s2["s_exp"], s2["b_exp"] = _bn_fold(keys[11], 128)
    s2["s_dw"], s2["b_dw"] = _bn_fold(keys[12], 128)
    s2["s_proj"], s2["b_proj"] = _bn_fold(keys[13], 32)
    params["stage2_block0"] = s2
    params["final_expand"] = dict(w=_conv_w(keys[14], 1, 32, 64))
    params["final_expand"]["scale"], params["final_expand"]["bias"] = _bn_fold(keys[15], 64)
    params["logits"] = dict(
        w=jax.random.normal(keys[16], (64, NUM_CLASSES), jnp.float32) * (1.0 / 64.0) ** 0.5,
        b=0.01 * jax.random.normal(keys[17], (NUM_CLASSES,), jnp.float32))
    return params


def _pad2(a, rows, cols):
    return jnp.pad(a, ((0, rows - a.shape[0]), (0, cols - a.shape[1])))


def _pad1(v, n):
    return jnp.pad(v, (0, n - v.shape[0]))


def _dw_tap_weights(w_dw, s_dw):
    """(3,3,C) dw weights -> (9, HW2, CPAD) f32 per-tap weights.

    BN scale and the spatial border masks (zero-padding of the 3x3 conv) are
    folded in, so the kernel does pure roll * weight FMAs with no in-kernel
    masks or sublane broadcasts.  The masks also zero any roll wrap-around.
    """
    c = w_dw.shape[-1]
    wf = _pad2((w_dw * s_dw[None, None, :]).reshape(9, c), 9, CPAD)   # (9, 128)
    rr = jnp.arange(HW2) // HW
    cc = jnp.arange(HW2) % HW
    masks = []
    for t in range(9):
        oy, ox = t // 3 - 1, t % 3 - 1
        valid = (rr + oy >= 0) & (rr + oy < HW) & (cc + ox >= 0) & (cc + ox < HW)
        masks.append(valid)
    m = jnp.stack(masks, axis=0).astype(jnp.float32)                  # (9, 64)
    return (m[:, :, None] * wf[:, None, :]).astype(jnp.float32)       # (9, 64, 128)


def pack_params(raw):
    """Fold BN scales into weights, zero-pad to 128 lanes, cast MXU weights bf16."""
    p = {}
    biases = []

    def fold(w, scale):
        return w * scale[None, :]

    fc_ = raw["first_conv"]
    p["w_stem"] = _pad2(fold(fc_["w"], fc_["scale"]), KPAD, CPAD).astype(jnp.bfloat16)
    biases.append(_pad1(fc_["bias"], CPAD))
    for i, name in ((1, "stage1_block0"), (2, "stage2_block0")):
        blk = raw[name]
        p[f"w{i}e"] = _pad2(fold(blk["w_exp"], blk["s_exp"]), CPAD, CPAD).astype(jnp.bfloat16)
        biases.append(_pad1(blk["b_exp"], CPAD))
        p[f"w{i}d"] = _dw_tap_weights(blk["w_dw"], blk["s_dw"])
        biases.append(_pad1(blk["b_dw"], CPAD))
        p[f"w{i}p"] = _pad2(fold(blk["w_proj"], blk["s_proj"]), CPAD, CPAD).astype(jnp.bfloat16)
        biases.append(_pad1(blk["b_proj"], CPAD))
    fe = raw["final_expand"]
    p["w_fin"] = _pad2(fold(fe["w"], fe["scale"]), CPAD, CPAD).astype(jnp.bfloat16)
    biases.append(_pad1(fe["bias"], CPAD))
    lg = raw["logits"]
    p["w_fc"] = (_pad2(lg["w"], CPAD, CPAD) / float(HW2)).astype(jnp.bfloat16)
    biases.append(_pad1(lg["b"], CPAD))
    p["bias"] = _pad2(jnp.stack(biases, axis=0), 16, CPAD).astype(jnp.float32)
    return p


# ------------------------------ pure-JAX reference ----------------------------

def _dw_reference(y, w_dw, s_dw, bias_row, kind):
    """Standard pad+window depthwise 3x3 (independent of the roll/mask packing)."""
    n = y.shape[0]
    c = w_dw.shape[-1]
    yk = y[..., :c].reshape(n, HW, HW, c)
    yp = jnp.pad(yk, ((0, 0), (1, 1), (1, 1), (0, 0)))
    wf = w_dw * s_dw[None, None, :]
    acc = jnp.zeros_like(yk)
    for dy in range(3):
        for dx in range(3):
            acc = acc + yp[:, dy:dy + HW, dx:dx + HW, :] * wf[dy, dx]
    out = _act(acc + bias_row[:c], kind).reshape(n, HW2, c)
    return jnp.pad(out, ((0, 0), (0, 0), (0, CPAD - c)))


def reference_forward(raw, packed, patches):
    """Pure-JAX mirror of the fused kernel math (same bf16-in / f32-acc folds)."""
    f32, bf16 = jnp.float32, jnp.bfloat16
    bias = packed["bias"]

    def mm_ba(a, wname, brow, kind):
        y = jnp.matmul(a.astype(bf16).astype(f32), packed[wname].astype(f32))
        return _act(y + bias[brow], kind)

    s1, s2 = raw["stage1_block0"], raw["stage2_block0"]
    x = mm_ba(patches, "w_stem", _B_STEM, "hswish")                 # (N, 64, 128)
    y = mm_ba(x, "w1e", _B_1E, "relu6")
    y = _dw_reference(y, s1["w_dw"], s1["s_dw"], bias[_B_1D], "relu6")
    x = mm_ba(y, "w1p", _B_1P, "none")
    y = mm_ba(x, "w2e", _B_2E, "relu6")
    y = _dw_reference(y, s2["w_dw"], s2["s_dw"], bias[_B_2D], "relu6")
    x = mm_ba(y, "w2p", _B_2P, "none") + x
    y = mm_ba(x, "w_fin", _B_FIN, "hswish")
    pooled = jnp.sum(y, axis=1)                                     # (N, 128)
    logits = jnp.matmul(pooled.astype(bf16).astype(f32), packed["w_fc"].astype(f32))
    return (logits + bias[_B_FC])[:, :NUM_CLASSES]


# ----------------------------------- main -------------------------------------

if __name__ == "__main__":
    N = 8
    x = jax.random.normal(jax.random.PRNGKey(0), (N, 3, 16, 16), dtype=jnp.float32)  # NCHW
    raw = init_raw_params(jax.random.PRNGKey(42))
    packed = pack_params(raw)

    fwd = jax.jit(functools.partial(supernet_forward, active_resolution=16))
    out = fwd(packed, x)
    jax.block_until_ready(out)
    assert out.shape == (N, NUM_CLASSES) and out.dtype == jnp.float32

    ref = reference_forward(raw, packed, stem_patches(jnp.transpose(x, (0, 2, 3, 1))))
    err = float(jnp.max(jnp.abs(out - ref)))
    assert err < 1e-1, f"kernel/reference mismatch: max abs err = {err}"
    print("KERNEL_OK")
</pallas_src>

<mosaic_0001>
module attributes {stable_mosaic.version = 11 : i64} {
  func.func @_fused_supernet_kernel(%arg0: i32, %arg1: memref<4x64x128xbf16, #tpu.memory_space<vmem>>, %arg2: memref<128x128xbf16, #tpu.memory_space<vmem>>, %arg3: memref<128x128xbf16, #tpu.memory_space<vmem>>, %arg4: memref<9x64x128xf32, #tpu.memory_space<vmem>>, %arg5: memref<128x128xbf16, #tpu.memory_space<vmem>>, %arg6: memref<128x128xbf16, #tpu.memory_space<vmem>>, %arg7: memref<9x64x128xf32, #tpu.memory_space<vmem>>, %arg8: memref<128x128xbf16, #tpu.memory_space<vmem>>, %arg9: memref<128x128xbf16, #tpu.memory_space<vmem>>, %arg10: memref<128x128xbf16, #tpu.memory_space<vmem>>, %arg11: memref<16x128xf32, #tpu.memory_space<vmem>>, %arg12: memref<1x4x128xf32, #tpu.memory_space<vmem>>, %arg13: memref<4x64x128xf32, #tpu.memory_space<vmem>>, %arg14: memref<4x64x128xf32, #tpu.memory_space<vmem>>) attributes {dimension_semantics = [#tpu.dimension_semantics<parallel>], iteration_bounds = array<i64: 2>, scalar_prefetch = 0 : i64, scratch_operands = 2 : i64, tpu.core_type = #tpu.core_type<tc>, window_params = [{transform_indices = @transform_0, window_bounds = array<i64: 4, 64, 128>}, {pipeline_mode = #tpu.pipeline_mode<synchronous>, transform_indices = @transform_1, window_bounds = array<i64: 128, 128>}, {pipeline_mode = #tpu.pipeline_mode<synchronous>, transform_indices = @transform_2, window_bounds = array<i64: 128, 128>}, {pipeline_mode = #tpu.pipeline_mode<synchronous>, transform_indices = @transform_3, window_bounds = array<i64: 9, 64, 128>}, {pipeline_mode = #tpu.pipeline_mode<synchronous>, transform_indices = @transform_4, window_bounds = array<i64: 128, 128>}, {pipeline_mode = #tpu.pipeline_mode<synchronous>, transform_indices = @transform_5, window_bounds = array<i64: 128, 128>}, {pipeline_mode = #tpu.pipeline_mode<synchronous>, transform_indices = @transform_6, window_bounds = array<i64: 9, 64, 128>}, {pipeline_mode = #tpu.pipeline_mode<synchronous>, transform_indices = @transform_7, window_bounds = array<i64: 128, 128>}, {pipeline_mode = #tpu.pipeline_mode<synchronous>, transform_indices = @transform_8, window_bounds = array<i64: 128, 128>}, {pipeline_mode = #tpu.pipeline_mode<synchronous>, transform_indices = @transform_9, window_bounds = array<i64: 128, 128>}, {pipeline_mode = #tpu.pipeline_mode<synchronous>, transform_indices = @transform_10, window_bounds = array<i64: 16, 128>}, {transform_indices = @transform_11, window_bounds = array<i64: 1, 4, 128>}]} {
    %c0 = arith.constant 0 : index
    %c0_0 = arith.constant 0 : index
    %c0_1 = arith.constant 0 : index
    %0 = vector.load %arg1[%c0, %c0_0, %c0_1] : memref<4x64x128xbf16, #tpu.memory_space<vmem>>, vector<4x64x128xbf16>
    %1 = vector.shape_cast %0 : vector<4x64x128xbf16> to vector<256x128xbf16>
    %c0_2 = arith.constant 0 : index
    %c0_3 = arith.constant 0 : index
    %2 = vector.load %arg2[%c0_2, %c0_3] : memref<128x128xbf16, #tpu.memory_space<vmem>>, vector<128x128xbf16>
    %cst = arith.constant dense<0.000000e+00> : vector<256x128xf32>
    %3 = tpu.matmul %1, %2, %cst {dimension_numbers = #tpu.dot_dimension_numbers<[1], [0], [0], [1], [0, 0, 1, 1], [], []>} : vector<256x128xbf16>, vector<128x128xbf16>, vector<256x128xf32> -> vector<256x128xf32>
    %c0_4 = arith.constant 0 : index
    %c0_5 = arith.constant 0 : index
    %4 = vector.load %arg11[%c0_4, %c0_5] : memref<16x128xf32, #tpu.memory_space<vmem>>, vector<1x128xf32>
    %5 = vector.broadcast %4 : vector<1x128xf32> to vector<256x128xf32>
    %6 = arith.addf %3, %5 : vector<256x128xf32>
    %cst_6 = arith.constant 3.000000e+00 : f32
    %7 = vector.broadcast %cst_6 : f32 to vector<256x128xf32>
    %8 = arith.addf %6, %7 : vector<256x128xf32>
    %cst_7 = arith.constant 0.000000e+00 : f32
    %cst_8 = arith.constant 6.000000e+00 : f32
    %9 = vector.broadcast %cst_7 : f32 to vector<256x128xf32>
    %10 = arith.maximumf %9, %8 : vector<256x128xf32>
    %11 = vector.broadcast %cst_8 : f32 to vector<256x128xf32>
    %12 = arith.minimumf %11, %10 : vector<256x128xf32>
    %13 = arith.mulf %6, %12 : vector<256x128xf32>
    %cst_9 = arith.constant 0.166666672 : f32
    %14 = vector.broadcast %cst_9 : f32 to vector<256x128xf32>
    %15 = arith.mulf %13, %14 : vector<256x128xf32>
    %16 = arith.truncf %15 : vector<256x128xf32> to vector<256x128xbf16>
    %c0_10 = arith.constant 0 : index
    %c0_11 = arith.constant 0 : index
    %17 = vector.load %arg3[%c0_10, %c0_11] : memref<128x128xbf16, #tpu.memory_space<vmem>>, vector<128x128xbf16>
    %cst_12 = arith.constant dense<0.000000e+00> : vector<256x128xf32>
    %18 = tpu.matmul %16, %17, %cst_12 {dimension_numbers = #tpu.dot_dimension_numbers<[1], [0], [0], [1], [0, 0, 1, 1], [], []>} : vector<256x128xbf16>, vector<128x128xbf16>, vector<256x128xf32> -> vector<256x128xf32>
    %c1 = arith.constant 1 : index
    %c0_13 = arith.constant 0 : index
    %19 = vector.load %arg11[%c1, %c0_13] : memref<16x128xf32, #tpu.memory_space<vmem>>, vector<1x128xf32>
    %20 = vector.broadcast %19 : vector<1x128xf32> to vector<256x128xf32>
    %21 = arith.addf %18, %20 : vector<256x128xf32>
    %cst_14 = arith.constant 0.000000e+00 : f32
    %cst_15 = arith.constant 6.000000e+00 : f32
    %22 = vector.broadcast %cst_14 : f32 to vector<256x128xf32>
    %23 = arith.maximumf %22, %21 : vector<256x128xf32>
    %24 = vector.broadcast %cst_15 : f32 to vector<256x128xf32>
    %25 = arith.minimumf %24, %23 : vector<256x128xf32>
    %26 = vector.shape_cast %25 : vector<256x128xf32> to vector<4x64x128xf32>
    %c0_16 = arith.constant 0 : index
    %c0_17 = arith.constant 0 : index
    %c0_18 = arith.constant 0 : index
    %27 = vector.load %arg13[%c0_16, %c0_17, %c0_18] : memref<4x64x128xf32, #tpu.memory_space<vmem>>, vector<4x64x128xf32>
    tpu.vector_store %arg13[%c0_16, %c0_17, %c0_18], %26 {strides = array<i32>} : memref<4x64x128xf32, #tpu.memory_space<vmem>>, vector<4x64x128xf32>,
    %c2 = arith.constant 2 : index
    %c0_19 = arith.constant 0 : index
    %28 = vector.load %arg11[%c2, %c0_19] : memref<16x128xf32, #tpu.memory_space<vmem>>, vector<1x128xf32>
    %c0_i32 = arith.constant 0 : i32
    %c4_i32 = arith.constant 4 : i32
    %29 = arith.addi %c0_i32, %c4_i32 : i32
    %c1_i32 = arith.constant 1 : i32
    scf.for %arg15 = %c0_i32 to %29 step %c1_i32  : i32 {
      %91 = arith.index_cast %arg15 : i32 to index
      %c0_71 = arith.constant 0 : index
      %c0_72 = arith.constant 0 : index
      %92 = vector.load %arg13[%91, %c0_71, %c0_72] : memref<4x64x128xf32, #tpu.memory_space<vmem>>, vector<1x64x128xf32>
      %93 = vector.shape_cast %92 : vector<1x64x128xf32> to vector<64x128xf32>
      %c4_73 = arith.constant 4 : index
      %c0_74 = arith.constant 0 : index
      %c0_75 = arith.constant 0 : index
      %94 = vector.load %arg4[%c4_73, %c0_74, %c0_75] : memref<9x64x128xf32, #tpu.memory_space<vmem>>, vector<1x64x128xf32>
      %95 = vector.shape_cast %94 : vector<1x64x128xf32> to vector<64x128xf32>
      %96 = arith.mulf %93, %95 : vector<64x128xf32>
      %c9_i32 = arith.constant 9 : i32
      %97 = tpu.dynamic_rotate %93 by %c9_i32 dim 0 : vector<64x128xf32>, i32 -> vector<64x128xf32>
      %c0_76 = arith.constant 0 : index
      %c0_77 = arith.constant 0 : index
      %c0_78 = arith.constant 0 : index
      %98 = vector.load %arg4[%c0_76, %c0_77, %c0_78] : memref<9x64x128xf32, #tpu.memory_space<vmem>>, vector<1x64x128xf32>
      %99 = vector.shape_cast %98 : vector<1x64x128xf32> to vector<64x128xf32>
      %100 = arith.mulf %97, %99 : vector<64x128xf32>
      %101 = arith.addf %96, %100 : vector<64x128xf32>
      %c8_i32 = arith.constant 8 : i32
      %102 = tpu.dynamic_rotate %93 by %c8_i32 dim 0 : vector<64x128xf32>, i32 -> vector<64x128xf32>
      %c1_79 = arith.constant 1 : index
      %c0_80 = arith.constant 0 : index
      %c0_81 = arith.constant 0 : index
      %103 = vector.load %arg4[%c1_79, %c0_80, %c0_81] : memref<9x64x128xf32, #tpu.memory_space<vmem>>, vector<1x64x128xf32>
      %104 = vector.shape_cast %103 : vector<1x64x128xf32> to vector<64x128xf32>
      %105 = arith.mulf %102, %104 : vector<64x128xf32>
      %106 = arith.addf %101, %105 : vector<64x128xf32>
      %c7_i32 = arith.constant 7 : i32
      %107 = tpu.dynamic_rotate %93 by %c7_i32 dim 0 : vector<64x128xf32>, i32 -> vector<64x128xf32>
      %c2_82 = arith.constant 2 : index
      %c0_83 = arith.constant 0 : index
      %c0_84 = arith.constant 0 : index
      %108 = vector.load %arg4[%c2_82, %c0_83, %c0_84] : memref<9x64x128xf32, #tpu.memory_space<vmem>>, vector<1x64x128xf32>
      %109 = vector.shape_cast %108 : vector<1x64x128xf32> to vector<64x128xf32>
      %110 = arith.mulf %107, %109 : vector<64x128xf32>
      %111 = arith.addf %106, %110 : vector<64x128xf32>
      %c1_i32_85 = arith.constant 1 : i32
      %112 = tpu.dynamic_rotate %93 by %c1_i32_85 dim 0 : vector<64x128xf32>, i32 -> vector<64x128xf32>
      %c3_86 = arith.constant 3 : index
      %c0_87 = arith.constant 0 : index
      %c0_88 = arith.constant 0 : index
      %113 = vector.load %arg4[%c3_86, %c0_87, %c0_88] : memref<9x64x128xf32, #tpu.memory_space<vmem>>, vector<1x64x128xf32>
      %114 = vector.shape_cast %113 : vector<1x64x128xf32> to vector<64x128xf32>
      %115 = arith.mulf %112, %114 : vector<64x128xf32>
      %116 = arith.addf %111, %115 : vector<64x128xf32>
      %c63_i32 = arith.constant 63 : i32
      %117 = tpu.dynamic_rotate %93 by %c63_i32 dim 0 : vector<64x128xf32>, i32 -> vector<64x128xf32>
      %c5_89 = arith.constant 5 : index
      %c0_90 = arith.constant 0 : index
      %c0_91 = arith.constant 0 : index
      %118 = vector.load %arg4[%c5_89, %c0_90, %c0_91] : memref<9x64x128xf32, #tpu.memory_space<vmem>>, vector<1x64x128xf32>
      %119 = vector.shape_cast %118 : vector<1x64x128xf32> to vector<64x128xf32>
      %120 = arith.mulf %117, %119 : vector<64x128xf32>
      %121 = arith.addf %116, %120 : vector<64x128xf32>
      %c57_i32 = arith.constant 57 : i32
      %122 = tpu.dynamic_rotate %93 by %c57_i32 dim 0 : vector<64x128xf32>, i32 -> vector<64x128xf32>
      %c6_92 = arith.constant 6 : index
      %c0_93 = arith.constant 0 : index
      %c0_94 = arith.constant 0 : index
      %123 = vector.load %arg4[%c6_92, %c0_93, %c0_94] : memref<9x64x128xf32, #tpu.memory_space<vmem>>, vector<1x64x128xf32>
      %124 = vector.shape_cast %123 : vector<1x64x128xf32> to vector<64x128xf32>
      %125 = arith.mulf %122, %124 : vector<64x128xf32>
      %126 = arith.addf %121, %125 : vector<64x128xf32>
      %c56_i32 = arith.constant 56 : i32
      %127 = tpu.dynamic_rotate %93 by %c56_i32 dim 0 : vector<64x128xf32>, i32 -> vector<64x128xf32>
      %c7_95 = arith.constant 7 : index
      %c0_96 = arith.constant 0 : index
      %c0_97 = arith.constant 0 : index
      %128 = vector.load %arg4[%c7_95, %c0_96, %c0_97] : memref<9x64x128xf32, #tpu.memory_space<vmem>>, vector<1x64x128xf32>
      %129 = vector.shape_cast %128 : vector<1x64x128xf32> to vector<64x128xf32>
      %130 = arith.mulf %127, %129 : vector<64x128xf32>
      %131 = arith.addf %126, %130 : vector<64x128xf32>
      %c55_i32 = arith.constant 55 : i32
      %132 = tpu.dynamic_rotate %93 by %c55_i32 dim 0 : vector<64x128xf32>, i32 -> vector<64x128xf32>
      %c8_98 = arith.constant 8 : index
      %c0_99 = arith.constant 0 : index
      %c0_100 = arith.constant 0 : index
      %133 = vector.load %arg4[%c8_98, %c0_99, %c0_100] : memref<9x64x128xf32, #tpu.memory_space<vmem>>, vector<1x64x128xf32>
      %134 = vector.shape_cast %133 : vector<1x64x128xf32> to vector<64x128xf32>
      %135 = arith.mulf %132, %134 : vector<64x128xf32>
      %136 = arith.addf %131, %135 : vector<64x128xf32>
      %137 = vector.broadcast %28 : vector<1x128xf32> to vector<64x128xf32>
      %138 = arith.addf %136, %137 : vector<64x128xf32>
      %cst_101 = arith.constant 0.000000e+00 : f32
      %cst_102 = arith.constant 6.000000e+00 : f32
      %139 = vector.broadcast %cst_101 : f32 to vector<64x128xf32>
      %140 = arith.maximumf %139, %138 : vector<64x128xf32>
      %141 = vector.broadcast %cst_102 : f32 to vector<64x128xf32>
      %142 = arith.minimumf %141, %140 : vector<64x128xf32>
      %143 = arith.index_cast %arg15 : i32 to index
      %c0_103 = arith.constant 0 : index
      %c0_104 = arith.constant 0 : index
      %144 = vector.load %arg13[%143, %c0_103, %c0_104] : memref<4x64x128xf32, #tpu.memory_space<vmem>>, vector<1x64x128xf32>
      %145 = vector.shape_cast %144 : vector<1x64x128xf32> to vector<64x128xf32>
      %146 = vector.shape_cast %142 : vector<64x128xf32> to vector<1x64x128xf32>
      tpu.vector_store %arg13[%143, %c0_103, %c0_104], %146 {strides = array<i32>} : memref<4x64x128xf32, #tpu.memory_space<vmem>>, vector<1x64x128xf32>,
    }
    %c4_i32_20 = arith.constant 4 : i32
    %c0_21 = arith.constant 0 : index
    %c0_22 = arith.constant 0 : index
    %c0_23 = arith.constant 0 : index
    %30 = vector.load %arg13[%c0_21, %c0_22, %c0_23] : memref<4x64x128xf32, #tpu.memory_space<vmem>>, vector<4x64x128xf32>
    %31 = vector.shape_cast %30 : vector<4x64x128xf32> to vector<256x128xf32>
    %32 = arith.truncf %31 : vector<256x128xf32> to vector<256x128xbf16>
    %c0_24 = arith.constant 0 : index
    %c0_25 = arith.constant 0 : index
    %33 = vector.load %arg5[%c0_24, %c0_25] : memref<128x128xbf16, #tpu.memory_space<vmem>>, vector<128x128xbf16>
    %cst_26 = arith.constant dense<0.000000e+00> : vector<256x128xf32>
    %34 = tpu.matmul %32, %33, %cst_26 {dimension_numbers = #tpu.dot_dimension_numbers<[1], [0], [0], [1], [0, 0, 1, 1], [], []>} : vector<256x128xbf16>, vector<128x128xbf16>, vector<256x128xf32> -> vector<256x128xf32>
    %c3 = arith.constant 3 : index
    %c0_27 = arith.constant 0 : index
    %35 = vector.load %arg11[%c3, %c0_27] : memref<16x128xf32, #tpu.memory_space<vmem>>, vector<1x128xf32>
    %36 = vector.broadcast %35 : vector<1x128xf32> to vector<256x128xf32>
    %37 = arith.addf %34, %36 : vector<256x128xf32>
    %38 = vector.shape_cast %37 : vector<256x128xf32> to vector<4x64x128xf32>
    %c0_28 = arith.constant 0 : index
    %c0_29 = arith.constant 0 : index
    %c0_30 = arith.constant 0 : index
    %39 = vector.load %arg14[%c0_28, %c0_29, %c0_30] : memref<4x64x128xf32, #tpu.memory_space<vmem>>, vector<4x64x128xf32>
    tpu.vector_store %arg14[%c0_28, %c0_29, %c0_30], %38 {strides = array<i32>} : memref<4x64x128xf32, #tpu.memory_space<vmem>>, vector<4x64x128xf32>,
    %40 = arith.truncf %37 : vector<256x128xf32> to vector<256x128xbf16>
    %c0_31 = arith.constant 0 : index
    %c0_32 = arith.constant 0 : index
    %41 = vector.load %arg6[%c0_31, %c0_32] : memref<128x128xbf16, #tpu.memory_space<vmem>>, vector<128x128xbf16>
    %cst_33 = arith.constant dense<0.000000e+00> : vector<256x128xf32>
    %42 = tpu.matmul %40, %41, %cst_33 {dimension_numbers = #tpu.dot_dimension_numbers<[1], [0], [0], [1], [0, 0, 1, 1], [], []>} : vector<256x128xbf16>, vector<128x128xbf16>, vector<256x128xf32> -> vector<256x128xf32>
    %c4 = arith.constant 4 : index
    %c0_34 = arith.constant 0 : index
    %43 = vector.load %arg11[%c4, %c0_34] : memref<16x128xf32, #tpu.memory_space<vmem>>, vector<1x128xf32>
    %44 = vector.broadcast %43 : vector<1x128xf32> to vector<256x128xf32>
    %45 = arith.addf %42, %44 : vector<256x128xf32>
    %cst_35 = arith.constant 0.000000e+00 : f32
    %cst_36 = arith.constant 6.000000e+00 : f32
    %46 = vector.broadcast %cst_35 : f32 to vector<256x128xf32>
    %47 = arith.maximumf %46, %45 : vector<256x128xf32>
    %48 = vector.broadcast %cst_36 : f32 to vector<256x128xf32>
    %49 = arith.minimumf %48, %47 : vector<256x128xf32>
    %50 = vector.shape_cast %49 : vector<256x128xf32> to vector<4x64x128xf32>
    %c0_37 = arith.constant 0 : index
    %c0_38 = arith.constant 0 : index
    %c0_39 = arith.constant 0 : index
    %51 = vector.load %arg13[%c0_37, %c0_38, %c0_39] : memref<4x64x128xf32, #tpu.memory_space<vmem>>, vector<4x64x128xf32>
    tpu.vector_store %arg13[%c0_37, %c0_38, %c0_39], %50 {strides = array<i32>} : memref<4x64x128xf32, #tpu.memory_space<vmem>>, vector<4x64x128xf32>,
    %c5 = arith.constant 5 : index
    %c0_40 = arith.constant 0 : index
    %52 = vector.load %arg11[%c5, %c0_40] : memref<16x128xf32, #tpu.memory_space<vmem>>, vector<1x128xf32>
    %c0_i32_41 = arith.constant 0 : i32
    %c4_i32_42 = arith.constant 4 : i32
    %53 = arith.addi %c0_i32_41, %c4_i32_42 : i32
    %c1_i32_43 = arith.constant 1 : i32
    scf.for %arg15 = %c0_i32_41 to %53 step %c1_i32_43  : i32 {
      %91 = arith.index_cast %arg15 : i32 to index
      %c0_71 = arith.constant 0 : index
      %c0_72 = arith.constant 0 : index
      %92 = vector.load %arg13[%91, %c0_71, %c0_72] : memref<4x64x128xf32, #tpu.memory_space<vmem>>, vector<1x64x128xf32>
      %93 = vector.shape_cast %92 : vector<1x64x128xf32> to vector<64x128xf32>
      %c4_73 = arith.constant 4 : index
      %c0_74 = arith.constant 0 : index
      %c0_75 = arith.constant 0 : index
      %94 = vector.load %arg7[%c4_73, %c0_74, %c0_75] : memref<9x64x128xf32, #tpu.memory_space<vmem>>, vector<1x64x128xf32>
      %95 = vector.shape_cast %94 : vector<1x64x128xf32> to vector<64x128xf32>
      %96 = arith.mulf %93, %95 : vector<64x128xf32>
      %c9_i32 = arith.constant 9 : i32
      %97 = tpu.dynamic_rotate %93 by %c9_i32 dim 0 : vector<64x128xf32>, i32 -> vector<64x128xf32>
      %c0_76 = arith.constant 0 : index
      %c0_77 = arith.constant 0 : index
      %c0_78 = arith.constant 0 : index
      %98 = vector.load %arg7[%c0_76, %c0_77, %c0_78] : memref<9x64x128xf32, #tpu.memory_space<vmem>>, vector<1x64x128xf32>
      %99 = vector.shape_cast %98 : vector<1x64x128xf32> to vector<64x128xf32>
      %100 = arith.mulf %97, %99 : vector<64x128xf32>
      %101 = arith.addf %96, %100 : vector<64x128xf32>
      %c8_i32 = arith.constant 8 : i32
      %102 = tpu.dynamic_rotate %93 by %c8_i32 dim 0 : vector<64x128xf32>, i32 -> vector<64x128xf32>
      %c1_79 = arith.constant 1 : index
      %c0_80 = arith.constant 0 : index
      %c0_81 = arith.constant 0 : index
      %103 = vector.load %arg7[%c1_79, %c0_80, %c0_81] : memref<9x64x128xf32, #tpu.memory_space<vmem>>, vector<1x64x128xf32>
      %104 = vector.shape_cast %103 : vector<1x64x128xf32> to vector<64x128xf32>
      %105 = arith.mulf %102, %104 : vector<64x128xf32>
      %106 = arith.addf %101, %105 : vector<64x128xf32>
      %c7_i32 = arith.constant 7 : i32
      %107 = tpu.dynamic_rotate %93 by %c7_i32 dim 0 : vector<64x128xf32>, i32 -> vector<64x128xf32>
      %c2_82 = arith.constant 2 : index
      %c0_83 = arith.constant 0 : index
      %c0_84 = arith.constant 0 : index
      %108 = vector.load %arg7[%c2_82, %c0_83, %c0_84] : memref<9x64x128xf32, #tpu.memory_space<vmem>>, vector<1x64x128xf32>
      %109 = vector.shape_cast %108 : vector<1x64x128xf32> to vector<64x128xf32>
      %110 = arith.mulf %107, %109 : vector<64x128xf32>
      %111 = arith.addf %106, %110 : vector<64x128xf32>
      %c1_i32_85 = arith.constant 1 : i32
      %112 = tpu.dynamic_rotate %93 by %c1_i32_85 dim 0 : vector<64x128xf32>, i32 -> vector<64x128xf32>
      %c3_86 = arith.constant 3 : index
      %c0_87 = arith.constant 0 : index
      %c0_88 = arith.constant 0 : index
      %113 = vector.load %arg7[%c3_86, %c0_87, %c0_88] : memref<9x64x128xf32, #tpu.memory_space<vmem>>, vector<1x64x128xf32>
      %114 = vector.shape_cast %113 : vector<1x64x128xf32> to vector<64x128xf32>
      %115 = arith.mulf %112, %114 : vector<64x128xf32>
      %116 = arith.addf %111, %115 : vector<64x128xf32>
      %c63_i32 = arith.constant 63 : i32
      %117 = tpu.dynamic_rotate %93 by %c63_i32 dim 0 : vector<64x128xf32>, i32 -> vector<64x128xf32>
      %c5_89 = arith.constant 5 : index
      %c0_90 = arith.constant 0 : index
      %c0_91 = arith.constant 0 : index
      %118 = vector.load %arg7[%c5_89, %c0_90, %c0_91] : memref<9x64x128xf32, #tpu.memory_space<vmem>>, vector<1x64x128xf32>
      %119 = vector.shape_cast %118 : vector<1x64x128xf32> to vector<64x128xf32>
      %120 = arith.mulf %117, %119 : vector<64x128xf32>
      %121 = arith.addf %116, %120 : vector<64x128xf32>
      %c57_i32 = arith.constant 57 : i32
      %122 = tpu.dynamic_rotate %93 by %c57_i32 dim 0 : vector<64x128xf32>, i32 -> vector<64x128xf32>
      %c6_92 = arith.constant 6 : index
      %c0_93 = arith.constant 0 : index
      %c0_94 = arith.constant 0 : index
      %123 = vector.load %arg7[%c6_92, %c0_93, %c0_94] : memref<9x64x128xf32, #tpu.memory_space<vmem>>, vector<1x64x128xf32>
      %124 = vector.shape_cast %123 : vector<1x64x128xf32> to vector<64x128xf32>
      %125 = arith.mulf %122, %124 : vector<64x128xf32>
      %126 = arith.addf %121, %125 : vector<64x128xf32>
      %c56_i32 = arith.constant 56 : i32
      %127 = tpu.dynamic_rotate %93 by %c56_i32 dim 0 : vector<64x128xf32>, i32 -> vector<64x128xf32>
      %c7_95 = arith.constant 7 : index
      %c0_96 = arith.constant 0 : index
      %c0_97 = arith.constant 0 : index
      %128 = vector.load %arg7[%c7_95, %c0_96, %c0_97] : memref<9x64x128xf32, #tpu.memory_space<vmem>>, vector<1x64x128xf32>
      %129 = vector.shape_cast %128 : vector<1x64x128xf32> to vector<64x128xf32>
      %130 = arith.mulf %127, %129 : vector<64x128xf32>
      %131 = arith.addf %126, %130 : vector<64x128xf32>
      %c55_i32 = arith.constant 55 : i32
      %132 = tpu.dynamic_rotate %93 by %c55_i32 dim 0 : vector<64x128xf32>, i32 -> vector<64x128xf32>
      %c8_98 = arith.constant 8 : index
      %c0_99 = arith.constant 0 : index
      %c0_100 = arith.constant 0 : index
      %133 = vector.load %arg7[%c8_98, %c0_99, %c0_100] : memref<9x64x128xf32, #tpu.memory_space<vmem>>, vector<1x64x128xf32>
      %134 = vector.shape_cast %133 : vector<1x64x128xf32> to vector<64x128xf32>
      %135 = arith.mulf %132, %134 : vector<64x128xf32>
      %136 = arith.addf %131, %135 : vector<64x128xf32>
      %137 = vector.broadcast %52 : vector<1x128xf32> to vector<64x128xf32>
      %138 = arith.addf %136, %137 : vector<64x128xf32>
      %cst_101 = arith.constant 0.000000e+00 : f32
      %cst_102 = arith.constant 6.000000e+00 : f32
      %139 = vector.broadcast %cst_101 : f32 to vector<64x128xf32>
      %140 = arith.maximumf %139, %138 : vector<64x128xf32>
      %141 = vector.broadcast %cst_102 : f32 to vector<64x128xf32>
      %142 = arith.minimumf %141, %140 : vector<64x128xf32>
      %143 = arith.index_cast %arg15 : i32 to index
      %c0_103 = arith.constant 0 : index
      %c0_104 = arith.constant 0 : index
      %144 = vector.load %arg13[%143, %c0_103, %c0_104] : memref<4x64x128xf32, #tpu.memory_space<vmem>>, vector<1x64x128xf32>
      %145 = vector.shape_cast %144 : vector<1x64x128xf32> to vector<64x128xf32>
      %146 = vector.shape_cast %142 : vector<64x128xf32> to vector<1x64x128xf32>
      tpu.vector_store %arg13[%143, %c0_103, %c0_104], %146 {strides = array<i32>} : memref<4x64x128xf32, #tpu.memory_space<vmem>>, vector<1x64x128xf32>,
    }
    %c4_i32_44 = arith.constant 4 : i32
    %c0_45 = arith.constant 0 : index
    %c0_46 = arith.constant 0 : index
    %c0_47 = arith.constant 0 : index
    %54 = vector.load %arg13[%c0_45, %c0_46, %c0_47] : memref<4x64x128xf32, #tpu.memory_space<vmem>>, vector<4x64x128xf32>
    %55 = vector.shape_cast %54 : vector<4x64x128xf32> to vector<256x128xf32>
    %56 = arith.truncf %55 : vector<256x128xf32> to vector<256x128xbf16>
    %c0_48 = arith.constant 0 : index
    %c0_49 = arith.constant 0 : index
    %57 = vector.load %arg8[%c0_48, %c0_49] : memref<128x128xbf16, #tpu.memory_space<vmem>>, vector<128x128xbf16>
    %cst_50 = arith.constant dense<0.000000e+00> : vector<256x128xf32>
    %58 = tpu.matmul %56, %57, %cst_50 {dimension_numbers = #tpu.dot_dimension_numbers<[1], [0], [0], [1], [0, 0, 1, 1], [], []>} : vector<256x128xbf16>, vector<128x128xbf16>, vector<256x128xf32> -> vector<256x128xf32>
    %c6 = arith.constant 6 : index
    %c0_51 = arith.constant 0 : index
    %59 = vector.load %arg11[%c6, %c0_51] : memref<16x128xf32, #tpu.memory_space<vmem>>, vector<1x128xf32>
    %60 = vector.broadcast %59 : vector<1x128xf32> to vector<256x128xf32>
    %61 = arith.addf %58, %60 : vector<256x128xf32>
    %c0_52 = arith.constant 0 : index
    %c0_53 = arith.constant 0 : index
    %c0_54 = arith.constant 0 : index
    %62 = vector.load %arg14[%c0_52, %c0_53, %c0_54] : memref<4x64x128xf32, #tpu.memory_space<vmem>>, vector<4x64x128xf32>
    %63 = vector.shape_cast %62 : vector<4x64x128xf32> to vector<256x128xf32>
    %64 = arith.addf %61, %63 : vector<256x128xf32>
    %65 = arith.truncf %64 : vector<256x128xf32> to vector<256x128xbf16>
    %c0_55 = arith.constant 0 : index
    %c0_56 = arith.constant 0 : index
    %66 = vector.load %arg9[%c0_55, %c0_56] : memref<128x128xbf16, #tpu.memory_space<vmem>>, vector<128x128xbf16>
    %cst_57 = arith.constant dense<0.000000e+00> : vector<256x128xf32>
    %67 = tpu.matmul %65, %66, %cst_57 {dimension_numbers = #tpu.dot_dimension_numbers<[1], [0], [0], [1], [0, 0, 1, 1], [], []>} : vector<256x128xbf16>, vector<128x128xbf16>, vector<256x128xf32> -> vector<256x128xf32>
    %c7 = arith.constant 7 : index
    %c0_58 = arith.constant 0 : index
    %68 = vector.load %arg11[%c7, %c0_58] : memref<16x128xf32, #tpu.memory_space<vmem>>, vector<1x128xf32>
    %69 = vector.broadcast %68 : vector<1x128xf32> to vector<256x128xf32>
    %70 = arith.addf %67, %69 : vector<256x128xf32>
    %cst_59 = arith.constant 3.000000e+00 : f32
    %71 = vector.broadcast %cst_59 : f32 to vector<256x128xf32>
    %72 = arith.addf %70, %71 : vector<256x128xf32>
    %cst_60 = arith.constant 0.000000e+00 : f32
    %cst_61 = arith.constant 6.000000e+00 : f32
    %73 = vector.broadcast %cst_60 : f32 to vector<256x128xf32>
    %74 = arith.maximumf %73, %72 : vector<256x128xf32>
    %75 = vector.broadcast %cst_61 : f32 to vector<256x128xf32>
    %76 = arith.minimumf %75, %74 : vector<256x128xf32>
    %77 = arith.mulf %70, %76 : vector<256x128xf32>
    %cst_62 = arith.constant 0.166666672 : f32
    %78 = vector.broadcast %cst_62 : f32 to vector<256x128xf32>
    %79 = arith.mulf %77, %78 : vector<256x128xf32>
    %80 = vector.shape_cast %79 : vector<256x128xf32> to vector<4x64x128xf32>
    %cst_63 = arith.constant dense<0.000000e+00> : vector<4x128xf32>
    %81 = vector.multi_reduction <add>, %80, %cst_63 [1] : vector<4x64x128xf32> to vector<4x128xf32>
    %82 = arith.truncf %81 : vector<4x128xf32> to vector<4x128xbf16>
    %c0_64 = arith.constant 0 : index
    %c0_65 = arith.constant 0 : index
    %83 = vector.load %arg10[%c0_64, %c0_65] : memref<128x128xbf16, #tpu.memory_space<vmem>>, vector<128x128xbf16>
    %cst_66 = arith.constant dense<0.000000e+00> : vector<4x128xf32>
    %84 = tpu.matmul %82, %83, %cst_66 {dimension_numbers = #tpu.dot_dimension_numbers<[1], [0], [0], [1], [0, 0, 1, 1], [], []>} : vector<4x128xbf16>, vector<128x128xbf16>, vector<4x128xf32> -> vector<4x128xf32>
    %c8 = arith.constant 8 : index
    %c0_67 = arith.constant 0 : index
    %85 = vector.load %arg11[%c8, %c0_67] : memref<16x128xf32, #tpu.memory_space<vmem>>, vector<1x128xf32>
    %86 = vector.broadcast %85 : vector<1x128xf32> to vector<4x128xf32>
    %87 = arith.addf %84, %86 : vector<4x128xf32>
    %c0_68 = arith.constant 0 : index
    %c0_69 = arith.constant 0 : index
    %c0_70 = arith.constant 0 : index
    %88 = vector.load %arg12[%c0_68, %c0_69, %c0_70] : memref<1x4x128xf32, #tpu.memory_space<vmem>>, vector<1x4x128xf32>
    %89 = vector.shape_cast %88 : vector<1x4x128xf32> to vector<4x128xf32>
    %90 = vector.shape_cast %87 : vector<4x128xf32> to vector<1x4x128xf32>
    tpu.vector_store %arg12[%c0_68, %c0_69, %c0_70], %90 {strides = array<i32>} : memref<1x4x128xf32, #tpu.memory_space<vmem>>, vector<1x4x128xf32>,
    return
  }
  func.func @transform_0(%arg0: i32) -> (i32, i32, i32) {
    %c0_i32 = arith.constant 0 : i32
    %c0_i32_0 = arith.constant 0 : i32
    %c0_i32_1 = arith.constant 0 : i32
    return %arg0, %c0_i32, %c0_i32_0 : i32, i32, i32
  }
  func.func @transform_1(%arg0: i32) -> (i32, i32) {
    %c0_i32 = arith.constant 0 : i32
    %c0_i32_0 = arith.constant 0 : i32
    %c0_i32_1 = arith.constant 0 : i32
    return %c0_i32, %c0_i32_0 : i32, i32
  }
  func.func @transform_2(%arg0: i32) -> (i32, i32) {
    %c0_i32 = arith.constant 0 : i32
    %c0_i32_0 = arith.constant 0 : i32
    %c0_i32_1 = arith.constant 0 : i32
    return %c0_i32, %c0_i32_0 : i32, i32
  }
  func.func @transform_3(%arg0: i32) -> (i32, i32, i32) {
    %c0_i32 = arith.constant 0 : i32
    %c0_i32_0 = arith.constant 0 : i32
    %c0_i32_1 = arith.constant 0 : i32
    %c0_i32_2 = arith.constant 0 : i32
    return %c0_i32, %c0_i32_0, %c0_i32_1 : i32, i32, i32
  }
  func.func @transform_4(%arg0: i32) -> (i32, i32) {
    %c0_i32 = arith.constant 0 : i32
    %c0_i32_0 = arith.constant 0 : i32
    %c0_i32_1 = arith.constant 0 : i32
    return %c0_i32, %c0_i32_0 : i32, i32
  }
  func.func @transform_5(%arg0: i32) -> (i32, i32) {
    %c0_i32 = arith.constant 0 : i32
    %c0_i32_0 = arith.constant 0 : i32
    %c0_i32_1 = arith.constant 0 : i32
    return %c0_i32, %c0_i32_0 : i32, i32
  }
  func.func @transform_6(%arg0: i32) -> (i32, i32, i32) {
    %c0_i32 = arith.constant 0 : i32
    %c0_i32_0 = arith.constant 0 : i32
    %c0_i32_1 = arith.constant 0 : i32
    %c0_i32_2 = arith.constant 0 : i32
    return %c0_i32, %c0_i32_0, %c0_i32_1 : i32, i32, i32
  }
  func.func @transform_7(%arg0: i32) -> (i32, i32) {
    %c0_i32 = arith.constant 0 : i32
    %c0_i32_0 = arith.constant 0 : i32
    %c0_i32_1 = arith.constant 0 : i32
    return %c0_i32, %c0_i32_0 : i32, i32
  }
  func.func @transform_8(%arg0: i32) -> (i32, i32) {
    %c0_i32 = arith.constant 0 : i32
    %c0_i32_0 = arith.constant 0 : i32
    %c0_i32_1 = arith.constant 0 : i32
    return %c0_i32, %c0_i32_0 : i32, i32
  }
  func.func @transform_9(%arg0: i32) -> (i32, i32) {
    %c0_i32 = arith.constant 0 : i32
    %c0_i32_0 = arith.constant 0 : i32
    %c0_i32_1 = arith.constant 0 : i32
    return %c0_i32, %c0_i32_0 : i32, i32
  }
  func.func @transform_10(%arg0: i32) -> (i32, i32) {
    %c0_i32 = arith.constant 0 : i32
    %c0_i32_0 = arith.constant 0 : i32
    %c0_i32_1 = arith.constant 0 : i32
    return %c0_i32, %c0_i32_0 : i32, i32
  }
  func.func @transform_11(%arg0: i32) -> (i32, i32, i32) {
    %c0_i32 = arith.constant 0 : i32
    %c0_i32_0 = arith.constant 0 : i32
    %c0_i32_1 = arith.constant 0 : i32
    return %arg0, %c0_i32, %c0_i32_0 : i32, i32, i32
  }
}

</mosaic_0001>

<llo_original>
// kernel: supernet_forward.1
$region0: #{supernet_forward.1}
  #allocation0 [shape = 'u32[]', space=smem, size = 0x4, offset = 0x4, fixed_abs, tag = 'smem constant byte address 0x4 - core index']
  #allocation1 [shape = 'u32[144,128]{1,0:T(1,128)}', space=vmem, size = 0x12000, scoped, tag = 'internal scratch']
  #allocation2 [shape = 'f32[4,64,128]{2,1,0:T(8,128)}', space=vmem, size = 0x20000, scoped, tag = 'scratch operand']
  #allocation3 [shape = 'f32[4,64,128]{2,1,0:T(8,128)}', space=vmem, size = 0x20000, scoped, tag = 'scratch operand']
  %s0 = inlined_call_operand.vmem [shape: bf16[8,64,128], index: 0, kind: input, shape index: {}]
  %s1 = inlined_call_operand.vmem [shape: bf16[128,128], index: 1, kind: input, shape index: {}]
  %s2 = inlined_call_operand.vmem [shape: bf16[128,128], index: 2, kind: input, shape index: {}]
  %s3 = inlined_call_operand.vmem [shape: f32[9,64,128], index: 3, kind: input, shape index: {}]
  %s4 = inlined_call_operand.vmem [shape: bf16[128,128], index: 4, kind: input, shape index: {}]
  %s5 = inlined_call_operand.vmem [shape: bf16[128,128], index: 5, kind: input, shape index: {}]
  %s6 = inlined_call_operand.vmem [shape: f32[9,64,128], index: 6, kind: input, shape index: {}]
  %s7 = inlined_call_operand.vmem [shape: bf16[128,128], index: 7, kind: input, shape index: {}]
  %s8 = inlined_call_operand.vmem [shape: bf16[128,128], index: 8, kind: input, shape index: {}]
  %s9 = inlined_call_operand.vmem [shape: bf16[128,128], index: 9, kind: input, shape index: {}]
  %s10 = inlined_call_operand.vmem [shape: f32[16,128], index: 10, kind: input, shape index: {}]
  %s11 = inlined_call_operand.hbm [shape: f32[2,4,128], index: 11, kind: output, shape index: {}]
  %s12 = sld [smem:[#allocation0]]
  $region91: #{supernet_forward.1} parent=0
    _
  %s14 = ssub.s32 1, %s12
  %s15 = scalar_select 0, %s14, %s12
  $region1: #{supernet_forward.1} parent=0
    #allocation4 [shape = 'u8[4096]{0}', space=vmem, size = 0x1000, scoped, tag = 'output window, operand 0']
    #allocation5 [shape = 's32[2]{0}', space=sflag, size = 0x8, scoped, tag = 'scoped memory for supernet_forward.1']
    %16 = vsyncpa [#allocation5], 0
    %s17 = scalar_lea.sflag [#allocation5], 1
    %18 = vsyncpa %s17, 0
    loop: start=0, step=1, limit=4
    $region2: #{supernet_forward.1} parent=1 // loop_pre_header
      _
    $region3: #{supernet_forward.1} parent=1 // loop_header
      %s20 = sphi 0, %s24
      %p21 = scmp.ge.s32.totalorder %s20, 4
      %s30 = sphi 0, %s32
      %s33 = sphi 0, %s30
      %s34 = sphi 0, %s33
      %s50 = sphi 0, %s34
      %s54 = sphi 0, %s54
      %s56 = sphi 0, %s54
      %s57 = sphi 0, %s56
      %s71 = sphi 0, %s57
      %s75 = sphi 0, %s75
      %s77 = sphi 0, %s75
      %s78 = sphi 0, %s77
      %s92 = sphi 0, %s78
      %s96 = sphi 0, %s96
      %s98 = sphi 0, %s96
      %s99 = sphi 0, %s98
      %s113 = sphi 0, %s99
      %s117 = sphi 0, %s117
      %s119 = sphi 0, %s117
      %s120 = sphi 0, %s119
      %s134 = sphi 0, %s120
      %s138 = sphi 0, %s138
      %s140 = sphi 0, %s138
      %s141 = sphi 0, %s140
      %s155 = sphi 0, %s141
      %s159 = sphi 0, %s159
      %s161 = sphi 0, %s159
      %s162 = sphi 0, %s161
      %s176 = sphi 0, %s162
      %s180 = sphi 0, %s180
      %s182 = sphi 0, %s180
      %s183 = sphi 0, %s182
      %s197 = sphi 0, %s183
      %s201 = sphi 0, %s201
      %s203 = sphi 0, %s201
      %s204 = sphi 0, %s203
      %s218 = sphi 0, %s204
      %s222 = sphi 0, %s222
      %s224 = sphi 0, %s222
      %s225 = sphi 0, %s224
      %s239 = sphi 0, %s225
      %s243 = sphi 0, %s243
      %s245 = sphi 0, %s243
      %s246 = sphi 0, %s245
      %s260 = sphi 0, %s246
      %s266 = sphi 0, %s268
      %s269 = sphi 0, %s266
      %s270 = sphi 0, %s269
      %s286 = sphi 0, %s270
    $region4: #{supernet_forward.1} parent=1 // loop_header_branch
      %23 = sbr.rel (%p21) target = $region8
    $region5: #{supernet_forward.1} parent=1 // loop_body
      %s25 = ssub.s32 %s20, 1
      %s26 = ssub.s32 %s20, 2
      %s27 = sadd.s32 %s20, 1
      %s28 = ssub.s32 %s20, %s27
      %p29 = scmp.eq.s32.totalorder %s28, 0
      %s31 = sadd.s32 %s30, 1
      %s32 = scalar_select %p29, %s30, %s31
      %p35 = pneg %p29
      %p36 = scmp.eq.s32.totalorder %s20, 1
      %p37 = por %p35, %p36
      %p38 = scmp.ne.s32.totalorder %s30, %s33
      %p39 = scmp.eq.s32.totalorder %s20, 0
      %p40 = por %p38, %p39
      %p41 = scmp.ne.s32.totalorder %s30, %s33
      %p42 = scmp.eq.s32.totalorder %s25, 1
      %p43 = por %p41, %p42
      %p44 = scmp.ne.s32.totalorder %s33, %s34
      %p45 = scmp.eq.s32.totalorder %s25, 0
      %p46 = por %p44, %p45
      %p47 = scmp.ne.s32.totalorder %s33, %s34
      %p48 = scmp.eq.s32.totalorder %s26, 1
      %p49 = por %p47, %p48
      %p51 = scmp.ne.s32.totalorder %s34, %s50
      %p52 = scmp.eq.s32.totalorder %s26, 0
      %p53 = por %p51, %p52
      %s55 = sadd.s32 %s54, 1
      %p58 = scmp.eq.s32.totalorder %s20, 1
      %p59 = scmp.ne.s32.totalorder %s54, %s56
      %p60 = scmp.eq.s32.totalorder %s20, 0
      %p61 = por %p59, %p60
      %p62 = scmp.ne.s32.totalorder %s54, %s56
      %p63 = scmp.eq.s32.totalorder %s25, 1
      %p64 = por %p62, %p63
      %p65 = scmp.ne.s32.totalorder %s56, %s57
      %p66 = scmp.eq.s32.totalorder %s25, 0
      %p67 = por %p65, %p66
      %p68 = scmp.ne.s32.totalorder %s56, %s57
      %p69 = scmp.eq.s32.totalorder %s26, 1
      %p70 = por %p68, %p69
      %p72 = scmp.ne.s32.totalorder %s57, %s71
      %p73 = scmp.eq.s32.totalorder %s26, 0
      %p74 = por %p72, %p73
      %s76 = sadd.s32 %s75, 1
      %p79 = scmp.eq.s32.totalorder %s20, 1
      %p80 = scmp.ne.s32.totalorder %s75, %s77
      %p81 = scmp.eq.s32.totalorder %s20, 0
      %p82 = por %p80, %p81
      %p83 = scmp.ne.s32.totalorder %s75, %s77
      %p84 = scmp.eq.s32.totalorder %s25, 1
      %p85 = por %p83, %p84
      %p86 = scmp.ne.s32.totalorder %s77, %s78
      %p87 = scmp.eq.s32.totalorder %s25, 0
      %p88 = por %p86, %p87
      %p89 = scmp.ne.s32.totalorder %s77, %s78
      %p90 = scmp.eq.s32.totalorder %s26, 1
      %p91 = por %p89, %p90
      %p93 = scmp.ne.s32.totalorder %s78, %s92
      %p94 = scmp.eq.s32.totalorder %s26, 0
      %p95 = por %p93, %p94
      %s97 = sadd.s32 %s96, 1
      %p100 = scmp.eq.s32.totalorder %s20, 1
      %p101 = scmp.ne.s32.totalorder %s96, %s98
      %p102 = scmp.eq.s32.totalorder %s20, 0
      %p103 = por %p101, %p102
      %p104 = scmp.ne.s32.totalorder %s96, %s98
      %p105 = scmp.eq.s32.totalorder %s25, 1
      %p106 = por %p104, %p105
      %p107 = scmp.ne.s32.totalorder %s98, %s99
      %p108 = scmp.eq.s32.totalorder %s25, 0
      %p109 = por %p107, %p108
      %p110 = scmp.ne.s32.totalorder %s98, %s99
      %p111 = scmp.eq.s32.totalorder %s26, 1
      %p112 = por %p110, %p111
      %p114 = scmp.ne.s32.totalorder %s99, %s113
      %p115 = scmp.eq.s32.totalorder %s26, 0
      %p116 = por %p114, %p115
      %s118 = sadd.s32 %s117, 1
      %p121 = scmp.eq.s32.totalorder %s20, 1
      %p122 = scmp.ne.s32.totalorder %s117, %s119
      %p123 = scmp.eq.s32.totalorder %s20, 0
      %p124 = por %p122, %p123
      %p125 = scmp.ne.s32.totalorder %s117, %s119
      %p126 = scmp.eq.s32.totalorder %s25, 1
      %p127 = por %p125, %p126
      %p128 = scmp.ne.s32.totalorder %s119, %s120
      %p129 = scmp.eq.s32.totalorder %s25, 0
      %p130 = por %p128, %p129
      %p131 = scmp.ne.s32.totalorder %s119, %s120
      %p132 = scmp.eq.s32.totalorder %s26, 1
      %p133 = por %p131, %p132
      %p135 = scmp.ne.s32.totalorder %s120, %s134
      %p136 = scmp.eq.s32.totalorder %s26, 0
      %p137 = por %p135, %p136
      %s139 = sadd.s32 %s138, 1
      %p142 = scmp.eq.s32.totalorder %s20, 1
      %p143 = scmp.ne.s32.totalorder %s138, %s140
      %p144 = scmp.eq.s32.totalorder %s20, 0
      %p145 = por %p143, %p144
      %p146 = scmp.ne.s32.totalorder %s138, %s140
      %p147 = scmp.eq.s32.totalorder %s25, 1
      %p148 = por %p146, %p147
      %p149 = scmp.ne.s32.totalorder %s140, %s141
      %p150 = scmp.eq.s32.totalorder %s25, 0
      %p151 = por %p149, %p150
      %p152 = scmp.ne.s32.totalorder %s140, %s141
      %p153 = scmp.eq.s32.totalorder %s26, 1
      %p154 = por %p152, %p153
      %p156 = scmp.ne.s32.totalorder %s141, %s155
      %p157 = scmp.eq.s32.totalorder %s26, 0
      %p158 = por %p156, %p157
      %s160 = sadd.s32 %s159, 1
      %p163 = scmp.eq.s32.totalorder %s20, 1
      %p164 = scmp.ne.s32.totalorder %s159, %s161
      %p165 = scmp.eq.s32.totalorder %s20, 0
      %p166 = por %p164, %p165
      %p167 = scmp.ne.s32.totalorder %s159, %s161
      %p168 = scmp.eq.s32.totalorder %s25, 1
      %p169 = por %p167, %p168
      %p170 = scmp.ne.s32.totalorder %s161, %s162
      %p171 = scmp.eq.s32.totalorder %s25, 0
      %p172 = por %p170, %p171
      %p173 = scmp.ne.s32.totalorder %s161, %s162
      %p174 = scmp.eq.s32.totalorder %s26, 1
      %p175 = por %p173, %p174
      %p177 = scmp.ne.s32.totalorder %s162, %s176
      %p178 = scmp.eq.s32.totalorder %s26, 0
      %p179 = por %p177, %p178
      %s181 = sadd.s32 %s180, 1
      %p184 = scmp.eq.s32.totalorder %s20, 1
      %p185 = scmp.ne.s32.totalorder %s180, %s182
      %p186 = scmp.eq.s32.totalorder %s20, 0
      %p187 = por %p185, %p186
      %p188 = scmp.ne.s32.totalorder %s180, %s182
      %p189 = scmp.eq.s32.totalorder %s25, 1
      %p190 = por %p188, %p189
      %p191 = scmp.ne.s32.totalorder %s182, %s183
      %p192 = scmp.eq.s32.totalorder %s25, 0
      %p193 = por %p191, %p192
      %p194 = scmp.ne.s32.totalorder %s182, %s183
      %p195 = scmp.eq.s32.totalorder %s26, 1
      %p196 = por %p194, %p195
      %p198 = scmp.ne.s32.totalorder %s183, %s197
      %p199 = scmp.eq.s32.totalorder %s26, 0
      %p200 = por %p198, %p199
      %s202 = sadd.s32 %s201, 1
      %p205 = scmp.eq.s32.totalorder %s20, 1
      %p206 = scmp.ne.s32.totalorder %s201, %s203
      %p207 = scmp.eq.s32.totalorder %s20, 0
      %p208 = por %p206, %p207
      %p209 = scmp.ne.s32.totalorder %s201, %s203
      %p210 = scmp.eq.s32.totalorder %s25, 1
      %p211 = por %p209, %p210
      %p212 = scmp.ne.s32.totalorder %s203, %s204
      %p213 = scmp.eq.s32.totalorder %s25, 0
      %p214 = por %p212, %p213
      %p215 = scmp.ne.s32.totalorder %s203, %s204
      %p216 = scmp.eq.s32.totalorder %s26, 1
      %p217 = por %p215, %p216
      %p219 = scmp.ne.s32.totalorder %s204, %s218
      %p220 = scmp.eq.s32.totalorder %s26, 0
      %p221 = por %p219, %p220
      %s223 = sadd.s32 %s222, 1
      %p226 = scmp.eq.s32.totalorder %s20, 1
      %p227 = scmp.ne.s32.totalorder %s222, %s224
      %p228 = scmp.eq.s32.totalorder %s20, 0
      %p229 = por %p227, %p228
      %p230 = scmp.ne.s32.totalorder %s222, %s224
      %p231 = scmp.eq.s32.totalorder %s25, 1
      %p232 = por %p230, %p231
      %p233 = scmp.ne.s32.totalorder %s224, %s225
      %p234 = scmp.eq.s32.totalorder %s25, 0
      %p235 = por %p233, %p234
      %p236 = scmp.ne.s32.totalorder %s224, %s225
      %p237 = scmp.eq.s32.totalorder %s26, 1
      %p238 = por %p236, %p237
      %p240 = scmp.ne.s32.totalorder %s225, %s239
      %p241 = scmp.eq.s32.totalorder %s26, 0
      %p242 = por %p240, %p241
      %s244 = sadd.s32 %s243, 1
      %p247 = scmp.eq.s32.totalorder %s20, 1
      %p248 = scmp.ne.s32.totalorder %s243, %s245
      %p249 = scmp.eq.s32.totalorder %s20, 0
      %p250 = por %p248, %p249
      %p251 = scmp.ne.s32.totalorder %s243, %s245
      %p252 = scmp.eq.s32.totalorder %s25, 1
      %p253 = por %p251, %p252
      %p254 = scmp.ne.s32.totalorder %s245, %s246
      %p255 = scmp.eq.s32.totalorder %s25, 0
      %p256 = por %p254, %p255
      %p257 = scmp.ne.s32.totalorder %s245, %s246
      %p258 = scmp.eq.s32.totalorder %s26, 1
      %p259 = por %p257, %p258
      %p261 = scmp.ne.s32.totalorder %s246, %s260
      %p262 = scmp.eq.s32.totalorder %s26, 0
      %p263 = por %p261, %p262
      %s264 = ssub.s32 %s20, %s27
      %p265 = scmp.eq.s32.totalorder %s264, 0
      %s267 = sadd.s32 %s266, 1
      %s268 = scalar_select %p265, %s266, %s267
      %p271 = pneg %p265
      %p272 = scmp.eq.s32.totalorder %s20, 1
      %p273 = por %p271, %p272
      %p274 = scmp.ne.s32.totalorder %s266, %s269
      %p275 = scmp.eq.s32.totalorder %s20, 0
      %p276 = por %p274, %p275
      %p277 = scmp.ne.s32.totalorder %s266, %s269
      %p278 = scmp.eq.s32.totalorder %s25, 1
      %p279 = por %p277, %p278
      %p280 = scmp.ne.s32.totalorder %s269, %s270
      %p281 = scmp.eq.s32.totalorder %s25, 0
      %p282 = por %p280, %p281
      %p283 = scmp.ne.s32.totalorder %s269, %s270
      %p284 = scmp.eq.s32.totalorder %s26, 1
      %p285 = por %p283, %p284
      %p287 = scmp.ne.s32.totalorder %s270, %s286
      %p288 = scmp.eq.s32.totalorder %s26, 0
      %p289 = por %p287, %p288
      %p290 = scmp.le.s32.totalorder 1, %s20
      %p291 = scmp.lt.s32.totalorder %s20, 3
      %p292 = pnand %p290, %p291
      %p293 = pneg %p292
      // Predicated region
      $region9: #{supernet_forward.1} parent=5 // pred_check
        _
      $region10: #{supernet_forward.1} parent=5 // pred_check_branch
        %295 = sbr.rel (%p292) target = $region12
      $region11: #{supernet_forward.1} parent=5 // pred_region
        %s296 = ssub.s32 %s20, 1
        // Predicated region
        $region13: #{supernet_forward.1} parent=11 // pred_check
          %p297 = pneg %p67
        $region14: #{supernet_forward.1} parent=11 // pred_check_branch
          %299 = sbr.rel (%p297) target = $region16
        $region15: #{supernet_forward.1} parent=11 // pred_region
          _
        $region16: #{supernet_forward.1} parent=11 // pred_fallthru
          _
        // Predicated region
        $region17: #{supernet_forward.1} parent=11 // pred_check
          %p300 = pneg %p88
        $region18: #{supernet_forward.1} parent=11 // pred_check_branch
          %302 = sbr.rel (%p300) target = $region20
        $region19: #{supernet_forward.1} parent=11 // pred_region
          _
        $region20: #{supernet_forward.1} parent=11 // pred_fallthru
          _
        // Predicated region
        $region21: #{supernet_forward.1} parent=11 // pred_check
          %p303 = pneg %p109
        $region22: #{supernet_forward.1} parent=11 // pred_check_branch
          %305 = sbr.rel (%p303) target = $region24
        $region23: #{supernet_forward.1} parent=11 // pred_region
          _
        $region24: #{supernet_forward.1} parent=11 // pred_fallthru
          _
        // Predicated region
        $region25: #{supernet_forward.1} parent=11 // pred_check
          %p306 = pneg %p130
        $region26: #{supernet_forward.1} parent=11 // pred_check_branch
          %308 = sbr.rel (%p306) target = $region28
        $region27: #{supernet_forward.1} parent=11 // pred_region
          _
        $region28: #{supernet_forward.1} parent=11 // pred_fallthru
          _
        // Predicated region
        $region29: #{supernet_forward.1} parent=11 // pred_check
          %p309 = pneg %p151
        $region30: #{supernet_forward.1} parent=11 // pred_check_branch
          %311 = sbr.rel (%p309) target = $region32
        $region31: #{supernet_forward.1} parent=11 // pred_region
          _
        $region32: #{supernet_forward.1} parent=11 // pred_fallthru
          _
        // Predicated region
        $region33: #{supernet_forward.1} parent=11 // pred_check
          %p312 = pneg %p172
        $region34: #{supernet_forward.1} parent=11 // pred_check_branch
          %314 = sbr.rel (%p312) target = $region36
        $region35: #{supernet_forward.1} parent=11 // pred_region
          _
        $region36: #{supernet_forward.1} parent=11 // pred_fallthru
          _
        // Predicated region
        $region37: #{supernet_forward.1} parent=11 // pred_check
          %p315 = pneg %p193
        $region38: #{supernet_forward.1} parent=11 // pred_check_branch
          %317 = sbr.rel (%p315) target = $region40
        $region39: #{supernet_forward.1} parent=11 // pred_region
          _
        $region40: #{supernet_forward.1} parent=11 // pred_fallthru
          _
        // Predicated region
        $region41: #{supernet_forward.1} parent=11 // pred_check
          %p318 = pneg %p214
        $region42: #{supernet_forward.1} parent=11 // pred_check_branch
          %320 = sbr.rel (%p318) target = $region44
        $region43: #{supernet_forward.1} parent=11 // pred_region
          _
        $region44: #{supernet_forward.1} parent=11 // pred_fallthru
          _
        // Predicated region
        $region45: #{supernet_forward.1} parent=11 // pred_check
          %p321 = pneg %p235
        $region46: #{supernet_forward.1} parent=11 // pred_check_branch
          %323 = sbr.rel (%p321) target = $region48
        $region47: #{supernet_forward.1} parent=11 // pred_region
          _
        $region48: #{supernet_forward.1} parent=11 // pred_fallthru
          _
        // Predicated region
        $region49: #{supernet_forward.1} parent=11 // pred_check
          %p324 = pneg %p256
        $region50: #{supernet_forward.1} parent=11 // pred_check_branch
          %326 = sbr.rel (%p324) target = $region52
        $region51: #{supernet_forward.1} parent=11 // pred_region
          _
        $region52: #{supernet_forward.1} parent=11 // pred_fallthru
          _
      $region12: #{supernet_forward.1} parent=5 // pred_fallthru
        _
      %p327 = scmp.lt.s32.totalorder %s20, 2
      // Predicated region
      $region53: #{supernet_forward.1} parent=5 // pred_check
        %p328 = pneg %p327
      $region54: #{supernet_forward.1} parent=5 // pred_check_branch
        %330 = sbr.rel (%p328) target = $region56
      $region55: #{supernet_forward.1} parent=5 // pred_region
        // Predicated region
        $region57: #{supernet_forward.1} parent=55 // pred_check
          %p331 = pneg %p40
        $region58: #{supernet_forward.1} parent=55 // pred_check_branch
          %333 = sbr.rel (%p331) target = $region60
        $region59: #{supernet_forward.1} parent=55 // pred_region
          %s334 = smul.u32 4, %s20
          %p335 = scmp.lt.s32.totalorder %s334, 7
          %s336 = scalar_select %p335, %s334, 7
          %s337 = smul.addr %s336, 8
          %s338 = smul.addr %s337, 4
          %s339 = scalar_lea.vmem %s0, %s338
          %s340 = smul.u32 4, %s20
        $region60: #{supernet_forward.1} parent=55 // pred_fallthru
          _
      $region56: #{supernet_forward.1} parent=5 // pred_fallthru
        _
      %p341 = scmp.le.s32.totalorder 1, %s20
      %p342 = scmp.lt.s32.totalorder %s20, 3
      %p343 = pnand %p341, %p342
      %p344 = pneg %p343
      // Predicated region
      $region61: #{supernet_forward.1} parent=5 // pred_check
        _
      $region62: #{supernet_forward.1} parent=5 // pred_check_branch
        %346 = sbr.rel (%p343) target = $region64
      $region63: #{supernet_forward.1} parent=5 // pred_region
        %s347 = ssub.s32 %s20, 1
        %s348 = smul.u32 4, %s25
        %p349 = scmp.lt.s32.totalorder %s348, 7
        %s350 = scalar_select %p349, %s348, 7
        %s351 = smul.addr %s350, 8
        %s352 = smul.addr %s351, 4
        %s353 = scalar_lea.vmem %s0, %s352
        %p354 = pneg %p46
        %p355 = pneg %p43
        %p356 = pneg %p67
        %p357 = pneg %p64
        %p358 = pneg %p88
        %p359 = pneg %p85
        %p360 = pneg %p109
        %p361 = pneg %p106
        %p362 = pneg %p130
        %p363 = pneg %p127
        %p364 = pneg %p151
        %p365 = pneg %p148
        %p366 = pneg %p172
        %p367 = pneg %p169
        %p368 = pneg %p193
        %p369 = pneg %p190
        %p370 = pneg %p214
        %p371 = pneg %p211
        %p372 = pneg %p235
        %p373 = pneg %p232
        %p374 = pneg %p256
        %p375 = pneg %p253
        %p376 = pneg %p282
        %p377 = pneg %p279
        %s378 = sand.u32 %s269, 1
        %s379 = scalar_lea.sflag [#allocation5], %s378
        %s380 = sand.u32 %s269, 1
        %s381 = smul.addr %s380, 4
        %s382 = scalar_lea.vmem [#allocation4], %s381
        %s383 = smul.u32 4, %s25
        %p384 = scmp.lt.s32.totalorder %s383, 7
        %s385 = scalar_select %p384, %s383, 7
        %s386 = smul.addr %s385, 8
        %s387 = smul.addr %s386, 4
        %s388 = scalar_lea.vmem %s0, %s387
        %s389 = smul.u32 4, %s25
        %v391 = vld [vmem:[%s388] sm:$0xf]
        %v392 = vld [vmem:[%s388 + $0x4] sm:$0xf]
        %v393 = vld [vmem:[%s388 + $0x8] sm:$0xf]
        %v394 = vld [vmem:[%s388 + $0xc] sm:$0xf]
        %v395 = vld [vmem:[%s388 + $0x10] sm:$0xf]
        %v396 = vld [vmem:[%s388 + $0x14] sm:$0xf]
        %v397 = vld [vmem:[%s388 + $0x18] sm:$0xf]
        %v398 = vld [vmem:[%s388 + $0x1c] sm:$0xf]
        %v399 = vld [vmem:[%s388 + $0x20] sm:$0xf]
        %v400 = vld [vmem:[%s388 + $0x24] sm:$0xf]
        %v401 = vld [vmem:[%s388 + $0x28] sm:$0xf]
        %v402 = vld [vmem:[%s388 + $0x2c] sm:$0xf]
        %v403 = vld [vmem:[%s388 + $0x30] sm:$0xf]
        %v404 = vld [vmem:[%s388 + $0x34] sm:$0xf]
        %v405 = vld [vmem:[%s388 + $0x38] sm:$0xf]
        %v406 = vld [vmem:[%s388 + $0x3c] sm:$0xf]
        %v407 = vld [vmem:[%s388 + $0x40] sm:$0xf]
        %v408 = vld [vmem:[%s388 + $0x44] sm:$0xf]
        %v409 = vld [vmem:[%s388 + $0x48] sm:$0xf]
        %v410 = vld [vmem:[%s388 + $0x4c] sm:$0xf]
        %v411 = vld [vmem:[%s388 + $0x50] sm:$0xf]
        %v412 = vld [vmem:[%s388 + $0x54] sm:$0xf]
        %v413 = vld [vmem:[%s388 + $0x58] sm:$0xf]
        %v414 = vld [vmem:[%s388 + $0x5c] sm:$0xf]
        %v415 = vld [vmem:[%s388 + $0x60] sm:$0xf]
        %v416 = vld [vmem:[%s388 + $0x64] sm:$0xf]
        %v417 = vld [vmem:[%s388 + $0x68] sm:$0xf]
        %v418 = vld [vmem:[%s388 + $0x6c] sm:$0xf]
        %v419 = vld [vmem:[%s388 + $0x70] sm:$0xf]
        %v420 = vld [vmem:[%s388 + $0x74] sm:$0xf]
        %v421 = vld [vmem:[%s388 + $0x78] sm:$0xf]
        %v422 = vld [vmem:[%s388 + $0x7c] sm:$0xf]
        %v423 = vld [vmem:[%s1] sm:$0xf]
        %v424 = vld [vmem:[%s1 + $0x4] sm:$0xf]
        %v425 = vld [vmem:[%s1 + $0x8] sm:$0xf]
        %v426 = vld [vmem:[%s1 + $0xc] sm:$0xf]
        %v427 = vld [vmem:[%s1 + $0x10] sm:$0xf]
        %v428 = vld [vmem:[%s1 + $0x14] sm:$0xf]
        %v429 = vld [vmem:[%s1 + $0x18] sm:$0xf]
        %v430 = vld [vmem:[%s1 + $0x1c] sm:$0xf]
        %v431 = vld [vmem:[%s1 + $0x20] sm:$0xf]
        %v432 = vld [vmem:[%s1 + $0x24] sm:$0xf]
        %v433 = vld [vmem:[%s1 + $0x28] sm:$0xf]
        %v434 = vld [vmem:[%s1 + $0x2c] sm:$0xf]
        %v435 = vld [vmem:[%s1 + $0x30] sm:$0xf]
        %v436 = vld [vmem:[%s1 + $0x34] sm:$0xf]
        %v437 = vld [vmem:[%s1 + $0x38] sm:$0xf]
        %v438 = vld [vmem:[%s1 + $0x3c] sm:$0xf]
        %v439 = vld [vmem:[%s10] sm:$0x1]
        %v440 = vlaneseq
        %v441 = vshrl.u32 %v440, 7
        %v442 = vsub.s32 0, %v441
        %v443 = vrot.slane %v439, %v442
        %v476 = vunpack.c.l.b16 %v391
        %v477 = vunpack.c.l.b16 %v392
        %v478 = vunpack.c.l.b16 %v393
        %v479 = vunpack.c.l.b16 %v394
        %v480 = vunpack.c.l.b16 %v395
        %v481 = vunpack.c.l.b16 %v396
        %v482 = vunpack.c.l.b16 %v397
        %v483 = vunpack.c.l.b16 %v398
        %v484 = vunpack.c.l.b16 %v399
        %v485 = vunpack.c.l.b16 %v400
        %v486 = vunpack.c.l.b16 %v401
        %v487 = vunpack.c.l.b16 %v402
        %v488 = vunpack.c.l.b16 %v403
        %v489 = vunpack.c.l.b16 %v404
        %v490 = vunpack.c.l.b16 %v405
        %v491 = vunpack.c.l.b16 %v406
        %v492 = vunpack.c.l.b16 %v407
        %v493 = vunpack.c.l.b16 %v408
        %v494 = vunpack.c.l.b16 %v409
        %v495 = vunpack.c.l.b16 %v410
        %v496 = vunpack.c.l.b16 %v411
        %v497 = vunpack.c.l.b16 %v412
        %v498 = vunpack.c.l.b16 %v413
        %v499 = vunpack.c.l.b16 %v414
        %v500 = vunpack.c.l.b16 %v415
        %v501 = vunpack.c.l.b16 %v416
        %v502 = vunpack.c.l.b16 %v417
        %v503 = vunpack.c.l.b16 %v418
        %v504 = vunpack.c.l.b16 %v419
        %v505 = vunpack.c.l.b16 %v420
        %v506 = vunpack.c.l.b16 %v421
        %v507 = vunpack.c.l.b16 %v422
        %v508 = vpack.c.b16 %v477, %v476
        %v509 = vpack.c.b16 %v479, %v478
        %v510 = vpack.c.b16 %v481, %v480
        %v511 = vpack.c.b16 %v483, %v482
        %v512 = vpack.c.b16 %v485, %v484
        %v513 = vpack.c.b16 %v487, %v486
        %v514 = vpack.c.b16 %v489, %v488
        %v515 = vpack.c.b16 %v491, %v490
        %v516 = vpack.c.b16 %v493, %v492
        %v517 = vpack.c.b16 %v495, %v494
        %v518 = vpack.c.b16 %v497, %v496
        %v519 = vpack.c.b16 %v499, %v498
        %v520 = vpack.c.b16 %v501, %v500
        %v521 = vpack.c.b16 %v503, %v502
        %v522 = vpack.c.b16 %v505, %v504
        %v523 = vpack.c.b16 %v507, %v506
        %v556 = vunpack.c.l.b16 %v423
        %v557 = vunpack.c.l.b16 %v424
        %v558 = vunpack.c.l.b16 %v425
        %v559 = vunpack.c.l.b16 %v426
        %v560 = vunpack.c.l.b16 %v427
        %v561 = vunpack.c.l.b16 %v428
        %v562 = vunpack.c.l.b16 %v429
        %v563 = vunpack.c.l.b16 %v430
        %v564 = vunpack.c.l.b16 %v431
        %v565 = vunpack.c.l.b16 %v432
        %v566 = vunpack.c.l.b16 %v433
        %v567 = vunpack.c.l.b16 %v434
        %v568 = vunpack.c.l.b16 %v435
        %v569 = vunpack.c.l.b16 %v436
        %v570 = vunpack.c.l.b16 %v437
        %v571 = vunpack.c.l.b16 %v438
        %v572 = vpack.c.b16 %v557, %v556
        %v573 = vpack.c.b16 %v559, %v558
        %v574 = vpack.c.b16 %v561, %v560
        %v575 = vpack.c.b16 %v563, %v562
        %v576 = vpack.c.b16 %v565, %v564
        %v577 = vpack.c.b16 %v567, %v566
        %v578 = vpack.c.b16 %v569, %v568
        %v579 = vpack.c.b16 %v571, %v570
        %588 = vmatprep.subr.bf16.mxu0 0
        %589 = vmatpush1.bf16.msra.mxu0 %v572
        %590 = vmatprep.subr.bf16.mxu0 0
        %591 = vmatpush1.bf16.msra.mxu0 %v573
        %592 = vmatprep.subr.bf16.mxu0 0
        %593 = vmatpush1.bf16.msra.mxu0 %v574
        %594 = vmatprep.subr.bf16.mxu0 0
        %595 = vmatpush1.bf16.msra.mxu0 %v575
        %596 = vmatprep.subr.bf16.mxu0 0
        %597 = vmatpush1.bf16.msra.mxu0 %v576
        %598 = vmatprep.subr.bf16.mxu0 0
        %599 = vmatpush1.bf16.msra.mxu0 %v577
        %600 = vmatprep.subr.bf16.mxu0 0
        %601 = vmatpush1.bf16.msra.mxu0 %v578
        %602 = vmatprep.subr.bf16.mxu0 0
        %603 = vmatpush1.bf16.msra.mxu0 %v579
        %604 = vmatprep.subr.bf16.mxu0 0
        %605 = vmatpush1.bf16.msra.mxu0 0
        %606 = vmatprep.subr.bf16.mxu0 0
        %607 = vmatpush1.bf16.msra.mxu0 0
        %608 = vmatprep.subr.bf16.mxu0 0
        %609 = vmatpush1.bf16.msra.mxu0 0
        %610 = vmatprep.subr.bf16.mxu0 0
        %611 = vmatpush1.bf16.msra.mxu0 0
        %612 = vmatprep.subr.bf16.mxu0 0
        %613 = vmatpush1.bf16.msra.mxu0 0
        %614 = vmatprep.subr.bf16.mxu0 0
        %615 = vmatpush1.bf16.msra.mxu0 0
        %616 = vmatprep.subr.bf16.mxu0 0
        %617 = vmatpush1.bf16.msra.mxu0 0
        %618 = vmatprep.subr.bf16.mxu0 0
        %619 = vmatpush1.bf16.msra.mxu0 0
        %620 = vmatprep.mubr.bf16.mxu0 0
        %621 = vmatmul.mubr.bf16.gmra.mrb[0].mxu0 %v508
        %v622 = vpop.f32.mrb[0].mxu0
        %v623 = vadd.f32 %v443, %v622
        %v624 = vpop.f32.mrb[0].mxu0
        %v625 = vpop.f32.mrb[0].mxu0
        %v626 = vadd.f32 %v443, %v625
        %v627 = vpop.f32.mrb[0].mxu0
        %628 = vmatprep.mubr.bf16.mxu0 0
        %629 = vmatmul.mubr.bf16.gmra.mrb[0].mxu0 %v509
        %v630 = vpop.f32.mrb[0].mxu0
        %v631 = vadd.f32 %v443, %v630
        %v632 = vpop.f32.mrb[0].mxu0
        %v633 = vpop.f32.mrb[0].mxu0
        %v634 = vadd.f32 %v443, %v633
        %v635 = vpop.f32.mrb[0].mxu0
        %636 = vmatprep.mubr.bf16.mxu0 0
        %637 = vmatmul.mubr.bf16.gmra.mrb[0].mxu0 %v510
        %v638 = vpop.f32.mrb[0].mxu0
        %v639 = vadd.f32 %v443, %v638
        %v640 = vpop.f32.mrb[0].mxu0
        %v641 = vpop.f32.mrb[0].mxu0
        %v642 = vadd.f32 %v443, %v641
        %v643 = vpop.f32.mrb[0].mxu0
        %644 = vmatprep.mubr.bf16.mxu0 0
        %645 = vmatmul.mubr.bf16.gmra.mrb[0].mxu0 %v511
        %v646 = vpop.f32.mrb[0].mxu0
        %v647 = vadd.f32 %v443, %v646
        %v648 = vpop.f32.mrb[0].mxu0
        %v649 = vpop.f32.mrb[0].mxu0
        %v650 = vadd.f32 %v443, %v649
        %v651 = vpop.f32.mrb[0].mxu0
        %652 = vmatprep.mubr.bf16.mxu0 0
        %653 = vmatmul.mubr.bf16.gmra.mrb[0].mxu0 %v512
        %v654 = vpop.f32.mrb[0].mxu0
        %v655 = vadd.f32 %v443, %v654
        %v656 = vpop.f32.mrb[0].mxu0
        %v657 = vpop.f32.mrb[0].mxu0
        %v658 = vadd.f32 %v443, %v657
        %v659 = vpop.f32.mrb[0].mxu0
        %660 = vmatprep.mubr.bf16.mxu0 0
        %661 = vmatmul.mubr.bf16.gmra.mrb[0].mxu0 %v513
        %v662 = vpop.f32.mrb[0].mxu0
        %v663 = vadd.f32 %v443, %v662
        %v664 = vpop.f32.mrb[0].mxu0
        %v665 = vpop.f32.mrb[0].mxu0
        %v666 = vadd.f32 %v443, %v665
        %v667 = vpop.f32.mrb[0].mxu0
        %668 = vmatprep.mubr.bf16.mxu0 0
        %669 = vmatmul.mubr.bf16.gmra.mrb[0].mxu0 %v514
        %v670 = vpop.f32.mrb[0].mxu0
        %v671 = vadd.f32 %v443, %v670
        %v672 = vpop.f32.mrb[0].mxu0
        %v673 = vpop.f32.mrb[0].mxu0
        %v674 = vadd.f32 %v443, %v673
        %v675 = vpop.f32.mrb[0].mxu0
        %676 = vmatprep.mubr.bf16.mxu0 0
        %677 = vmatmul.mubr.bf16.gmra.mrb[0].mxu0 %v515
        %v678 = vpop.f32.mrb[0].mxu0
        %v679 = vadd.f32 %v443, %v678
        %v680 = vpop.f32.mrb[0].mxu0
        %v681 = vpop.f32.mrb[0].mxu0
        %v682 = vadd.f32 %v443, %v681
        %v683 = vpop.f32.mrb[0].mxu0
        %684 = vmatprep.mubr.bf16.mxu0 0
        %685 = vmatmul.mubr.bf16.gmra.mrb[0].mxu0 %v516
        %v686 = vpop.f32.mrb[0].mxu0
        %v687 = vadd.f32 %v443, %v686
        %v688 = vpop.f32.mrb[0].mxu0
        %v689 = vpop.f32.mrb[0].mxu0
        %v690 = vadd.f32 %v443, %v689
        %v691 = vpop.f32.mrb[0].mxu0
        %692 = vmatprep.mubr.bf16.mxu0 0
        %693 = vmatmul.mubr.bf16.gmra.mrb[0].mxu0 %v517
        %v694 = vpop.f32.mrb[0].mxu0
        %v695 = vadd.f32 %v443, %v694
        %v696 = vpop.f32.mrb[0].mxu0
        %v697 = vpop.f32.mrb[0].mxu0
        %v698 = vadd.f32 %v443, %v697
        %v699 = vpop.f32.mrb[0].mxu0
        %700 = vmatprep.mubr.bf16.mxu0 0
        %701 = vmatmul.mubr.bf16.gmra.mrb[0].mxu0 %v518
        %v702 = vpop.f32.mrb[0].mxu0
        %v703 = vadd.f32 %v443, %v702
        %v704 = vpop.f32.mrb[0].mxu0
        %v705 = vpop.f32.mrb[0].mxu0
        %v706 = vadd.f32 %v443, %v705
        %v707 = vpop.f32.mrb[0].mxu0
        %708 = vmatprep.mubr.bf16.mxu0 0
        %709 = vmatmul.mubr.bf16.gmra.mrb[0].mxu0 %v519
        %v710 = vpop.f32.mrb[0].mxu0
        %v711 = vadd.f32 %v443, %v710
        %v712 = vpop.f32.mrb[0].mxu0
        %v713 = vpop.f32.mrb[0].mxu0
        %v714 = vadd.f32 %v443, %v713
        %v715 = vpop.f32.mrb[0].mxu0
        %716 = vmatprep.mubr.bf16.mxu0 0
        %717 = vmatmul.mubr.bf16.gmra.mrb[0].mxu0 %v520
        %v718 = vpop.f32.mrb[0].mxu0
        %v719 = vadd.f32 %v443, %v718
        %v720 = vpop.f32.mrb[0].mxu0
        %v721 = vpop.f32.mrb[0].mxu0
        %v722 = vadd.f32 %v443, %v721
        %v723 = vpop.f32.mrb[0].mxu0
        %724 = vmatprep.mubr.bf16.mxu0 0
        %725 = vmatmul.mubr.bf16.gmra.mrb[0].mxu0 %v521
        %v726 = vpop.f32.mrb[0].mxu0
        %v727 = vadd.f32 %v443, %v726
        %v728 = vpop.f32.mrb[0].mxu0
        %v729 = vpop.f32.mrb[0].mxu0
        %v730 = vadd.f32 %v443, %v729
        %v731 = vpop.f32.mrb[0].mxu0
        %732 = vmatprep.mubr.bf16.mxu0 0
        %733 = vmatmul.mubr.bf16.gmra.mrb[0].mxu0 %v522
        %v734 = vpop.f32.mrb[0].mxu0
        %v735 = vadd.f32 %v443, %v734
        %v736 = vpop.f32.mrb[0].mxu0
        %v737 = vpop.f32.mrb[0].mxu0
        %v738 = vadd.f32 %v443, %v737
        %v739 = vpop.f32.mrb[0].mxu0
        %740 = vmatprep.mubr.bf16.mxu0 0
        %741 = vmatmul.mubr.bf16.gmra.mrb[0].mxu0 %v523
        %v742 = vpop.f32.mrb[0].mxu0
        %v743 = vadd.f32 %v443, %v742
        %v744 = vpop.f32.mrb[0].mxu0
        %v745 = vpop.f32.mrb[0].mxu0
        %v746 = vadd.f32 %v443, %v745
        %v747 = vpop.f32.mrb[0].mxu0
        %748 = vdwg.mxu0
        %v749 = vadd.f32 %v623, 3.0
        %v750 = vadd.f32 %v626, 3.0
        %v751 = vadd.f32 %v631, 3.0
        %v752 = vadd.f32 %v634, 3.0
        %v753 = vadd.f32 %v639, 3.0
        %v754 = vadd.f32 %v642, 3.0
        %v755 = vadd.f32 %v647, 3.0
        %v756 = vadd.f32 %v650, 3.0
        %v757 = vadd.f32 %v655, 3.0
        %v758 = vadd.f32 %v658, 3.0
        %v759 = vadd.f32 %v663, 3.0
        %v760 = vadd.f32 %v666, 3.0
        %v761 = vadd.f32 %v671, 3.0
        %v762 = vadd.f32 %v674, 3.0
        %v763 = vadd.f32 %v679, 3.0
        %v764 = vadd.f32 %v682, 3.0
        %v765 = vadd.f32 %v687, 3.0
        %v766 = vadd.f32 %v690, 3.0
        %v767 = vadd.f32 %v695, 3.0
        %v768 = vadd.f32 %v698, 3.0
        %v769 = vadd.f32 %v703, 3.0
        %v770 = vadd.f32 %v706, 3.0
        %v771 = vadd.f32 %v711, 3.0
        %v772 = vadd.f32 %v714, 3.0
        %v773 = vadd.f32 %v719, 3.0
        %v774 = vadd.f32 %v722, 3.0
        %v775 = vadd.f32 %v727, 3.0
        %v776 = vadd.f32 %v730, 3.0
        %v777 = vadd.f32 %v735, 3.0
        %v778 = vadd.f32 %v738, 3.0
        %v779 = vadd.f32 %v743, 3.0
        %v780 = vadd.f32 %v746, 3.0
        %v781 = vmax.f32 %v749, 0.0
        %v782 = vmax.f32 %v750, 0.0
        %v783 = vmax.f32 %v751, 0.0
        %v784 = vmax.f32 %v752, 0.0
        %v785 = vmax.f32 %v753, 0.0
        %v786 = vmax.f32 %v754, 0.0
        %v787 = vmax.f32 %v755, 0.0
        %v788 = vmax.f32 %v756, 0.0
        %v789 = vmax.f32 %v757, 0.0
        %v790 = vmax.f32 %v758, 0.0
        %v791 = vmax.f32 %v759, 0.0
        %v792 = vmax.f32 %v760, 0.0
        %v793 = vmax.f32 %v761, 0.0
        %v794 = vmax.f32 %v762, 0.0
        %v795 = vmax.f32 %v763, 0.0
        %v796 = vmax.f32 %v764, 0.0
        %v797 = vmax.f32 %v765, 0.0
        %v798 = vmax.f32 %v766, 0.0
        %v799 = vmax.f32 %v767, 0.0
        %v800 = vmax.f32 %v768, 0.0
        %v801 = vmax.f32 %v769, 0.0
        %v802 = vmax.f32 %v770, 0.0
        %v803 = vmax.f32 %v771, 0.0
        %v804 = vmax.f32 %v772, 0.0
        %v805 = vmax.f32 %v773, 0.0
        %v806 = vmax.f32 %v774, 0.0
        %v807 = vmax.f32 %v775, 0.0
        %v808 = vmax.f32 %v776, 0.0
        %v809 = vmax.f32 %v777, 0.0
        %v810 = vmax.f32 %v778, 0.0
        %v811 = vmax.f32 %v779, 0.0
        %v812 = vmax.f32 %v780, 0.0
        %v813 = vmin.f32 %v781, 6.0
        %v814 = vmin.f32 %v782, 6.0
        %v815 = vmin.f32 %v783, 6.0
        %v816 = vmin.f32 %v784, 6.0
        %v817 = vmin.f32 %v785, 6.0
        %v818 = vmin.f32 %v786, 6.0
        %v819 = vmin.f32 %v787, 6.0
        %v820 = vmin.f32 %v788, 6.0
        %v821 = vmin.f32 %v789, 6.0
        %v822 = vmin.f32 %v790, 6.0
        %v823 = vmin.f32 %v791, 6.0
        %v824 = vmin.f32 %v792, 6.0
        %v825 = vmin.f32 %v793, 6.0
        %v826 = vmin.f32 %v794, 6.0
        %v827 = vmin.f32 %v795, 6.0
        %v828 = vmin.f32 %v796, 6.0
        %v829 = vmin.f32 %v797, 6.0
        %v830 = vmin.f32 %v798, 6.0
        %v831 = vmin.f32 %v799, 6.0
        %v832 = vmin.f32 %v800, 6.0
        %v833 = vmin.f32 %v801, 6.0
        %v834 = vmin.f32 %v802, 6.0
        %v835 = vmin.f32 %v803, 6.0
        %v836 = vmin.f32 %v804, 6.0
        %v837 = vmin.f32 %v805, 6.0
        %v838 = vmin.f32 %v806, 6.0
        %v839 = vmin.f32 %v807, 6.0
        %v840 = vmin.f32 %v808, 6.0
        %v841 = vmin.f32 %v809, 6.0
        %v842 = vmin.f32 %v810, 6.0
        %v843 = vmin.f32 %v811, 6.0
        %v844 = vmin.f32 %v812, 6.0
        %v845 = vmul.f32 %v623, %v813
        %v846 = vmul.f32 %v626, %v814
        %v847 = vmul.f32 %v631, %v815
        %v848 = vmul.f32 %v634, %v816
        %v849 = vmul.f32 %v639, %v817
        %v850 = vmul.f32 %v642, %v818
        %v851 = vmul.f32 %v647, %v819
        %v852 = vmul.f32 %v650, %v820
        %v853 = vmul.f32 %v655, %v821
        %v854 = vmul.f32 %v658, %v822
        %v855 = vmul.f32 %v663, %v823
        %v856 = vmul.f32 %v666, %v824
        %v857 = vmul.f32 %v671, %v825
        %v858 = vmul.f32 %v674, %v826
        %v859 = vmul.f32 %v679, %v827
        %v860 = vmul.f32 %v682, %v828
        %v861 = vmul.f32 %v687, %v829
        %v862 = vmul.f32 %v690, %v830
        %v863 = vmul.f32 %v695, %v831
        %v864 = vmul.f32 %v698, %v832
        %v865 = vmul.f32 %v703, %v833
        %v866 = vmul.f32 %v706, %v834
        %v867 = vmul.f32 %v711, %v835
        %v868 = vmul.f32 %v714, %v836
        %v869 = vmul.f32 %v719, %v837
        %v870 = vmul.f32 %v722, %v838
        %v871 = vmul.f32 %v727, %v839
        %v872 = vmul.f32 %v730, %v840
        %v873 = vmul.f32 %v735, %v841
        %v874 = vmul.f32 %v738, %v842
        %v875 = vmul.f32 %v743, %v843
        %v876 = vmul.f32 %v746, %v844
        %v877 = vmul.f32 %v845, 0.16666667
        %v878 = vmul.f32 %v846, 0.16666667
        %v879 = vmul.f32 %v847, 0.16666667
        %v880 = vmul.f32 %v848, 0.16666667
        %v881 = vmul.f32 %v849, 0.16666667
        %v882 = vmul.f32 %v850, 0.16666667
        %v883 = vmul.f32 %v851, 0.16666667
        %v884 = vmul.f32 %v852, 0.16666667
        %v885 = vmul.f32 %v853, 0.16666667
        %v886 = vmul.f32 %v854, 0.16666667
        %v887 = vmul.f32 %v855, 0.16666667
        %v888 = vmul.f32 %v856, 0.16666667
        %v889 = vmul.f32 %v857, 0.16666667
        %v890 = vmul.f32 %v858, 0.16666667
        %v891 = vmul.f32 %v859, 0.16666667
        %v892 = vmul.f32 %v860, 0.16666667
        %v893 = vmul.f32 %v861, 0.16666667
        %v894 = vmul.f32 %v862, 0.16666667
        %v895 = vmul.f32 %v863, 0.16666667
        %v896 = vmul.f32 %v864, 0.16666667
        %v897 = vmul.f32 %v865, 0.16666667
        %v898 = vmul.f32 %v866, 0.16666667
        %v899 = vmul.f32 %v867, 0.16666667
        %v900 = vmul.f32 %v868, 0.16666667
        %v901 = vmul.f32 %v869, 0.16666667
        %v902 = vmul.f32 %v870, 0.16666667
        %v903 = vmul.f32 %v871, 0.16666667
        %v904 = vmul.f32 %v872, 0.16666667
        %v905 = vmul.f32 %v873, 0.16666667
        %v906 = vmul.f32 %v874, 0.16666667
        %v907 = vmul.f32 %v875, 0.16666667
        %v908 = vmul.f32 %v876, 0.16666667
        %v909 = vpack.c.bf16 %v878, %v877
        %v910 = vpack.c.bf16 %v880, %v879
        %v911 = vpack.c.bf16 %v882, %v881
        %v912 = vpack.c.bf16 %v884, %v883
        %v913 = vpack.c.bf16 %v886, %v885
        %v914 = vpack.c.bf16 %v888, %v887
        %v915 = vpack.c.bf16 %v890, %v889
        %v916 = vpack.c.bf16 %v892, %v891
        %v917 = vpack.c.bf16 %v894, %v893
        %v918 = vpack.c.bf16 %v896, %v895
        %v919 = vpack.c.bf16 %v898, %v897
        %v920 = vpack.c.bf16 %v900, %v899
        %v921 = vpack.c.bf16 %v902, %v901
        %v922 = vpack.c.bf16 %v904, %v903
        %v923 = vpack.c.bf16 %v906, %v905
        %v924 = vpack.c.bf16 %v908, %v907
        %v925 = vld [vmem:[%s2] sm:$0xf]
        %v926 = vld [vmem:[%s2 + $0x4] sm:$0xf]
        %v927 = vld [vmem:[%s2 + $0x8] sm:$0xf]
        %v928 = vld [vmem:[%s2 + $0xc] sm:$0xf]
        %v929 = vld [vmem:[%s2 + $0x10] sm:$0xf]
        %v930 = vld [vmem:[%s2 + $0x14] sm:$0xf]
        %v931 = vld [vmem:[%s2 + $0x18] sm:$0xf]
        %v932 = vld [vmem:[%s2 + $0x1c] sm:$0xf]
        %v933 = vld [vmem:[%s2 + $0x20] sm:$0xf]
        %v934 = vld [vmem:[%s2 + $0x24] sm:$0xf]
        %v935 = vld [vmem:[%s2 + $0x28] sm:$0xf]
        %v936 = vld [vmem:[%s2 + $0x2c] sm:$0xf]
        %v937 = vld [vmem:[%s2 + $0x30] sm:$0xf]
        %v938 = vld [vmem:[%s2 + $0x34] sm:$0xf]
        %v939 = vld [vmem:[%s2 + $0x38] sm:$0xf]
        %v940 = vld [vmem:[%s2 + $0x3c] sm:$0xf]
        %v941 = vld [vmem:[%s10 + $0x1] sm:$0x1]
        %v942 = vlaneseq
        %v943 = vshrl.u32 %v942, 7
        %v944 = vsub.s32 0, %v943
        %v945 = vrot.slane %v941, %v944
        %v962 = vunpack.c.l.b16 %v925
        %v963 = vunpack.c.l.b16 %v926
        %v964 = vunpack.c.l.b16 %v927
        %v965 = vunpack.c.l.b16 %v928
        %v966 = vunpack.c.l.b16 %v929
        %v967 = vunpack.c.l.b16 %v930
        %v968 = vunpack.c.l.b16 %v931
        %v969 = vunpack.c.l.b16 %v932
        %v970 = vunpack.c.l.b16 %v933
        %v971 = vunpack.c.l.b16 %v934
        %v972 = vunpack.c.l.b16 %v935
        %v973 = vunpack.c.l.b16 %v936
        %v974 = vunpack.c.l.b16 %v937
        %v975 = vunpack.c.l.b16 %v938
        %v976 = vunpack.c.l.b16 %v939
        %v977 = vunpack.c.l.b16 %v940
        %v978 = vpack.c.b16 %v963, %v962
        %v979 = vpack.c.b16 %v965, %v964
        %v980 = vpack.c.b16 %v967, %v966
        %v981 = vpack.c.b16 %v969, %v968
        %v982 = vpack.c.b16 %v971, %v970
        %v983 = vpack.c.b16 %v973, %v972
        %v984 = vpack.c.b16 %v975, %v974
        %v985 = vpack.c.b16 %v977, %v976
        %994 = vmatprep.subr.bf16.mxu0 0
        %995 = vmatpush1.bf16.msra.mxu0 %v978
        %996 = vmatprep.subr.bf16.mxu0 0
        %997 = vmatpush1.bf16.msra.mxu0 %v979
        %998 = vmatprep.subr.bf16.mxu0 0
        %999 = vmatpush1.bf16.msra.mxu0 %v980
        %1000 = vmatprep.subr.bf16.mxu0 0
        %1001 = vmatpush1.bf16.msra.mxu0 %v981
        %1002 = vmatprep.subr.bf16.mxu0 0
        %1003 = vmatpush1.bf16.msra.mxu0 %v982
        %1004 = vmatprep.subr.bf16.mxu0 0
        %1005 = vmatpush1.bf16.msra.mxu0 %v983
        %1006 = vmatprep.subr.bf16.mxu0 0
        %1007 = vmatpush1.bf16.msra.mxu0 %v984
        %1008 = vmatprep.subr.bf16.mxu0 0
        %1009 = vmatpush1.bf16.msra.mxu0 %v985
        %1010 = vmatprep.subr.bf16.mxu0 0
        %1011 = vmatpush1.bf16.msra.mxu0 0
        %1012 = vmatprep.subr.bf16.mxu0 0
        %1013 = vmatpush1.bf16.msra.mxu0 0
        %1014 = vmatprep.subr.bf16.mxu0 0
        %1015 = vmatpush1.bf16.msra.mxu0 0
        %1016 = vmatprep.subr.bf16.mxu0 0
        %1017 = vmatpush1.bf16.msra.mxu0 0
        %1018 = vmatprep.subr.bf16.mxu0 0
        %1019 = vmatpush1.bf16.msra.mxu0 0
        %1020 = vmatprep.subr.bf16.mxu0 0
        %1021 = vmatpush1.bf16.msra.mxu0 0
        %1022 = vmatprep.subr.bf16.mxu0 0
        %1023 = vmatpush1.bf16.msra.mxu0 0
        %1024 = vmatprep.subr.bf16.mxu0 0
        %1025 = vmatpush1.bf16.msra.mxu0 0
        %1026 = vmatprep.mubr.bf16.mxu0 0
        %1027 = vmatmul.mubr.bf16.gmra.mrb[0].mxu0 %v909
        %v1028 = vpop.f32.mrb[0].mxu0
        %v1029 = vadd.f32 %v945, %v1028
        %v1030 = vpop.f32.mrb[0].mxu0
        %v1031 = vpop.f32.mrb[0].mxu0
        %v1032 = vadd.f32 %v945, %v1031
        %v1033 = vpop.f32.mrb[0].mxu0
        %1034 = vmatprep.mubr.bf16.mxu0 0
        %1035 = vmatmul.mubr.bf16.gmra.mrb[0].mxu0 %v910
        %v1036 = vpop.f32.mrb[0].mxu0
        %v1037 = vadd.f32 %v945, %v1036
        %v1038 = vpop.f32.mrb[0].mxu0
        %v1039 = vpop.f32.mrb[0].mxu0
        %v1040 = vadd.f32 %v945, %v1039
        %v1041 = vpop.f32.mrb[0].mxu0
        %1042 = vmatprep.mubr.bf16.mxu0 0
        %1043 = vmatmul.mubr.bf16.gmra.mrb[0].mxu0 %v911
        %v1044 = vpop.f32.mrb[0].mxu0
        %v1045 = vadd.f32 %v945, %v1044
        %v1046 = vpop.f32.mrb[0].mxu0
        %v1047 = vpop.f32.mrb[0].mxu0
        %v1048 = vadd.f32 %v945, %v1047
        %v1049 = vpop.f32.mrb[0].mxu0
        %1050 = vmatprep.mubr.bf16.mxu0 0
        %1051 = vmatmul.mubr.bf16.gmra.mrb[0].mxu0 %v912
        %v1052 = vpop.f32.mrb[0].mxu0
        %v1053 = vadd.f32 %v945, %v1052
        %v1054 = vpop.f32.mrb[0].mxu0
        %v1055 = vpop.f32.mrb[0].mxu0
        %v1056 = vadd.f32 %v945, %v1055
        %v1057 = vpop.f32.mrb[0].mxu0
        %1058 = vmatprep.mubr.bf16.mxu0 0
        %1059 = vmatmul.mubr.bf16.gmra.mrb[0].mxu0 %v913
        %v1060 = vpop.f32.mrb[0].mxu0
        %v1061 = vadd.f32 %v945, %v1060
        %v1062 = vpop.f32.mrb[0].mxu0
        %v1063 = vpop.f32.mrb[0].mxu0
        %v1064 = vadd.f32 %v945, %v1063
        %v1065 = vpop.f32.mrb[0].mxu0
        %1066 = vmatprep.mubr.bf16.mxu0 0
        %1067 = vmatmul.mubr.bf16.gmra.mrb[0].mxu0 %v914
        %v1068 = vpop.f32.mrb[0].mxu0
        %v1069 = vadd.f32 %v945, %v1068
        %v1070 = vpop.f32.mrb[0].mxu0
        %v1071 = vpop.f32.mrb[0].mxu0
        %v1072 = vadd.f32 %v945, %v1071
        %v1073 = vpop.f32.mrb[0].mxu0
        %1074 = vmatprep.mubr.bf16.mxu0 0
        %1075 = vmatmul.mubr.bf16.gmra.mrb[0].mxu0 %v915
        %v1076 = vpop.f32.mrb[0].mxu0
        %v1077 = vadd.f32 %v945, %v1076
        %v1078 = vpop.f32.mrb[0].mxu0
        %v1079 = vpop.f32.mrb[0].mxu0
        %v1080 = vadd.f32 %v945, %v1079
        %v1081 = vpop.f32.mrb[0].mxu0
        %1082 = vmatprep.mubr.bf16.mxu0 0
        %1083 = vmatmul.mubr.bf16.gmra.mrb[0].mxu0 %v916
        %v1084 = vpop.f32.mrb[0].mxu0
        %v1085 = vadd.f32 %v945, %v1084
        %v1086 = vpop.f32.mrb[0].mxu0
        %v1087 = vpop.f32.mrb[0].mxu0
        %v1088 = vadd.f32 %v945, %v1087
        %v1089 = vpop.f32.mrb[0].mxu0
        %1090 = vmatprep.mubr.bf16.mxu0 0
        %1091 = vmatmul.mubr.bf16.gmra.mrb[0].mxu0 %v917
        %v1092 = vpop.f32.mrb[0].mxu0
        %v1093 = vadd.f32 %v945, %v1092
        %v1094 = vpop.f32.mrb[0].mxu0
        %v1095 = vpop.f32.mrb[0].mxu0
        %v1096 = vadd.f32 %v945, %v1095
        %v1097 = vpop.f32.mrb[0].mxu0
        %1098 = vmatprep.mubr.bf16.mxu0 0
        %1099 = vmatmul.mubr.bf16.gmra.mrb[0].mxu0 %v918
        %v1100 = vpop.f32.mrb[0].mxu0
        %v1101 = vadd.f32 %v945, %v1100
        %v1102 = vpop.f32.mrb[0].mxu0
        %v1103 = vpop.f32.mrb[0].mxu0
        %v1104 = vadd.f32 %v945, %v1103
        %v1105 = vpop.f32.mrb[0].mxu0
        %1106 = vmatprep.mubr.bf16.mxu0 0
        %1107 = vmatmul.mubr.bf16.gmra.mrb[0].mxu0 %v919
        %v1108 = vpop.f32.mrb[0].mxu0
        %v1109 = vadd.f32 %v945, %v1108
        %v1110 = vpop.f32.mrb[0].mxu0
        %v1111 = vpop.f32.mrb[0].mxu0
        %v1112 = vadd.f32 %v945, %v1111
        %v1113 = vpop.f32.mrb[0].mxu0
        %1114 = vmatprep.mubr.bf16.mxu0 0
        %1115 = vmatmul.mubr.bf16.gmra.mrb[0].mxu0 %v920
        %v1116 = vpop.f32.mrb[0].mxu0
        %v1117 = vadd.f32 %v945, %v1116
        %v1118 = vpop.f32.mrb[0].mxu0
        %v1119 = vpop.f32.mrb[0].mxu0
        %v1120 = vadd.f32 %v945, %v1119
        %v1121 = vpop.f32.mrb[0].mxu0
        %1122 = vmatprep.mubr.bf16.mxu0 0
        %1123 = vmatmul.mubr.bf16.gmra.mrb[0].mxu0 %v921
        %v1124 = vpop.f32.mrb[0].mxu0
        %v1125 = vadd.f32 %v945, %v1124
        %v1126 = vpop.f32.mrb[0].mxu0
        %v1127 = vpop.f32.mrb[0].mxu0
        %v1128 = vadd.f32 %v945, %v1127
        %v1129 = vpop.f32.mrb[0].mxu0
        %1130 = vmatprep.mubr.bf16.mxu0 0
        %1131 = vmatmul.mubr.bf16.gmra.mrb[0].mxu0 %v922
        %v1132 = vpop.f32.mrb[0].mxu0
        %v1133 = vadd.f32 %v945, %v1132
        %v1134 = vpop.f32.mrb[0].mxu0
        %v1135 = vpop.f32.mrb[0].mxu0
        %v1136 = vadd.f32 %v945, %v1135
        %v1137 = vpop.f32.mrb[0].mxu0
        %1138 = vmatprep.mubr.bf16.mxu0 0
        %1139 = vmatmul.mubr.bf16.gmra.mrb[0].mxu0 %v923
        %v1140 = vpop.f32.mrb[0].mxu0
        %v1141 = vadd.f32 %v945, %v1140
        %v1142 = vpop.f32.mrb[0].mxu0
        %v1143 = vpop.f32.mrb[0].mxu0
        %v1144 = vadd.f32 %v945, %v1143
        %v1145 = vpop.f32.mrb[0].mxu0
        %1146 = vmatprep.mubr.bf16.mxu0 0
        %1147 = vmatmul.mubr.bf16.gmra.mrb[0].mxu0 %v924
        %v1148 = vpop.f32.mrb[0].mxu0
        %v1149 = vadd.f32 %v945, %v1148
        %v1150 = vpop.f32.mrb[0].mxu0
        %v1151 = vpop.f32.mrb[0].mxu0
        %v1152 = vadd.f32 %v945, %v1151
        %v1153 = vpop.f32.mrb[0].mxu0
        %1154 = vdwg.mxu0
        %v1155 = vmax.f32 %v1029, 0.0
        %v1156 = vmax.f32 %v1032, 0.0
        %v1157 = vmax.f32 %v1037, 0.0
        %v1158 = vmax.f32 %v1040, 0.0
        %v1159 = vmax.f32 %v1045, 0.0
        %v1160 = vmax.f32 %v1048, 0.0
        %v1161 = vmax.f32 %v1053, 0.0
        %v1162 = vmax.f32 %v1056, 0.0
        %v1163 = vmax.f32 %v1061, 0.0
        %v1164 = vmax.f32 %v1064, 0.0
        %v1165 = vmax.f32 %v1069, 0.0
        %v1166 = vmax.f32 %v1072, 0.0
        %v1167 = vmax.f32 %v1077, 0.0
        %v1168 = vmax.f32 %v1080, 0.0
        %v1169 = vmax.f32 %v1085, 0.0
        %v1170 = vmax.f32 %v1088, 0.0
        %v1171 = vmax.f32 %v1093, 0.0
        %v1172 = vmax.f32 %v1096, 0.0
        %v1173 = vmax.f32 %v1101, 0.0
        %v1174 = vmax.f32 %v1104, 0.0
        %v1175 = vmax.f32 %v1109, 0.0
        %v1176 = vmax.f32 %v1112, 0.0
        %v1177 = vmax.f32 %v1117, 0.0
        %v1178 = vmax.f32 %v1120, 0.0
        %v1179 = vmax.f32 %v1125, 0.0
        %v1180 = vmax.f32 %v1128, 0.0
        %v1181 = vmax.f32 %v1133, 0.0
        %v1182 = vmax.f32 %v1136, 0.0
        %v1183 = vmax.f32 %v1141, 0.0
        %v1184 = vmax.f32 %v1144, 0.0
        %v1185 = vmax.f32 %v1149, 0.0
        %v1186 = vmax.f32 %v1152, 0.0
        %v1187 = vmin.f32 %v1155, 6.0
        %v1188 = vmin.f32 %v1156, 6.0
        %v1189 = vmin.f32 %v1157, 6.0
        %v1190 = vmin.f32 %v1158, 6.0
        %v1191 = vmin.f32 %v1159, 6.0
        %v1192 = vmin.f32 %v1160, 6.0
        %v1193 = vmin.f32 %v1161, 6.0
        %v1194 = vmin.f32 %v1162, 6.0
        %v1195 = vmin.f32 %v1163, 6.0
        %v1196 = vmin.f32 %v1164, 6.0
        %v1197 = vmin.f32 %v1165, 6.0
        %v1198 = vmin.f32 %v1166, 6.0
        %v1199 = vmin.f32 %v1167, 6.0
        %v1200 = vmin.f32 %v1168, 6.0
        %v1201 = vmin.f32 %v1169, 6.0
        %v1202 = vmin.f32 %v1170, 6.0
        %v1203 = vmin.f32 %v1171, 6.0
        %v1204 = vmin.f32 %v1172, 6.0
        %v1205 = vmin.f32 %v1173, 6.0
        %v1206 = vmin.f32 %v1174, 6.0
        %v1207 = vmin.f32 %v1175, 6.0
        %v1208 = vmin.f32 %v1176, 6.0
        %v1209 = vmin.f32 %v1177, 6.0
        %v1210 = vmin.f32 %v1178, 6.0
        %v1211 = vmin.f32 %v1179, 6.0
        %v1212 = vmin.f32 %v1180, 6.0
        %v1213 = vmin.f32 %v1181, 6.0
        %v1214 = vmin.f32 %v1182, 6.0
        %v1215 = vmin.f32 %v1183, 6.0
        %v1216 = vmin.f32 %v1184, 6.0
        %v1217 = vmin.f32 %v1185, 6.0
        %v1218 = vmin.f32 %v1186, 6.0
        %1219 = vst [vmem:[#allocation2] sm:$0xff] %v1187
        %1220 = vst [vmem:[#allocation2 + $0x8] sm:$0xff] %v1188
        %1221 = vst [vmem:[#allocation2 + $0x10] sm:$0xff] %v1189
        %1222 = vst [vmem:[#allocation2 + $0x18] sm:$0xff] %v1190
        %1223 = vst [vmem:[#allocation2 + $0x20] sm:$0xff] %v1191
        %1224 = vst [vmem:[#allocation2 + $0x28] sm:$0xff] %v1192
        %1225 = vst [vmem:[#allocation2 + $0x30] sm:$0xff] %v1193
        %1226 = vst [vmem:[#allocation2 + $0x38] sm:$0xff] %v1194
        %1227 = vst [vmem:[#allocation2 + $0x40] sm:$0xff] %v1195
        %1228 = vst [vmem:[#allocation2 + $0x48] sm:$0xff] %v1196
        %1229 = vst [vmem:[#allocation2 + $0x50] sm:$0xff] %v1197
        %1230 = vst [vmem:[#allocation2 + $0x58] sm:$0xff] %v1198
        %1231 = vst [vmem:[#allocation2 + $0x60] sm:$0xff] %v1199
        %1232 = vst [vmem:[#allocation2 + $0x68] sm:$0xff] %v1200
        %1233 = vst [vmem:[#allocation2 + $0x70] sm:$0xff] %v1201
        %1234 = vst [vmem:[#allocation2 + $0x78] sm:$0xff] %v1202
        %1235 = vst [vmem:[#allocation2 + $0x80] sm:$0xff] %v1203
        %1236 = vst [vmem:[#allocation2 + $0x88] sm:$0xff] %v1204
        %1237 = vst [vmem:[#allocation2 + $0x90] sm:$0xff] %v1205
        %1238 = vst [vmem:[#allocation2 + $0x98] sm:$0xff] %v1206
        %1239 = vst [vmem:[#allocation2 + $0xa0] sm:$0xff] %v1207
        %1240 = vst [vmem:[#allocation2 + $0xa8] sm:$0xff] %v1208
        %1241 = vst [vmem:[#allocation2 + $0xb0] sm:$0xff] %v1209
        %1242 = vst [vmem:[#allocation2 + $0xb8] sm:$0xff] %v1210
        %1243 = vst [vmem:[#allocation2 + $0xc0] sm:$0xff] %v1211
        %1244 = vst [vmem:[#allocation2 + $0xc8] sm:$0xff] %v1212
        %1245 = vst [vmem:[#allocation2 + $0xd0] sm:$0xff] %v1213
        %1246 = vst [vmem:[#allocation2 + $0xd8] sm:$0xff] %v1214
        %1247 = vst [vmem:[#allocation2 + $0xe0] sm:$0xff] %v1215
        %1248 = vst [vmem:[#allocation2 + $0xe8] sm:$0xff] %v1216
        %1249 = vst [vmem:[#allocation2 + $0xf0] sm:$0xff] %v1217
        %1250 = vst [vmem:[#allocation2 + $0xf8] sm:$0xff] %v1218
        %v1251 = vld [vmem:[%s10 + $0x2] sm:$0x1]
        loop: start=0, step=1, limit=4
        $region65: #{supernet_forward.1} parent=63 // loop_pre_header
          _
        $region66: #{supernet_forward.1} parent=63 // loop_header
          %s1253 = sphi 0, %s1257
          %p1254 = scmp.ge.s32.totalorder %s1253, 4
        $region67: #{supernet_forward.1} parent=63 // loop_header_branch
          %1256 = sbr.rel (%p1254) target = $region71
        $region68: #{supernet_forward.1} parent=63 // loop_body
          %s1258 = smul.u32 %s1253, 64
          %s1259 = scalar_lea.vmem [#allocation2], %s1258
          %v1260 = vld [vmem:[%s1259] sm:$0xff]
          %v1261 = vld [vmem:[%s1259 + $0x8] sm:$0xff]
          %v1262 = vld [vmem:[%s1259 + $0x10] sm:$0xff]
          %v1263 = vld [vmem:[%s1259 + $0x18] sm:$0xff]
          %v1264 = vld [vmem:[%s1259 + $0x20] sm:$0xff]
          %v1265 = vld [vmem:[%s1259 + $0x28] sm:$0xff]
          %v1266 = vld [vmem:[%s1259 + $0x30] sm:$0xff]
          %v1267 = vld [vmem:[%s1259 + $0x38] sm:$0xff]
          %s1268 = scalar_lea.vmem %s3, 256
          %v1269 = vld [vmem:[%s1268] sm:$0xff]
          %v1270 = vld [vmem:[%s1268 + $0x8] sm:$0xff]
          %v1271 = vld [vmem:[%s1268 + $0x10] sm:$0xff]
          %v1272 = vld [vmem:[%s1268 + $0x18] sm:$0xff]
          %v1273 = vld [vmem:[%s1268 + $0x20] sm:$0xff]
          %v1274 = vld [vmem:[%s1268 + $0x28] sm:$0xff]
          %v1275 = vld [vmem:[%s1268 + $0x30] sm:$0xff]
          %v1276 = vld [vmem:[%s1268 + $0x38] sm:$0xff]
          %v1277 = vmul.f32 %v1260, %v1269
          %v1278 = vmul.f32 %v1261, %v1270
          %v1279 = vmul.f32 %v1262, %v1271
          %v1280 = vmul.f32 %v1263, %v1272
          %v1281 = vmul.f32 %v1264, %v1273
          %v1282 = vmul.f32 %v1265, %v1274
          %v1283 = vmul.f32 %v1266, %v1275
          %v1284 = vmul.f32 %v1267, %v1276
          %v1285 = vrot.slane %v1260, 7
          %v1286 = vrot.slane %v1261, 7
          %v1287 = vrot.slane %v1262, 7
          %v1288 = vrot.slane %v1263, 7
          %v1289 = vrot.slane %v1264, 7
          %v1290 = vrot.slane %v1265, 7
          %v1291 = vrot.slane %v1266, 7
          %v1292 = vrot.slane %v1267, 7
          %v1293 = vlaneseq
          %v1294 = vshrl.u32 %v1293, 7
          %vm1295 = vcmp.lt.s32.totalorder %v1294, 1
          %v1296 = vsel %vm1295, %v1291, %v1292
          %v1297 = vsel %vm1295, %v1290, %v1291
          %v1298 = vsel %vm1295, %v1289, %v1290
          %v1299 = vsel %vm1295, %v1288, %v1289
          %v1300 = vsel %vm1295, %v1287, %v1288
          %v1301 = vsel %vm1295, %v1286, %v1287
          %v1302 = vsel %vm1295, %v1285, %v1286
          %v1303 = vsel %vm1295, %v1292, %v1285
          %v1304 = vld [vmem:[%s3] sm:$0xff]
          %v1305 = vld [vmem:[%s3 + $0x8] sm:$0xff]
          %v1306 = vld [vmem:[%s3 + $0x10] sm:$0xff]
          %v1307 = vld [vmem:[%s3 + $0x18] sm:$0xff]
          %v1308 = vld [vmem:[%s3 + $0x20] sm:$0xff]
          %v1309 = vld [vmem:[%s3 + $0x28] sm:$0xff]
          %v1310 = vld [vmem:[%s3 + $0x30] sm:$0xff]
          %v1311 = vld [vmem:[%s3 + $0x38] sm:$0xff]
          %v1312 = vmul.f32 %v1296, %v1304
          %v1313 = vmul.f32 %v1303, %v1305
          %v1314 = vmul.f32 %v1302, %v1306
          %v1315 = vmul.f32 %v1301, %v1307
          %v1316 = vmul.f32 %v1300, %v1308
          %v1317 = vmul.f32 %v1299, %v1309
          %v1318 = vmul.f32 %v1298, %v1310
          %v1319 = vmul.f32 %v1297, %v1311
          %v1320 = vadd.f32 %v1277, %v1312
          %v1321 = vadd.f32 %v1278, %v1313
          %v1322 = vadd.f32 %v1279, %v1314
          %v1323 = vadd.f32 %v1280, %v1315
          %v1324 = vadd.f32 %v1281, %v1316
          %v1325 = vadd.f32 %v1282, %v1317
          %v1326 = vadd.f32 %v1283, %v1318
          %v1327 = vadd.f32 %v1284, %v1319
          %s1328 = scalar_lea.vmem %s3, 64
          %v1329 = vld [vmem:[%s1328] sm:$0xff]
          %v1330 = vld [vmem:[%s1328 + $0x8] sm:$0xff]
          %v1331 = vld [vmem:[%s1328 + $0x10] sm:$0xff]
          %v1332 = vld [vmem:[%s1328 + $0x18] sm:$0xff]
          %v1333 = vld [vmem:[%s1328 + $0x20] sm:$0xff]
          %v1334 = vld [vmem:[%s1328 + $0x28] sm:$0xff]
          %v1335 = vld [vmem:[%s1328 + $0x30] sm:$0xff]
          %v1336 = vld [vmem:[%s1328 + $0x38] sm:$0xff]
          %v1337 = vmul.f32 %v1267, %v1329
          %v1338 = vmul.f32 %v1260, %v1330
          %v1339 = vmul.f32 %v1261, %v1331
          %v1340 = vmul.f32 %v1262, %v1332
          %v1341 = vmul.f32 %v1263, %v1333
          %v1342 = vmul.f32 %v1264, %v1334
          %v1343 = vmul.f32 %v1265, %v1335
          %v1344 = vmul.f32 %v1266, %v1336
          %v1345 = vadd.f32 %v1320, %v1337
          %v1346 = vadd.f32 %v1321, %v1338
          %v1347 = vadd.f32 %v1322, %v1339
          %v1348 = vadd.f32 %v1323, %v1340
          %v1349 = vadd.f32 %v1324, %v1341
          %v1350 = vadd.f32 %v1325, %v1342
          %v1351 = vadd.f32 %v1326, %v1343
          %v1352 = vadd.f32 %v1327, %v1344
          %v1353 = vrot.slane %v1260, 1
          %v1354 = vrot.slane %v1261, 1
          %v1355 = vrot.slane %v1262, 1
          %v1356 = vrot.slane %v1263, 1
          %v1357 = vrot.slane %v1264, 1
          %v1358 = vrot.slane %v1265, 1
          %v1359 = vrot.slane %v1266, 1
          %v1360 = vrot.slane %v1267, 1
          %vm1361 = vcmp.lt.s32.totalorder %v1294, 7
          %v1362 = vsel %vm1361, %v1359, %v1360
          %v1363 = vsel %vm1361, %v1358, %v1359
          %v1364 = vsel %vm1361, %v1357, %v1358
          %v1365 = vsel %vm1361, %v1356, %v1357
          %v1366 = vsel %vm1361, %v1355, %v1356
          %v1367 = vsel %vm1361, %v1354, %v1355
          %v1368 = vsel %vm1361, %v1353, %v1354
          %v1369 = vsel %vm1361, %v1360, %v1353
          %s1370 = scalar_lea.vmem %s3, 128
          %v1371 = vld [vmem:[%s1370] sm:$0xff]
          %v1372 = vld [vmem:[%s1370 + $0x8] sm:$0xff]
          %v1373 = vld [vmem:[%s1370 + $0x10] sm:$0xff]
          %v1374 = vld [vmem:[%s1370 + $0x18] sm:$0xff]
          %v1375 = vld [vmem:[%s1370 + $0x20] sm:$0xff]
          %v1376 = vld [vmem:[%s1370 + $0x28] sm:$0xff]
          %v1377 = vld [vmem:[%s1370 + $0x30] sm:$0xff]
          %v1378 = vld [vmem:[%s1370 + $0x38] sm:$0xff]
          %v1379 = vmul.f32 %v1369, %v1371
          %v1380 = vmul.f32 %v1368, %v1372
          %v1381 = vmul.f32 %v1367, %v1373
          %v1382 = vmul.f32 %v1366, %v1374
          %v1383 = vmul.f32 %v1365, %v1375
          %v1384 = vmul.f32 %v1364, %v1376
          %v1385 = vmul.f32 %v1363, %v1377
          %v1386 = vmul.f32 %v1362, %v1378
          %v1387 = vadd.f32 %v1345, %v1379
          %v1388 = vadd.f32 %v1346, %v1380
          %v1389 = vadd.f32 %v1347, %v1381
          %v1390 = vadd.f32 %v1348, %v1382
          %v1391 = vadd.f32 %v1349, %v1383
          %v1392 = vadd.f32 %v1350, %v1384
          %v1393 = vadd.f32 %v1351, %v1385
          %v1394 = vadd.f32 %v1352, %v1386
          %s1395 = scalar_lea.vmem %s3, 192
          %v1396 = vld [vmem:[%s1395] sm:$0xff]
          %v1397 = vld [vmem:[%s1395 + $0x8] sm:$0xff]
          %v1398 = vld [vmem:[%s1395 + $0x10] sm:$0xff]
          %v1399 = vld [vmem:[%s1395 + $0x18] sm:$0xff]
          %v1400 = vld [vmem:[%s1395 + $0x20] sm:$0xff]
          %v1401 = vld [vmem:[%s1395 + $0x28] sm:$0xff]
          %v1402 = vld [vmem:[%s1395 + $0x30] sm:$0xff]
          %v1403 = vld [vmem:[%s1395 + $0x38] sm:$0xff]
          %v1404 = vmul.f32 %v1303, %v1396
          %v1405 = vmul.f32 %v1302, %v1397
          %v1406 = vmul.f32 %v1301, %v1398
          %v1407 = vmul.f32 %v1300, %v1399
          %v1408 = vmul.f32 %v1299, %v1400
          %v1409 = vmul.f32 %v1298, %v1401
          %v1410 = vmul.f32 %v1297, %v1402
          %v1411 = vmul.f32 %v1296, %v1403
          %v1412 = vadd.f32 %v1387, %v1404
          %v1413 = vadd.f32 %v1388, %v1405
          %v1414 = vadd.f32 %v1389, %v1406
          %v1415 = vadd.f32 %v1390, %v1407
          %v1416 = vadd.f32 %v1391, %v1408
          %v1417 = vadd.f32 %v1392, %v1409
          %v1418 = vadd.f32 %v1393, %v1410
          %v1419 = vadd.f32 %v1394, %v1411
          %s1420 = scalar_lea.vmem %s3, 320
          %v1421 = vld [vmem:[%s1420] sm:$0xff]
          %v1422 = vld [vmem:[%s1420 + $0x8] sm:$0xff]
          %v1423 = vld [vmem:[%s1420 + $0x10] sm:$0xff]
          %v1424 = vld [vmem:[%s1420 + $0x18] sm:$0xff]
          %v1425 = vld [vmem:[%s1420 + $0x20] sm:$0xff]
          %v1426 = vld [vmem:[%s1420 + $0x28] sm:$0xff]
          %v1427 = vld [vmem:[%s1420 + $0x30] sm:$0xff]
          %v1428 = vld [vmem:[%s1420 + $0x38] sm:$0xff]
          %v1429 = vmul.f32 %v1368, %v1421
          %v1430 = vmul.f32 %v1367, %v1422
          %v1431 = vmul.f32 %v1366, %v1423
          %v1432 = vmul.f32 %v1365, %v1424
          %v1433 = vmul.f32 %v1364, %v1425
          %v1434 = vmul.f32 %v1363, %v1426
          %v1435 = vmul.f32 %v1362, %v1427
          %v1436 = vmul.f32 %v1369, %v1428
          %v1437 = vadd.f32 %v1412, %v1429
          %v1438 = vadd.f32 %v1413, %v1430
          %v1439 = vadd.f32 %v1414, %v1431
          %v1440 = vadd.f32 %v1415, %v1432
          %v1441 = vadd.f32 %v1416, %v1433
          %v1442 = vadd.f32 %v1417, %v1434
          %v1443 = vadd.f32 %v1418, %v1435
          %v1444 = vadd.f32 %v1419, %v1436
          %s1445 = scalar_lea.vmem %s3, 384
          %v1446 = vld [vmem:[%s1445] sm:$0xff]
          %v1447 = vld [vmem:[%s1445 + $0x8] sm:$0xff]
          %v1448 = vld [vmem:[%s1445 + $0x10] sm:$0xff]
          %v1449 = vld [vmem:[%s1445 + $0x18] sm:$0xff]
          %v1450 = vld [vmem:[%s1445 + $0x20] sm:$0xff]
          %v1451 = vld [vmem:[%s1445 + $0x28] sm:$0xff]
          %v1452 = vld [vmem:[%s1445 + $0x30] sm:$0xff]
          %v1453 = vld [vmem:[%s1445 + $0x38] sm:$0xff]
          %v1454 = vmul.f32 %v1302, %v1446
          %v1455 = vmul.f32 %v1301, %v1447
          %v1456 = vmul.f32 %v1300, %v1448
          %v1457 = vmul.f32 %v1299, %v1449
          %v1458 = vmul.f32 %v1298, %v1450
          %v1459 = vmul.f32 %v1297, %v1451
          %v1460 = vmul.f32 %v1296, %v1452
          %v1461 = vmul.f32 %v1303, %v1453
          %v1462 = vadd.f32 %v1437, %v1454
          %v1463 = vadd.f32 %v1438, %v1455
          %v1464 = vadd.f32 %v1439, %v1456
          %v1465 = vadd.f32 %v1440, %v1457
          %v1466 = vadd.f32 %v1441, %v1458
          %v1467 = vadd.f32 %v1442, %v1459
          %v1468 = vadd.f32 %v1443, %v1460
          %v1469 = vadd.f32 %v1444, %v1461
          %s1470 = scalar_lea.vmem %s3, 448
          %v1471 = vld [vmem:[%s1470] sm:$0xff]
          %v1472 = vld [vmem:[%s1470 + $0x8] sm:$0xff]
          %v1473 = vld [vmem:[%s1470 + $0x10] sm:$0xff]
          %v1474 = vld [vmem:[%s1470 + $0x18] sm:$0xff]
          %v1475 = vld [vmem:[%s1470 + $0x20] sm:$0xff]
          %v1476 = vld [vmem:[%s1470 + $0x28] sm:$0xff]
          %v1477 = vld [vmem:[%s1470 + $0x30] sm:$0xff]
          %v1478 = vld [vmem:[%s1470 + $0x38] sm:$0xff]
          %v1479 = vmul.f32 %v1261, %v1471
          %v1480 = vmul.f32 %v1262, %v1472
          %v1481 = vmul.f32 %v1263, %v1473
          %v1482 = vmul.f32 %v1264, %v1474
          %v1483 = vmul.f32 %v1265, %v1475
          %v1484 = vmul.f32 %v1266, %v1476
          %v1485 = vmul.f32 %v1267, %v1477
          %v1486 = vmul.f32 %v1260, %v1478
          %v1487 = vadd.f32 %v1462, %v1479
          %v1488 = vadd.f32 %v1463, %v1480
          %v1489 = vadd.f32 %v1464, %v1481
          %v1490 = vadd.f32 %v1465, %v1482
          %v1491 = vadd.f32 %v1466, %v1483
          %v1492 = vadd.f32 %v1467, %v1484
          %v1493 = vadd.f32 %v1468, %v1485
          %v1494 = vadd.f32 %v1469, %v1486
          %s1495 = scalar_lea.vmem %s3, 512
          %v1496 = vld [vmem:[%s1495] sm:$0xff]
          %v1497 = vld [vmem:[%s1495 + $0x8] sm:$0xff]
          %v1498 = vld [vmem:[%s1495 + $0x10] sm:$0xff]
          %v1499 = vld [vmem:[%s1495 + $0x18] sm:$0xff]
          %v1500 = vld [vmem:[%s1495 + $0x20] sm:$0xff]
          %v1501 = vld [vmem:[%s1495 + $0x28] sm:$0xff]
          %v1502 = vld [vmem:[%s1495 + $0x30] sm:$0xff]
          %v1503 = vld [vmem:[%s1495 + $0x38] sm:$0xff]
          %v1504 = vmul.f32 %v1367, %v1496
          %v1505 = vmul.f32 %v1366, %v1497
          %v1506 = vmul.f32 %v1365, %v1498
          %v1507 = vmul.f32 %v1364, %v1499
          %v1508 = vmul.f32 %v1363, %v1500
          %v1509 = vmul.f32 %v1362, %v1501
          %v1510 = vmul.f32 %v1369, %v1502
          %v1511 = vmul.f32 %v1368, %v1503
          %v1512 = vadd.f32 %v1487, %v1504
          %v1513 = vadd.f32 %v1488, %v1505
          %v1514 = vadd.f32 %v1489, %v1506
          %v1515 = vadd.f32 %v1490, %v1507
          %v1516 = vadd.f32 %v1491, %v1508
          %v1517 = vadd.f32 %v1492, %v1509
          %v1518 = vadd.f32 %v1493, %v1510
          %v1519 = vadd.f32 %v1494, %v1511
          %v1520 = vlaneseq
          %v1521 = vshrl.u32 %v1520, 7
          %v1522 = vsub.s32 0, %v1521
          %v1523 = vrot.slane %v1251, %v1522
          %v1524 = vadd.f32 %v1512, %v1523
          %v1525 = vadd.f32 %v1513, %v1523
          %v1526 = vadd.f32 %v1514, %v1523
          %v1527 = vadd.f32 %v1515, %v1523
          %v1528 = vadd.f32 %v1516, %v1523
          %v1529 = vadd.f32 %v1517, %v1523
          %v1530 = vadd.f32 %v1518, %v1523
          %v1531 = vadd.f32 %v1519, %v1523
          %v1532 = vmax.f32 %v1524, 0.0
          %v1533 = vmax.f32 %v1525, 0.0
          %v1534 = vmax.f32 %v1526, 0.0
          %v1535 = vmax.f32 %v1527, 0.0
          %v1536 = vmax.f32 %v1528, 0.0
          %v1537 = vmax.f32 %v1529, 0.0
          %v1538 = vmax.f32 %v1530, 0.0
          %v1539 = vmax.f32 %v1531, 0.0
          %v1540 = vmin.f32 %v1532, 6.0
          %v1541 = vmin.f32 %v1533, 6.0
          %v1542 = vmin.f32 %v1534, 6.0
          %v1543 = vmin.f32 %v1535, 6.0
          %v1544 = vmin.f32 %v1536, 6.0
          %v1545 = vmin.f32 %v1537, 6.0
          %v1546 = vmin.f32 %v1538, 6.0
          %v1547 = vmin.f32 %v1539, 6.0
          %1548 = vst [vmem:[%s1259] sm:$0xff] %v1540
          %1549 = vst [vmem:[%s1259 + $0x8] sm:$0xff] %v1541
          %1550 = vst [vmem:[%s1259 + $0x10] sm:$0xff] %v1542
          %1551 = vst [vmem:[%s1259 + $0x18] sm:$0xff] %v1543
          %1552 = vst [vmem:[%s1259 + $0x20] sm:$0xff] %v1544
          %1553 = vst [vmem:[%s1259 + $0x28] sm:$0xff] %v1545
          %1554 = vst [vmem:[%s1259 + $0x30] sm:$0xff] %v1546
          %1555 = vst [vmem:[%s1259 + $0x38] sm:$0xff] %v1547
        $region69: #{supernet_forward.1} parent=63 // loop_footer
          %s1257 = sadd.s32 1, %s1253
        $region70: #{supernet_forward.1} parent=63 // loop_footer_branch
          %1252 = sbr.rel target = $region66
        $region71: #{supernet_forward.1} parent=63 // loop_exit
          _
        %v1556 = vld [vmem:[#allocation2] sm:$0xff]
        %v1557 = vld [vmem:[#allocation2 + $0x8] sm:$0xff]
        %v1558 = vld [vmem:[#allocation2 + $0x10] sm:$0xff]
        %v1559 = vld [vmem:[#allocation2 + $0x18] sm:$0xff]
        %v1560 = vld [vmem:[#allocation2 + $0x20] sm:$0xff]
        %v1561 = vld [vmem:[#allocation2 + $0x28] sm:$0xff]
        %v1562 = vld [vmem:[#allocation2 + $0x30] sm:$0xff]
        %v1563 = vld [vmem:[#allocation2 + $0x38] sm:$0xff]
        %v1564 = vld [vmem:[#allocation2 + $0x40] sm:$0xff]
        %v1565 = vld [vmem:[#allocation2 + $0x48] sm:$0xff]
        %v1566 = vld [vmem:[#allocation2 + $0x50] sm:$0xff]
        %v1567 = vld [vmem:[#allocation2 + $0x58] sm:$0xff]
        %v1568 = vld [vmem:[#allocation2 + $0x60] sm:$0xff]
        %v1569 = vld [vmem:[#allocation2 + $0x68] sm:$0xff]
        %v1570 = vld [vmem:[#allocation2 + $0x70] sm:$0xff]
        %v1571 = vld [vmem:[#allocation2 + $0x78] sm:$0xff]
        %v1572 = vld [vmem:[#allocation2 + $0x80] sm:$0xff]
        %v1573 = vld [vmem:[#allocation2 + $0x88] sm:$0xff]
        %v1574 = vld [vmem:[#allocation2 + $0x90] sm:$0xff]
        %v1575 = vld [vmem:[#allocation2 + $0x98] sm:$0xff]
        %v1576 = vld [vmem:[#allocation2 + $0xa0] sm:$0xff]
        %v1577 = vld [vmem:[#allocation2 + $0xa8] sm:$0xff]
        %v1578 = vld [vmem:[#allocation2 + $0xb0] sm:$0xff]
        %v1579 = vld [vmem:[#allocation2 + $0xb8] sm:$0xff]
        %v1580 = vld [vmem:[#allocation2 + $0xc0] sm:$0xff]
        %v1581 = vld [vmem:[#allocation2 + $0xc8] sm:$0xff]
        %v1582 = vld [vmem:[#allocation2 + $0xd0] sm:$0xff]
        %v1583 = vld [vmem:[#allocation2 + $0xd8] sm:$0xff]
        %v1584 = vld [vmem:[#allocation2 + $0xe0] sm:$0xff]
        %v1585 = vld [vmem:[#allocation2 + $0xe8] sm:$0xff]
        %v1586 = vld [vmem:[#allocation2 + $0xf0] sm:$0xff]
        %v1587 = vld [vmem:[#allocation2 + $0xf8] sm:$0xff]
        %v1588 = vpack.c.bf16 %v1557, %v1556
        %v1589 = vpack.c.bf16 %v1559, %v1558
        %v1590 = vpack.c.bf16 %v1561, %v1560
        %v1591 = vpack.c.bf16 %v1563, %v1562
        %v1592 = vpack.c.bf16 %v1565, %v1564
        %v1593 = vpack.c.bf16 %v1567, %v1566
        %v1594 = vpack.c.bf16 %v1569, %v1568
        %v1595 = vpack.c.bf16 %v1571, %v1570
        %v1596 = vpack.c.bf16 %v1573, %v1572
        %v1597 = vpack.c.bf16 %v1575, %v1574
        %v1598 = vpack.c.bf16 %v1577, %v1576
        %v1599 = vpack.c.bf16 %v1579, %v1578
        %v1600 = vpack.c.bf16 %v1581, %v1580
        %v1601 = vpack.c.bf16 %v1583, %v1582
        %v1602 = vpack.c.bf16 %v1585, %v1584
        %v1603 = vpack.c.bf16 %v1587, %v1586
        %v1604 = vld [vmem:[%s4] sm:$0xf]
        %v1605 = vld [vmem:[%s4 + $0x4] sm:$0xf]
        %v1606 = vld [vmem:[%s4 + $0x8] sm:$0xf]
        %v1607 = vld [vmem:[%s4 + $0xc] sm:$0xf]
        %v1608 = vld [vmem:[%s4 + $0x10] sm:$0xf]
        %v1609 = vld [vmem:[%s4 + $0x14] sm:$0xf]
        %v1610 = vld [vmem:[%s4 + $0x18] sm:$0xf]
        %v1611 = vld [vmem:[%s4 + $0x1c] sm:$0xf]
        %v1612 = vld [vmem:[%s4 + $0x20] sm:$0xf]
        %v1613 = vld [vmem:[%s4 + $0x24] sm:$0xf]
        %v1614 = vld [vmem:[%s4 + $0x28] sm:$0xf]
        %v1615 = vld [vmem:[%s4 + $0x2c] sm:$0xf]
        %v1616 = vld [vmem:[%s4 + $0x30] sm:$0xf]
        %v1617 = vld [vmem:[%s4 + $0x34] sm:$0xf]
        %v1618 = vld [vmem:[%s4 + $0x38] sm:$0xf]
        %v1619 = vld [vmem:[%s4 + $0x3c] sm:$0xf]
        %v1620 = vld [vmem:[%s10 + $0x3] sm:$0x1]
        %v1621 = vlaneseq
        %v1622 = vshrl.u32 %v1621, 7
        %v1623 = vsub.s32 0, %v1622
        %v1624 = vrot.slane %v1620, %v1623
        %v1641 = vunpack.c.l.b16 %v1604
        %v1642 = vunpack.c.l.b16 %v1605
        %v1643 = vunpack.c.l.b16 %v1606
        %v1644 = vunpack.c.l.b16 %v1607
        %v1645 = vunpack.c.l.b16 %v1608
        %v1646 = vunpack.c.l.b16 %v1609
        %v1647 = vunpack.c.l.b16 %v1610
        %v1648 = vunpack.c.l.b16 %v1611
        %v1649 = vunpack.c.l.b16 %v1612
        %v1650 = vunpack.c.l.b16 %v1613
        %v1651 = vunpack.c.l.b16 %v1614
        %v1652 = vunpack.c.l.b16 %v1615
        %v1653 = vunpack.c.l.b16 %v1616
        %v1654 = vunpack.c.l.b16 %v1617
        %v1655 = vunpack.c.l.b16 %v1618
        %v1656 = vunpack.c.l.b16 %v1619
        %v1657 = vpack.c.b16 %v1642, %v1641
        %v1658 = vpack.c.b16 %v1644, %v1643
        %v1659 = vpack.c.b16 %v1646, %v1645
        %v1660 = vpack.c.b16 %v1648, %v1647
        %v1661 = vpack.c.b16 %v1650, %v1649
        %v1662 = vpack.c.b16 %v1652, %v1651
        %v1663 = vpack.c.b16 %v1654, %v1653
        %v1664 = vpack.c.b16 %v1656, %v1655
        %1673 = vmatprep.subr.bf16.mxu0 0
        %1674 = vmatpush1.bf16.msra.mxu0 %v1657
        %1675 = vmatprep.subr.bf16.mxu0 0
        %1676 = vmatpush1.bf16.msra.mxu0 %v1658
        %1677 = vmatprep.subr.bf16.mxu0 0
        %1678 = vmatpush1.bf16.msra.mxu0 %v1659
        %1679 = vmatprep.subr.bf16.mxu0 0
        %1680 = vmatpush1.bf16.msra.mxu0 %v1660
        %1681 = vmatprep.subr.bf16.mxu0 0
        %1682 = vmatpush1.bf16.msra.mxu0 %v1661
        %1683 = vmatprep.subr.bf16.mxu0 0
        %1684 = vmatpush1.bf16.msra.mxu0 %v1662
        %1685 = vmatprep.subr.bf16.mxu0 0
        %1686 = vmatpush1.bf16.msra.mxu0 %v1663
        %1687 = vmatprep.subr.bf16.mxu0 0
        %1688 = vmatpush1.bf16.msra.mxu0 %v1664
        %1689 = vmatprep.subr.bf16.mxu0 0
        %1690 = vmatpush1.bf16.msra.mxu0 0
        %1691 = vmatprep.subr.bf16.mxu0 0
        %1692 = vmatpush1.bf16.msra.mxu0 0
        %1693 = vmatprep.subr.bf16.mxu0 0
        %1694 = vmatpush1.bf16.msra.mxu0 0
        %1695 = vmatprep.subr.bf16.mxu0 0
        %1696 = vmatpush1.bf16.msra.mxu0 0
        %1697 = vmatprep.subr.bf16.mxu0 0
        %1698 = vmatpush1.bf16.msra.mxu0 0
        %1699 = vmatprep.subr.bf16.mxu0 0
        %1700 = vmatpush1.bf16.msra.mxu0 0
        %1701 = vmatprep.subr.bf16.mxu0 0
        %1702 = vmatpush1.bf16.msra.mxu0 0
        %1703 = vmatprep.subr.bf16.mxu0 0
        %1704 = vmatpush1.bf16.msra.mxu0 0
        %1705 = vmatprep.mubr.bf16.mxu0 0
        %1706 = vmatmul.mubr.bf16.gmra.mrb[0].mxu0 %v1588
        %v1707 = vpop.f32.mrb[0].mxu0
        %v1708 = vadd.f32 %v1624, %v1707
        %v1709 = vpop.f32.mrb[0].mxu0
        %v1710 = vpop.f32.mrb[0].mxu0
        %v1711 = vadd.f32 %v1624, %v1710
        %v1712 = vpop.f32.mrb[0].mxu0
        %1713 = vmatprep.mubr.bf16.mxu0 0
        %1714 = vmatmul.mubr.bf16.gmra.mrb[0].mxu0 %v1589
        %v1715 = vpop.f32.mrb[0].mxu0
        %v1716 = vadd.f32 %v1624, %v1715
        %v1717 = vpop.f32.mrb[0].mxu0
        %v1718 = vpop.f32.mrb[0].mxu0
        %v1719 = vadd.f32 %v1624, %v1718
        %v1720 = vpop.f32.mrb[0].mxu0
        %1721 = vmatprep.mubr.bf16.mxu0 0
        %1722 = vmatmul.mubr.bf16.gmra.mrb[0].mxu0 %v1590
        %v1723 = vpop.f32.mrb[0].mxu0
        %v1724 = vadd.f32 %v1624, %v1723
        %v1725 = vpop.f32.mrb[0].mxu0
        %v1726 = vpop.f32.mrb[0].mxu0
        %v1727 = vadd.f32 %v1624, %v1726
        %v1728 = vpop.f32.mrb[0].mxu0
        %1729 = vmatprep.mubr.bf16.mxu0 0
        %1730 = vmatmul.mubr.bf16.gmra.mrb[0].mxu0 %v1591
        %v1731 = vpop.f32.mrb[0].mxu0
        %v1732 = vadd.f32 %v1624, %v1731
        %v1733 = vpop.f32.mrb[0].mxu0
        %v1734 = vpop.f32.mrb[0].mxu0
        %v1735 = vadd.f32 %v1624, %v1734
        %v1736 = vpop.f32.mrb[0].mxu0
        %1737 = vmatprep.mubr.bf16.mxu0 0
        %1738 = vmatmul.mubr.bf16.gmra.mrb[0].mxu0 %v1592
        %v1739 = vpop.f32.mrb[0].mxu0
        %v1740 = vadd.f32 %v1624, %v1739
        %v1741 = vpop.f32.mrb[0].mxu0
        %v1742 = vpop.f32.mrb[0].mxu0
        %v1743 = vadd.f32 %v1624, %v1742
        %v1744 = vpop.f32.mrb[0].mxu0
        %1745 = vmatprep.mubr.bf16.mxu0 0
        %1746 = vmatmul.mubr.bf16.gmra.mrb[0].mxu0 %v1593
        %v1747 = vpop.f32.mrb[0].mxu0
        %v1748 = vadd.f32 %v1624, %v1747
        %v1749 = vpop.f32.mrb[0].mxu0
        %v1750 = vpop.f32.mrb[0].mxu0
        %v1751 = vadd.f32 %v1624, %v1750
        %v1752 = vpop.f32.mrb[0].mxu0
        %1753 = vmatprep.mubr.bf16.mxu0 0
        %1754 = vmatmul.mubr.bf16.gmra.mrb[0].mxu0 %v1594
        %v1755 = vpop.f32.mrb[0].mxu0
        %v1756 = vadd.f32 %v1624, %v1755
        %v1757 = vpop.f32.mrb[0].mxu0
        %v1758 = vpop.f32.mrb[0].mxu0
        %v1759 = vadd.f32 %v1624, %v1758
        %v1760 = vpop.f32.mrb[0].mxu0
        %1761 = vmatprep.mubr.bf16.mxu0 0
        %1762 = vmatmul.mubr.bf16.gmra.mrb[0].mxu0 %v1595
        %v1763 = vpop.f32.mrb[0].mxu0
        %v1764 = vadd.f32 %v1624, %v1763
        %v1765 = vpop.f32.mrb[0].mxu0
        %v1766 = vpop.f32.mrb[0].mxu0
        %v1767 = vadd.f32 %v1624, %v1766
        %v1768 = vpop.f32.mrb[0].mxu0
        %1769 = vmatprep.mubr.bf16.mxu0 0
        %1770 = vmatmul.mubr.bf16.gmra.mrb[0].mxu0 %v1596
        %v1771 = vpop.f32.mrb[0].mxu0
        %v1772 = vadd.f32 %v1624, %v1771
        %v1773 = vpop.f32.mrb[0].mxu0
        %v1774 = vpop.f32.mrb[0].mxu0
        %v1775 = vadd.f32 %v1624, %v1774
        %v1776 = vpop.f32.mrb[0].mxu0
        %1777 = vmatprep.mubr.bf16.mxu0 0
        %1778 = vmatmul.mubr.bf16.gmra.mrb[0].mxu0 %v1597
        %v1779 = vpop.f32.mrb[0].mxu0
        %v1780 = vadd.f32 %v1624, %v1779
        %v1781 = vpop.f32.mrb[0].mxu0
        %v1782 = vpop.f32.mrb[0].mxu0
        %v1783 = vadd.f32 %v1624, %v1782
        %v1784 = vpop.f32.mrb[0].mxu0
        %1785 = vmatprep.mubr.bf16.mxu0 0
        %1786 = vmatmul.mubr.bf16.gmra.mrb[0].mxu0 %v1598
        %v1787 = vpop.f32.mrb[0].mxu0
        %v1788 = vadd.f32 %v1624, %v1787
        %v1789 = vpop.f32.mrb[0].mxu0
        %v1790 = vpop.f32.mrb[0].mxu0
        %v1791 = vadd.f32 %v1624, %v1790
        %v1792 = vpop.f32.mrb[0].mxu0
        %1793 = vmatprep.mubr.bf16.mxu0 0
        %1794 = vmatmul.mubr.bf16.gmra.mrb[0].mxu0 %v1599
        %v1795 = vpop.f32.mrb[0].mxu0
        %v1796 = vadd.f32 %v1624, %v1795
        %v1797 = vpop.f32.mrb[0].mxu0
        %v1798 = vpop.f32.mrb[0].mxu0
        %v1799 = vadd.f32 %v1624, %v1798
        %v1800 = vpop.f32.mrb[0].mxu0
        %1801 = vmatprep.mubr.bf16.mxu0 0
        %1802 = vmatmul.mubr.bf16.gmra.mrb[0].mxu0 %v1600
        %v1803 = vpop.f32.mrb[0].mxu0
        %v1804 = vadd.f32 %v1624, %v1803
        %v1805 = vpop.f32.mrb[0].mxu0
        %v1806 = vpop.f32.mrb[0].mxu0
        %v1807 = vadd.f32 %v1624, %v1806
        %v1808 = vpop.f32.mrb[0].mxu0
        %1809 = vmatprep.mubr.bf16.mxu0 0
        %1810 = vmatmul.mubr.bf16.gmra.mrb[0].mxu0 %v1601
        %v1811 = vpop.f32.mrb[0].mxu0
        %v1812 = vadd.f32 %v1624, %v1811
        %v1813 = vpop.f32.mrb[0].mxu0
        %v1814 = vpop.f32.mrb[0].mxu0
        %v1815 = vadd.f32 %v1624, %v1814
        %v1816 = vpop.f32.mrb[0].mxu0
        %1817 = vmatprep.mubr.bf16.mxu0 0
        %1818 = vmatmul.mubr.bf16.gmra.mrb[0].mxu0 %v1602
        %v1819 = vpop.f32.mrb[0].mxu0
        %v1820 = vadd.f32 %v1624, %v1819
        %v1821 = vpop.f32.mrb[0].mxu0
        %v1822 = vpop.f32.mrb[0].mxu0
        %v1823 = vadd.f32 %v1624, %v1822
        %v1824 = vpop.f32.mrb[0].mxu0
        %1825 = vmatprep.mubr.bf16.mxu0 0
        %1826 = vmatmul.mubr.bf16.gmra.mrb[0].mxu0 %v1603
        %v1827 = vpop.f32.mrb[0].mxu0
        %v1828 = vadd.f32 %v1624, %v1827
        %v1829 = vpop.f32.mrb[0].mxu0
        %v1830 = vpop.f32.mrb[0].mxu0
        %v1831 = vadd.f32 %v1624, %v1830
        %v1832 = vpop.f32.mrb[0].mxu0
        %1833 = vdwg.mxu0
        %1834 = vst [vmem:[#allocation3] sm:$0xff] %v1708
        %1835 = vst [vmem:[#allocation3 + $0x8] sm:$0xff] %v1711
        %1836 = vst [vmem:[#allocation3 + $0x10] sm:$0xff] %v1716
        %1837 = vst [vmem:[#allocation3 + $0x18] sm:$0xff] %v1719
        %1838 = vst [vmem:[#allocation3 + $0x20] sm:$0xff] %v1724
        %1839 = vst [vmem:[#allocation3 + $0x28] sm:$0xff] %v1727
        %1840 = vst [vmem:[#allocation3 + $0x30] sm:$0xff] %v1732
        %1841 = vst [vmem:[#allocation3 + $0x38] sm:$0xff] %v1735
        %1842 = vst [vmem:[#allocation3 + $0x40] sm:$0xff] %v1740
        %1843 = vst [vmem:[#allocation3 + $0x48] sm:$0xff] %v1743
        %1844 = vst [vmem:[#allocation3 + $0x50] sm:$0xff] %v1748
        %1845 = vst [vmem:[#allocation3 + $0x58] sm:$0xff] %v1751
        %1846 = vst [vmem:[#allocation3 + $0x60] sm:$0xff] %v1756
        %1847 = vst [vmem:[#allocation3 + $0x68] sm:$0xff] %v1759
        %1848 = vst [vmem:[#allocation3 + $0x70] sm:$0xff] %v1764
        %1849 = vst [vmem:[#allocation3 + $0x78] sm:$0xff] %v1767
        %1850 = vst [vmem:[#allocation3 + $0x80] sm:$0xff] %v1772
        %1851 = vst [vmem:[#allocation3 + $0x88] sm:$0xff] %v1775
        %1852 = vst [vmem:[#allocation3 + $0x90] sm:$0xff] %v1780
        %1853 = vst [vmem:[#allocation3 + $0x98] sm:$0xff] %v1783
        %1854 = vst [vmem:[#allocation3 + $0xa0] sm:$0xff] %v1788
        %1855 = vst [vmem:[#allocation3 + $0xa8] sm:$0xff] %v1791
        %1856 = vst [vmem:[#allocation3 + $0xb0] sm:$0xff] %v1796
        %1857 = vst [vmem:[#allocation3 + $0xb8] sm:$0xff] %v1799
        %1858 = vst [vmem:[#allocation3 + $0xc0] sm:$0xff] %v1804
        %1859 = vst [vmem:[#allocation3 + $0xc8] sm:$0xff] %v1807
        %1860 = vst [vmem:[#allocation3 + $0xd0] sm:$0xff] %v1812
        %1861 = vst [vmem:[#allocation3 + $0xd8] sm:$0xff] %v1815
        %1862 = vst [vmem:[#allocation3 + $0xe0] sm:$0xff] %v1820
        %1863 = vst [vmem:[#allocation3 + $0xe8] sm:$0xff] %v1823
        %1864 = vst [vmem:[#allocation3 + $0xf0] sm:$0xff] %v1828
        %1865 = vst [vmem:[#allocation3 + $0xf8] sm:$0xff] %v1831
        %v1866 = vpack.c.bf16 %v1711, %v1708
        %v1867 = vpack.c.bf16 %v1719, %v1716
        %v1868 = vpack.c.bf16 %v1727, %v1724
        %v1869 = vpack.c.bf16 %v1735, %v1732
        %v1870 = vpack.c.bf16 %v1743, %v1740
        %v1871 = vpack.c.bf16 %v1751, %v1748
        %v1872 = vpack.c.bf16 %v1759, %v1756
        %v1873 = vpack.c.bf16 %v1767, %v1764
        %v1874 = vpack.c.bf16 %v1775, %v1772
        %v1875 = vpack.c.bf16 %v1783, %v1780
        %v1876 = vpack.c.bf16 %v1791, %v1788
        %v1877 = vpack.c.bf16 %v1799, %v1796
        %v1878 = vpack.c.bf16 %v1807, %v1804
        %v1879 = vpack.c.bf16 %v1815, %v1812
        %v1880 = vpack.c.bf16 %v1823, %v1820
        %v1881 = vpack.c.bf16 %v1831, %v1828
        %v1882 = vld [vmem:[%s5] sm:$0xf]
        %v1883 = vld [vmem:[%s5 + $0x4] sm:$0xf]
        %v1884 = vld [vmem:[%s5 + $0x8] sm:$0xf]
        %v1885 = vld [vmem:[%s5 + $0xc] sm:$0xf]
        %v1886 = vld [vmem:[%s5 + $0x10] sm:$0xf]
        %v1887 = vld [vmem:[%s5 + $0x14] sm:$0xf]
        %v1888 = vld [vmem:[%s5 + $0x18] sm:$0xf]
        %v1889 = vld [vmem:[%s5 + $0x1c] sm:$0xf]
        %v1890 = vld [vmem:[%s5 + $0x20] sm:$0xf]
        %v1891 = vld [vmem:[%s5 + $0x24] sm:$0xf]
        %v1892 = vld [vmem:[%s5 + $0x28] sm:$0xf]
        %v1893 = vld [vmem:[%s5 + $0x2c] sm:$0xf]
        %v1894 = vld [vmem:[%s5 + $0x30] sm:$0xf]
        %v1895 = vld [vmem:[%s5 + $0x34] sm:$0xf]
        %v1896 = vld [vmem:[%s5 + $0x38] sm:$0xf]
        %v1897 = vld [vmem:[%s5 + $0x3c] sm:$0xf]
        %v1898 = vld [vmem:[%s10 + $0x4] sm:$0x1]
        %v1899 = vlaneseq
        %v1900 = vshrl.u32 %v1899, 7
        %v1901 = vsub.s32 0, %v1900
        %v1902 = vrot.slane %v1898, %v1901
        %v1919 = vunpack.c.l.b16 %v1882
        %v1920 = vunpack.c.l.b16 %v1883
        %v1921 = vunpack.c.l.b16 %v1884
        %v1922 = vunpack.c.l.b16 %v1885
        %v1923 = vunpack.c.l.b16 %v1886
        %v1924 = vunpack.c.l.b16 %v1887
        %v1925 = vunpack.c.l.b16 %v1888
        %v1926 = vunpack.c.l.b16 %v1889
        %v1927 = vunpack.c.l.b16 %v1890
        %v1928 = vunpack.c.l.b16 %v1891
        %v1929 = vunpack.c.l.b16 %v1892
        %v1930 = vunpack.c.l.b16 %v1893
        %v1931 = vunpack.c.l.b16 %v1894
        %v1932 = vunpack.c.l.b16 %v1895
        %v1933 = vunpack.c.l.b16 %v1896
        %v1934 = vunpack.c.l.b16 %v1897
        %v1935 = vpack.c.b16 %v1920, %v1919
        %v1936 = vpack.c.b16 %v1922, %v1921
        %v1937 = vpack.c.b16 %v1924, %v1923
        %v1938 = vpack.c.b16 %v1926, %v1925
        %v1939 = vpack.c.b16 %v1928, %v1927
        %v1940 = vpack.c.b16 %v1930, %v1929
        %v1941 = vpack.c.b16 %v1932, %v1931
        %v1942 = vpack.c.b16 %v1934, %v1933
        %1951 = vmatprep.subr.bf16.mxu0 0
        %1952 = vmatpush1.bf16.msra.mxu0 %v1935
        %1953 = vmatprep.subr.bf16.mxu0 0
        %1954 = vmatpush1.bf16.msra.mxu0 %v1936
        %1955 = vmatprep.subr.bf16.mxu0 0
        %1956 = vmatpush1.bf16.msra.mxu0 %v1937
        %1957 = vmatprep.subr.bf16.mxu0 0
        %1958 = vmatpush1.bf16.msra.mxu0 %v1938
        %1959 = vmatprep.subr.bf16.mxu0 0
        %1960 = vmatpush1.bf16.msra.mxu0 %v1939
        %1961 = vmatprep.subr.bf16.mxu0 0
        %1962 = vmatpush1.bf16.msra.mxu0 %v1940
        %1963 = vmatprep.subr.bf16.mxu0 0
        %1964 = vmatpush1.bf16.msra.mxu0 %v1941
        %1965 = vmatprep.subr.bf16.mxu0 0
        %1966 = vmatpush1.bf16.msra.mxu0 %v1942
        %1967 = vmatprep.subr.bf16.mxu0 0
        %1968 = vmatpush1.bf16.msra.mxu0 0
        %1969 = vmatprep.subr.bf16.mxu0 0
        %1970 = vmatpush1.bf16.msra.mxu0 0
        %1971 = vmatprep.subr.bf16.mxu0 0
        %1972 = vmatpush1.bf16.msra.mxu0 0
        %1973 = vmatprep.subr.bf16.mxu0 0
        %1974 = vmatpush1.bf16.msra.mxu0 0
        %1975 = vmatprep.subr.bf16.mxu0 0
        %1976 = vmatpush1.bf16.msra.mxu0 0
        %1977 = vmatprep.subr.bf16.mxu0 0
        %1978 = vmatpush1.bf16.msra.mxu0 0
        %1979 = vmatprep.subr.bf16.mxu0 0
        %1980 = vmatpush1.bf16.msra.mxu0 0
        %1981 = vmatprep.subr.bf16.mxu0 0
        %1982 = vmatpush1.bf16.msra.mxu0 0
        %1983 = vmatprep.mubr.bf16.mxu0 0
        %1984 = vmatmul.mubr.bf16.gmra.mrb[0].mxu0 %v1866
        %v1985 = vpop.f32.mrb[0].mxu0
        %v1986 = vadd.f32 %v1902, %v1985
        %v1987 = vpop.f32.mrb[0].mxu0
        %v1988 = vpop.f32.mrb[0].mxu0
        %v1989 = vadd.f32 %v1902, %v1988
        %v1990 = vpop.f32.mrb[0].mxu0
        %1991 = vmatprep.mubr.bf16.mxu0 0
        %1992 = vmatmul.mubr.bf16.gmra.mrb[0].mxu0 %v1867
        %v1993 = vpop.f32.mrb[0].mxu0
        %v1994 = vadd.f32 %v1902, %v1993
        %v1995 = vpop.f32.mrb[0].mxu0
        %v1996 = vpop.f32.mrb[0].mxu0
        %v1997 = vadd.f32 %v1902, %v1996
        %v1998 = vpop.f32.mrb[0].mxu0
        %1999 = vmatprep.mubr.bf16.mxu0 0
        %2000 = vmatmul.mubr.bf16.gmra.mrb[0].mxu0 %v1868
        %v2001 = vpop.f32.mrb[0].mxu0
        %v2002 = vadd.f32 %v1902, %v2001
        %v2003 = vpop.f32.mrb[0].mxu0
        %v2004 = vpop.f32.mrb[0].mxu0
        %v2005 = vadd.f32 %v1902, %v2004
        %v2006 = vpop.f32.mrb[0].mxu0
        %2007 = vmatprep.mubr.bf16.mxu0 0
        %2008 = vmatmul.mubr.bf16.gmra.mrb[0].mxu0 %v1869
        %v2009 = vpop.f32.mrb[0].mxu0
        %v2010 = vadd.f32 %v1902, %v2009
        %v2011 = vpop.f32.mrb[0].mxu0
        %v2012 = vpop.f32.mrb[0].mxu0
        %v2013 = vadd.f32 %v1902, %v2012
        %v2014 = vpop.f32.mrb[0].mxu0
        %2015 = vmatprep.mubr.bf16.mxu0 0
        %2016 = vmatmul.mubr.bf16.gmra.mrb[0].mxu0 %v1870
        %v2017 = vpop.f32.mrb[0].mxu0
        %v2018 = vadd.f32 %v1902, %v2017
        %v2019 = vpop.f32.mrb[0].mxu0
        %v2020 = vpop.f32.mrb[0].mxu0
        %v2021 = vadd.f32 %v1902, %v2020
        %v2022 = vpop.f32.mrb[0].mxu0
        %2023 = vmatprep.mubr.bf16.mxu0 0
        %2024 = vmatmul.mubr.bf16.gmra.mrb[0].mxu0 %v1871
        %v2025 = vpop.f32.mrb[0].mxu0
        %v2026 = vadd.f32 %v1902, %v2025
        %v2027 = vpop.f32.mrb[0].mxu0
        %v2028 = vpop.f32.mrb[0].mxu0
        %v2029 = vadd.f32 %v1902, %v2028
        %v2030 = vpop.f32.mrb[0].mxu0
        %2031 = vmatprep.mubr.bf16.mxu0 0
        %2032 = vmatmul.mubr.bf16.gmra.mrb[0].mxu0 %v1872
        %v2033 = vpop.f32.mrb[0].mxu0
        %v2034 = vadd.f32 %v1902, %v2033
        %v2035 = vpop.f32.mrb[0].mxu0
        %v2036 = vpop.f32.mrb[0].mxu0
        %v2037 = vadd.f32 %v1902, %v2036
        %v2038 = vpop.f32.mrb[0].mxu0
        %2039 = vmatprep.mubr.bf16.mxu0 0
        %2040 = vmatmul.mubr.bf16.gmra.mrb[0].mxu0 %v1873
        %v2041 = vpop.f32.mrb[0].mxu0
        %v2042 = vadd.f32 %v1902, %v2041
        %v2043 = vpop.f32.mrb[0].mxu0
        %v2044 = vpop.f32.mrb[0].mxu0
        %v2045 = vadd.f32 %v1902, %v2044
        %v2046 = vpop.f32.mrb[0].mxu0
        %2047 = vmatprep.mubr.bf16.mxu0 0
        %2048 = vmatmul.mubr.bf16.gmra.mrb[0].mxu0 %v1874
        %v2049 = vpop.f32.mrb[0].mxu0
        %v2050 = vadd.f32 %v1902, %v2049
        %v2051 = vpop.f32.mrb[0].mxu0
        %v2052 = vpop.f32.mrb[0].mxu0
        %v2053 = vadd.f32 %v1902, %v2052
        %v2054 = vpop.f32.mrb[0].mxu0
        %2055 = vmatprep.mubr.bf16.mxu0 0
        %2056 = vmatmul.mubr.bf16.gmra.mrb[0].mxu0 %v1875
        %v2057 = vpop.f32.mrb[0].mxu0
        %v2058 = vadd.f32 %v1902, %v2057
        %v2059 = vpop.f32.mrb[0].mxu0
        %v2060 = vpop.f32.mrb[0].mxu0
        %v2061 = vadd.f32 %v1902, %v2060
        %v2062 = vpop.f32.mrb[0].mxu0
        %2063 = vmatprep.mubr.bf16.mxu0 0
        %2064 = vmatmul.mubr.bf16.gmra.mrb[0].mxu0 %v1876
        %v2065 = vpop.f32.mrb[0].mxu0
        %v2066 = vadd.f32 %v1902, %v2065
        %v2067 = vpop.f32.mrb[0].mxu0
        %v2068 = vpop.f32.mrb[0].mxu0
        %v2069 = vadd.f32 %v1902, %v2068
        %v2070 = vpop.f32.mrb[0].mxu0
        %2071 = vmatprep.mubr.bf16.mxu0 0
        %2072 = vmatmul.mubr.bf16.gmra.mrb[0].mxu0 %v1877
        %v2073 = vpop.f32.mrb[0].mxu0
        %v2074 = vadd.f32 %v1902, %v2073
        %v2075 = vpop.f32.mrb[0].mxu0
        %v2076 = vpop.f32.mrb[0].mxu0
        %v2077 = vadd.f32 %v1902, %v2076
        %v2078 = vpop.f32.mrb[0].mxu0
        %2079 = vmatprep.mubr.bf16.mxu0 0
        %2080 = vmatmul.mubr.bf16.gmra.mrb[0].mxu0 %v1878
        %v2081 = vpop.f32.mrb[0].mxu0
        %v2082 = vadd.f32 %v1902, %v2081
        %v2083 = vpop.f32.mrb[0].mxu0
        %v2084 = vpop.f32.mrb[0].mxu0
        %v2085 = vadd.f32 %v1902, %v2084
        %v2086 = vpop.f32.mrb[0].mxu0
        %2087 = vmatprep.mubr.bf16.mxu0 0
        %2088 = vmatmul.mubr.bf16.gmra.mrb[0].mxu0 %v1879
        %v2089 = vpop.f32.mrb[0].mxu0
        %v2090 = vadd.f32 %v1902, %v2089
        %v2091 = vpop.f32.mrb[0].mxu0
        %v2092 = vpop.f32.mrb[0].mxu0
        %v2093 = vadd.f32 %v1902, %v2092
        %v2094 = vpop.f32.mrb[0].mxu0
        %2095 = vmatprep.mubr.bf16.mxu0 0
        %2096 = vmatmul.mubr.bf16.gmra.mrb[0].mxu0 %v1880
        %v2097 = vpop.f32.mrb[0].mxu0
        %v2098 = vadd.f32 %v1902, %v2097
        %v2099 = vpop.f32.mrb[0].mxu0
        %v2100 = vpop.f32.mrb[0].mxu0
        %v2101 = vadd.f32 %v1902, %v2100
        %v2102 = vpop.f32.mrb[0].mxu0
        %2103 = vmatprep.mubr.bf16.mxu0 0
        %2104 = vmatmul.mubr.bf16.gmra.mrb[0].mxu0 %v1881
        %v2105 = vpop.f32.mrb[0].mxu0
        %v2106 = vadd.f32 %v1902, %v2105
        %v2107 = vpop.f32.mrb[0].mxu0
        %v2108 = vpop.f32.mrb[0].mxu0
        %v2109 = vadd.f32 %v1902, %v2108
        %v2110 = vpop.f32.mrb[0].mxu0
        %2111 = vdwg.mxu0
        %v2112 = vmax.f32 %v1986, 0.0
        %v2113 = vmax.f32 %v1989, 0.0
        %v2114 = vmax.f32 %v1994, 0.0
        %v2115 = vmax.f32 %v1997, 0.0
        %v2116 = vmax.f32 %v2002, 0.0
        %v2117 = vmax.f32 %v2005, 0.0
        %v2118 = vmax.f32 %v2010, 0.0
        %v2119 = vmax.f32 %v2013, 0.0
        %v2120 = vmax.f32 %v2018, 0.0
        %v2121 = vmax.f32 %v2021, 0.0
        %v2122 = vmax.f32 %v2026, 0.0
        %v2123 = vmax.f32 %v2029, 0.0
        %v2124 = vmax.f32 %v2034, 0.0
        %v2125 = vmax.f32 %v2037, 0.0
        %v2126 = vmax.f32 %v2042, 0.0
        %v2127 = vmax.f32 %v2045, 0.0
        %v2128 = vmax.f32 %v2050, 0.0
        %v2129 = vmax.f32 %v2053, 0.0
        %v2130 = vmax.f32 %v2058, 0.0
        %v2131 = vmax.f32 %v2061, 0.0
        %v2132 = vmax.f32 %v2066, 0.0
        %v2133 = vmax.f32 %v2069, 0.0
        %v2134 = vmax.f32 %v2074, 0.0
        %v2135 = vmax.f32 %v2077, 0.0
        %v2136 = vmax.f32 %v2082, 0.0
        %v2137 = vmax.f32 %v2085, 0.0
        %v2138 = vmax.f32 %v2090, 0.0
        %v2139 = vmax.f32 %v2093, 0.0
        %v2140 = vmax.f32 %v2098, 0.0
        %v2141 = vmax.f32 %v2101, 0.0
        %v2142 = vmax.f32 %v2106, 0.0
        %v2143 = vmax.f32 %v2109, 0.0
        %v2144 = vmin.f32 %v2112, 6.0
        %v2145 = vmin.f32 %v2113, 6.0
        %v2146 = vmin.f32 %v2114, 6.0
        %v2147 = vmin.f32 %v2115, 6.0
        %v2148 = vmin.f32 %v2116, 6.0
        %v2149 = vmin.f32 %v2117, 6.0
        %v2150 = vmin.f32 %v2118, 6.0
        %v2151 = vmin.f32 %v2119, 6.0
        %v2152 = vmin.f32 %v2120, 6.0
        %v2153 = vmin.f32 %v2121, 6.0
        %v2154 = vmin.f32 %v2122, 6.0
        %v2155 = vmin.f32 %v2123, 6.0
        %v2156 = vmin.f32 %v2124, 6.0
        %v2157 = vmin.f32 %v2125, 6.0
        %v2158 = vmin.f32 %v2126, 6.0
        %v2159 = vmin.f32 %v2127, 6.0
        %v2160 = vmin.f32 %v2128, 6.0
        %v2161 = vmin.f32 %v2129, 6.0
        %v2162 = vmin.f32 %v2130, 6.0
        %v2163 = vmin.f32 %v2131, 6.0
        %v2164 = vmin.f32 %v2132, 6.0
        %v2165 = vmin.f32 %v2133, 6.0
        %v2166 = vmin.f32 %v2134, 6.0
        %v2167 = vmin.f32 %v2135, 6.0
        %v2168 = vmin.f32 %v2136, 6.0
        %v2169 = vmin.f32 %v2137, 6.0
        %v2170 = vmin.f32 %v2138, 6.0
        %v2171 = vmin.f32 %v2139, 6.0
        %v2172 = vmin.f32 %v2140, 6.0
        %v2173 = vmin.f32 %v2141, 6.0
        %v2174 = vmin.f32 %v2142, 6.0
        %v2175 = vmin.f32 %v2143, 6.0
        %2176 = vst [vmem:[#allocation2] sm:$0xff] %v2144
        %2177 = vst [vmem:[#allocation2 + $0x8] sm:$0xff] %v2145
        %2178 = vst [vmem:[#allocation2 + $0x10] sm:$0xff] %v2146
        %2179 = vst [vmem:[#allocation2 + $0x18] sm:$0xff] %v2147
        %2180 = vst [vmem:[#allocation2 + $0x20] sm:$0xff] %v2148
        %2181 = vst [vmem:[#allocation2 + $0x28] sm:$0xff] %v2149
        %2182 = vst [vmem:[#allocation2 + $0x30] sm:$0xff] %v2150
        %2183 = vst [vmem:[#allocation2 + $0x38] sm:$0xff] %v2151
        %2184 = vst [vmem:[#allocation2 + $0x40] sm:$0xff] %v2152
        %2185 = vst [vmem:[#allocation2 + $0x48] sm:$0xff] %v2153
        %2186 = vst [vmem:[#allocation2 + $0x50] sm:$0xff] %v2154
        %2187 = vst [vmem:[#allocation2 + $0x58] sm:$0xff] %v2155
        %2188 = vst [vmem:[#allocation2 + $0x60] sm:$0xff] %v2156
        %2189 = vst [vmem:[#allocation2 + $0x68] sm:$0xff] %v2157
        %2190 = vst [vmem:[#allocation2 + $0x70] sm:$0xff] %v2158
        %2191 = vst [vmem:[#allocation2 + $0x78] sm:$0xff] %v2159
        %2192 = vst [vmem:[#allocation2 + $0x80] sm:$0xff] %v2160
        %2193 = vst [vmem:[#allocation2 + $0x88] sm:$0xff] %v2161
        %2194 = vst [vmem:[#allocation2 + $0x90] sm:$0xff] %v2162
        %2195 = vst [vmem:[#allocation2 + $0x98] sm:$0xff] %v2163
        %2196 = vst [vmem:[#allocation2 + $0xa0] sm:$0xff] %v2164
        %2197 = vst [vmem:[#allocation2 + $0xa8] sm:$0xff] %v2165
        %2198 = vst [vmem:[#allocation2 + $0xb0] sm:$0xff] %v2166
        %2199 = vst [vmem:[#allocation2 + $0xb8] sm:$0xff] %v2167
        %2200 = vst [vmem:[#allocation2 + $0xc0] sm:$0xff] %v2168
        %2201 = vst [vmem:[#allocation2 + $0xc8] sm:$0xff] %v2169
        %2202 = vst [vmem:[#allocation2 + $0xd0] sm:$0xff] %v2170
        %2203 = vst [vmem:[#allocation2 + $0xd8] sm:$0xff] %v2171
        %2204 = vst [vmem:[#allocation2 + $0xe0] sm:$0xff] %v2172
        %2205 = vst [vmem:[#allocation2 + $0xe8] sm:$0xff] %v2173
        %2206 = vst [vmem:[#allocation2 + $0xf0] sm:$0xff] %v2174
        %2207 = vst [vmem:[#allocation2 + $0xf8] sm:$0xff] %v2175
        %v2208 = vld [vmem:[%s10 + $0x5] sm:$0x1]
        loop: start=0, step=1, limit=4
        $region72: #{supernet_forward.1} parent=63 // loop_pre_header
          _
        $region73: #{supernet_forward.1} parent=63 // loop_header
          %s2210 = sphi 0, %s2214
          %p2211 = scmp.ge.s32.totalorder %s2210, 4
        $region74: #{supernet_forward.1} parent=63 // loop_header_branch
          %2213 = sbr.rel (%p2211) target = $region78
        $region75: #{supernet_forward.1} parent=63 // loop_body
          %s2215 = smul.u32 %s2210, 64
          %s2216 = scalar_lea.vmem [#allocation2], %s2215
          %v2217 = vld [vmem:[%s2216] sm:$0xff]
          %v2218 = vld [vmem:[%s2216 + $0x8] sm:$0xff]
          %v2219 = vld [vmem:[%s2216 + $0x10] sm:$0xff]
          %v2220 = vld [vmem:[%s2216 + $0x18] sm:$0xff]
          %v2221 = vld [vmem:[%s2216 + $0x20] sm:$0xff]
          %v2222 = vld [vmem:[%s2216 + $0x28] sm:$0xff]
          %v2223 = vld [vmem:[%s2216 + $0x30] sm:$0xff]
          %v2224 = vld [vmem:[%s2216 + $0x38] sm:$0xff]
          %s2225 = scalar_lea.vmem %s6, 256
          %v2226 = vld [vmem:[%s2225] sm:$0xff]
          %v2227 = vld [vmem:[%s2225 + $0x8] sm:$0xff]
          %v2228 = vld [vmem:[%s2225 + $0x10] sm:$0xff]
          %v2229 = vld [vmem:[%s2225 + $0x18] sm:$0xff]
          %v2230 = vld [vmem:[%s2225 + $0x20] sm:$0xff]
          %v2231 = vld [vmem:[%s2225 + $0x28] sm:$0xff]
          %v2232 = vld [vmem:[%s2225 + $0x30] sm:$0xff]
          %v2233 = vld [vmem:[%s2225 + $0x38] sm:$0xff]
          %v2234 = vmul.f32 %v2217, %v2226
          %v2235 = vmul.f32 %v2218, %v2227
          %v2236 = vmul.f32 %v2219, %v2228
          %v2237 = vmul.f32 %v2220, %v2229
          %v2238 = vmul.f32 %v2221, %v2230
          %v2239 = vmul.f32 %v2222, %v2231
          %v2240 = vmul.f32 %v2223, %v2232
          %v2241 = vmul.f32 %v2224, %v2233
          %v2242 = vrot.slane %v2217, 7
          %v2243 = vrot.slane %v2218, 7
          %v2244 = vrot.slane %v2219, 7
          %v2245 = vrot.slane %v2220, 7
          %v2246 = vrot.slane %v2221, 7
          %v2247 = vrot.slane %v2222, 7
          %v2248 = vrot.slane %v2223, 7
          %v2249 = vrot.slane %v2224, 7
          %v2250 = vlaneseq
          %v2251 = vshrl.u32 %v2250, 7
          %vm2252 = vcmp.lt.s32.totalorder %v2251, 1
          %v2253 = vsel %vm2252, %v2248, %v2249
          %v2254 = vsel %vm2252, %v2247, %v2248
          %v2255 = vsel %vm2252, %v2246, %v2247
          %v2256 = vsel %vm2252, %v2245, %v2246
          %v2257 = vsel %vm2252, %v2244, %v2245
          %v2258 = vsel %vm2252, %v2243, %v2244
          %v2259 = vsel %vm2252, %v2242, %v2243
          %v2260 = vsel %vm2252, %v2249, %v2242
          %v2261 = vld [vmem:[%s6] sm:$0xff]
          %v2262 = vld [vmem:[%s6 + $0x8] sm:$0xff]
          %v2263 = vld [vmem:[%s6 + $0x10] sm:$0xff]
          %v2264 = vld [vmem:[%s6 + $0x18] sm:$0xff]
          %v2265 = vld [vmem:[%s6 + $0x20] sm:$0xff]
          %v2266 = vld [vmem:[%s6 + $0x28] sm:$0xff]
          %v2267 = vld [vmem:[%s6 + $0x30] sm:$0xff]
          %v2268 = vld [vmem:[%s6 + $0x38] sm:$0xff]
          %v2269 = vmul.f32 %v2253, %v2261
          %v2270 = vmul.f32 %v2260, %v2262
          %v2271 = vmul.f32 %v2259, %v2263
          %v2272 = vmul.f32 %v2258, %v2264
          %v2273 = vmul.f32 %v2257, %v2265
          %v2274 = vmul.f32 %v2256, %v2266
          %v2275 = vmul.f32 %v2255, %v2267
          %v2276 = vmul.f32 %v2254, %v2268
          %v2277 = vadd.f32 %v2234, %v2269
          %v2278 = vadd.f32 %v2235, %v2270
          %v2279 = vadd.f32 %v2236, %v2271
          %v2280 = vadd.f32 %v2237, %v2272
          %v2281 = vadd.f32 %v2238, %v2273
          %v2282 = vadd.f32 %v2239, %v2274
          %v2283 = vadd.f32 %v2240, %v2275
          %v2284 = vadd.f32 %v2241, %v2276
          %s2285 = scalar_lea.vmem %s6, 64
          %v2286 = vld [vmem:[%s2285] sm:$0xff]
          %v2287 = vld [vmem:[%s2285 + $0x8] sm:$0xff]
          %v2288 = vld [vmem:[%s2285 + $0x10] sm:$0xff]
          %v2289 = vld [vmem:[%s2285 + $0x18] sm:$0xff]
          %v2290 = vld [vmem:[%s2285 + $0x20] sm:$0xff]
          %v2291 = vld [vmem:[%s2285 + $0x28] sm:$0xff]
          %v2292 = vld [vmem:[%s2285 + $0x30] sm:$0xff]
          %v2293 = vld [vmem:[%s2285 + $0x38] sm:$0xff]
          %v2294 = vmul.f32 %v2224, %v2286
          %v2295 = vmul.f32 %v2217, %v2287
          %v2296 = vmul.f32 %v2218, %v2288
          %v2297 = vmul.f32 %v2219, %v2289
          %v2298 = vmul.f32 %v2220, %v2290
          %v2299 = vmul.f32 %v2221, %v2291
          %v2300 = vmul.f32 %v2222, %v2292
          %v2301 = vmul.f32 %v2223, %v2293
          %v2302 = vadd.f32 %v2277, %v2294
          %v2303 = vadd.f32 %v2278, %v2295
          %v2304 = vadd.f32 %v2279, %v2296
          %v2305 = vadd.f32 %v2280, %v2297
          %v2306 = vadd.f32 %v2281, %v2298
          %v2307 = vadd.f32 %v2282, %v2299
          %v2308 = vadd.f32 %v2283, %v2300
          %v2309 = vadd.f32 %v2284, %v2301
          %v2310 = vrot.slane %v2217, 1
          %v2311 = vrot.slane %v2218, 1
          %v2312 = vrot.slane %v2219, 1
          %v2313 = vrot.slane %v2220, 1
          %v2314 = vrot.slane %v2221, 1
          %v2315 = vrot.slane %v2222, 1
          %v2316 = vrot.slane %v2223, 1
          %v2317 = vrot.slane %v2224, 1
          %vm2318 = vcmp.lt.s32.totalorder %v2251, 7
          %v2319 = vsel %vm2318, %v2316, %v2317
          %v2320 = vsel %vm2318, %v2315, %v2316
          %v2321 = vsel %vm2318, %v2314, %v2315
          %v2322 = vsel %vm2318, %v2313, %v2314
          %v2323 = vsel %vm2318, %v2312, %v2313
          %v2324 = vsel %vm2318, %v2311, %v2312
          %v2325 = vsel %vm2318, %v2310, %v2311
          %v2326 = vsel %vm2318, %v2317, %v2310
          %s2327 = scalar_lea.vmem %s6, 128
          %v2328 = vld [vmem:[%s2327] sm:$0xff]
          %v2329 = vld [vmem:[%s2327 + $0x8] sm:$0xff]
          %v2330 = vld [vmem:[%s2327 + $0x10] sm:$0xff]
          %v2331 = vld [vmem:[%s2327 + $0x18] sm:$0xff]
          %v2332 = vld [vmem:[%s2327 + $0x20] sm:$0xff]
          %v2333 = vld [vmem:[%s2327 + $0x28] sm:$0xff]
          %v2334 = vld [vmem:[%s2327 + $0x30] sm:$0xff]
          %v2335 = vld [vmem:[%s2327 + $0x38] sm:$0xff]
          %v2336 = vmul.f32 %v2326, %v2328
          %v2337 = vmul.f32 %v2325, %v2329
          %v2338 = vmul.f32 %v2324, %v2330
          %v2339 = vmul.f32 %v2323, %v2331
          %v2340 = vmul.f32 %v2322, %v2332
          %v2341 = vmul.f32 %v2321, %v2333
          %v2342 = vmul.f32 %v2320, %v2334
          %v2343 = vmul.f32 %v2319, %v2335
          %v2344 = vadd.f32 %v2302, %v2336
          %v2345 = vadd.f32 %v2303, %v2337
          %v2346 = vadd.f32 %v2304, %v2338
          %v2347 = vadd.f32 %v2305, %v2339
          %v2348 = vadd.f32 %v2306, %v2340
          %v2349 = vadd.f32 %v2307, %v2341
          %v2350 = vadd.f32 %v2308, %v2342
          %v2351 = vadd.f32 %v2309, %v2343
          %s2352 = scalar_lea.vmem %s6, 192
          %v2353 = vld [vmem:[%s2352] sm:$0xff]
          %v2354 = vld [vmem:[%s2352 + $0x8] sm:$0xff]
          %v2355 = vld [vmem:[%s2352 + $0x10] sm:$0xff]
          %v2356 = vld [vmem:[%s2352 + $0x18] sm:$0xff]
          %v2357 = vld [vmem:[%s2352 + $0x20] sm:$0xff]
          %v2358 = vld [vmem:[%s2352 + $0x28] sm:$0xff]
          %v2359 = vld [vmem:[%s2352 + $0x30] sm:$0xff]
          %v2360 = vld [vmem:[%s2352 + $0x38] sm:$0xff]
          %v2361 = vmul.f32 %v2260, %v2353
          %v2362 = vmul.f32 %v2259, %v2354
          %v2363 = vmul.f32 %v2258, %v2355
          %v2364 = vmul.f32 %v2257, %v2356
          %v2365 = vmul.f32 %v2256, %v2357
          %v2366 = vmul.f32 %v2255, %v2358
          %v2367 = vmul.f32 %v2254, %v2359
          %v2368 = vmul.f32 %v2253, %v2360
          %v2369 = vadd.f32 %v2344, %v2361
          %v2370 = vadd.f32 %v2345, %v2362
          %v2371 = vadd.f32 %v2346, %v2363
          %v2372 = vadd.f32 %v2347, %v2364
          %v2373 = vadd.f32 %v2348, %v2365
          %v2374 = vadd.f32 %v2349, %v2366
          %v2375 = vadd.f32 %v2350, %v2367
          %v2376 = vadd.f32 %v2351, %v2368
          %s2377 = scalar_lea.vmem %s6, 320
          %v2378 = vld [vmem:[%s2377] sm:$0xff]
          %v2379 = vld [vmem:[%s2377 + $0x8] sm:$0xff]
          %v2380 = vld [vmem:[%s2377 + $0x10] sm:$0xff]
          %v2381 = vld [vmem:[%s2377 + $0x18] sm:$0xff]
          %v2382 = vld [vmem:[%s2377 + $0x20] sm:$0xff]
          %v2383 = vld [vmem:[%s2377 + $0x28] sm:$0xff]
          %v2384 = vld [vmem:[%s2377 + $0x30] sm:$0xff]
          %v2385 = vld [vmem:[%s2377 + $0x38] sm:$0xff]
          %v2386 = vmul.f32 %v2325, %v2378
          %v2387 = vmul.f32 %v2324, %v2379
          %v2388 = vmul.f32 %v2323, %v2380
          %v2389 = vmul.f32 %v2322, %v2381
          %v2390 = vmul.f32 %v2321, %v2382
          %v2391 = vmul.f32 %v2320, %v2383
          %v2392 = vmul.f32 %v2319, %v2384
          %v2393 = vmul.f32 %v2326, %v2385
          %v2394 = vadd.f32 %v2369, %v2386
          %v2395 = vadd.f32 %v2370, %v2387
          %v2396 = vadd.f32 %v2371, %v2388
          %v2397 = vadd.f32 %v2372, %v2389
          %v2398 = vadd.f32 %v2373, %v2390
          %v2399 = vadd.f32 %v2374, %v2391
          %v2400 = vadd.f32 %v2375, %v2392
          %v2401 = vadd.f32 %v2376, %v2393
          %s2402 = scalar_lea.vmem %s6, 384
          %v2403 = vld [vmem:[%s2402] sm:$0xff]
          %v2404 = vld [vmem:[%s2402 + $0x8] sm:$0xff]
          %v2405 = vld [vmem:[%s2402 + $0x10] sm:$0xff]
          %v2406 = vld [vmem:[%s2402 + $0x18] sm:$0xff]
          %v2407 = vld [vmem:[%s2402 + $0x20] sm:$0xff]
          %v2408 = vld [vmem:[%s2402 + $0x28] sm:$0xff]
          %v2409 = vld [vmem:[%s2402 + $0x30] sm:$0xff]
          %v2410 = vld [vmem:[%s2402 + $0x38] sm:$0xff]
          %v2411 = vmul.f32 %v2259, %v2403
          %v2412 = vmul.f32 %v2258, %v2404
          %v2413 = vmul.f32 %v2257, %v2405
          %v2414 = vmul.f32 %v2256, %v2406
          %v2415 = vmul.f32 %v2255, %v2407
          %v2416 = vmul.f32 %v2254, %v2408
          %v2417 = vmul.f32 %v2253, %v2409
          %v2418 = vmul.f32 %v2260, %v2410
          %v2419 = vadd.f32 %v2394, %v2411
          %v2420 = vadd.f32 %v2395, %v2412
          %v2421 = vadd.f32 %v2396, %v2413
          %v2422 = vadd.f32 %v2397, %v2414
          %v2423 = vadd.f32 %v2398, %v2415
          %v2424 = vadd.f32 %v2399, %v2416
          %v2425 = vadd.f32 %v2400, %v2417
          %v2426 = vadd.f32 %v2401, %v2418
          %s2427 = scalar_lea.vmem %s6, 448
          %v2428 = vld [vmem:[%s2427] sm:$0xff]
          %v2429 = vld [vmem:[%s2427 + $0x8] sm:$0xff]
          %v2430 = vld [vmem:[%s2427 + $0x10] sm:$0xff]
          %v2431 = vld [vmem:[%s2427 + $0x18] sm:$0xff]
          %v2432 = vld [vmem:[%s2427 + $0x20] sm:$0xff]
          %v2433 = vld [vmem:[%s2427 + $0x28] sm:$0xff]
          %v2434 = vld [vmem:[%s2427 + $0x30] sm:$0xff]
          %v2435 = vld [vmem:[%s2427 + $0x38] sm:$0xff]
          %v2436 = vmul.f32 %v2218, %v2428
          %v2437 = vmul.f32 %v2219, %v2429
          %v2438 = vmul.f32 %v2220, %v2430
          %v2439 = vmul.f32 %v2221, %v2431
          %v2440 = vmul.f32 %v2222, %v2432
          %v2441 = vmul.f32 %v2223, %v2433
          %v2442 = vmul.f32 %v2224, %v2434
          %v2443 = vmul.f32 %v2217, %v2435
          %v2444 = vadd.f32 %v2419, %v2436
          %v2445 = vadd.f32 %v2420, %v2437
          %v2446 = vadd.f32 %v2421, %v2438
          %v2447 = vadd.f32 %v2422, %v2439
          %v2448 = vadd.f32 %v2423, %v2440
          %v2449 = vadd.f32 %v2424, %v2441
          %v2450 = vadd.f32 %v2425, %v2442
          %v2451 = vadd.f32 %v2426, %v2443
          %s2452 = scalar_lea.vmem %s6, 512
          %v2453 = vld [vmem:[%s2452] sm:$0xff]
          %v2454 = vld [vmem:[%s2452 + $0x8] sm:$0xff]
          %v2455 = vld [vmem:[%s2452 + $0x10] sm:$0xff]
          %v2456 = vld [vmem:[%s2452 + $0x18] sm:$0xff]
          %v2457 = vld [vmem:[%s2452 + $0x20] sm:$0xff]
          %v2458 = vld [vmem:[%s2452 + $0x28] sm:$0xff]
          %v2459 = vld [vmem:[%s2452 + $0x30] sm:$0xff]
          %v2460 = vld [vmem:[%s2452 + $0x38] sm:$0xff]
          %v2461 = vmul.f32 %v2324, %v2453
          %v2462 = vmul.f32 %v2323, %v2454
          %v2463 = vmul.f32 %v2322, %v2455
          %v2464 = vmul.f32 %v2321, %v2456
          %v2465 = vmul.f32 %v2320, %v2457
          %v2466 = vmul.f32 %v2319, %v2458
          %v2467 = vmul.f32 %v2326, %v2459
          %v2468 = vmul.f32 %v2325, %v2460
          %v2469 = vadd.f32 %v2444, %v2461
          %v2470 = vadd.f32 %v2445, %v2462
          %v2471 = vadd.f32 %v2446, %v2463
          %v2472 = vadd.f32 %v2447, %v2464
          %v2473 = vadd.f32 %v2448, %v2465
          %v2474 = vadd.f32 %v2449, %v2466
          %v2475 = vadd.f32 %v2450, %v2467
          %v2476 = vadd.f32 %v2451, %v2468
          %v2477 = vlaneseq
          %v2478 = vshrl.u32 %v2477, 7
          %v2479 = vsub.s32 0, %v2478
          %v2480 = vrot.slane %v2208, %v2479
          %v2481 = vadd.f32 %v2469, %v2480
          %v2482 = vadd.f32 %v2470, %v2480
          %v2483 = vadd.f32 %v2471, %v2480
          %v2484 = vadd.f32 %v2472, %v2480
          %v2485 = vadd.f32 %v2473, %v2480
          %v2486 = vadd.f32 %v2474, %v2480
          %v2487 = vadd.f32 %v2475, %v2480
          %v2488 = vadd.f32 %v2476, %v2480
          %v2489 = vmax.f32 %v2481, 0.0
          %v2490 = vmax.f32 %v2482, 0.0
          %v2491 = vmax.f32 %v2483, 0.0
          %v2492 = vmax.f32 %v2484, 0.0
          %v2493 = vmax.f32 %v2485, 0.0
          %v2494 = vmax.f32 %v2486, 0.0
          %v2495 = vmax.f32 %v2487, 0.0
          %v2496 = vmax.f32 %v2488, 0.0
          %v2497 = vmin.f32 %v2489, 6.0
          %v2498 = vmin.f32 %v2490, 6.0
          %v2499 = vmin.f32 %v2491, 6.0
          %v2500 = vmin.f32 %v2492, 6.0
          %v2501 = vmin.f32 %v2493, 6.0
          %v2502 = vmin.f32 %v2494, 6.0
          %v2503 = vmin.f32 %v2495, 6.0
          %v2504 = vmin.f32 %v2496, 6.0
          %2505 = vst [vmem:[%s2216] sm:$0xff] %v2497
          %2506 = vst [vmem:[%s2216 + $0x8] sm:$0xff] %v2498
          %2507 = vst [vmem:[%s2216 + $0x10] sm:$0xff] %v2499
          %2508 = vst [vmem:[%s2216 + $0x18] sm:$0xff] %v2500
          %2509 = vst [vmem:[%s2216 + $0x20] sm:$0xff] %v2501
          %2510 = vst [vmem:[%s2216 + $0x28] sm:$0xff] %v2502
          %2511 = vst [vmem:[%s2216 + $0x30] sm:$0xff] %v2503
          %2512 = vst [vmem:[%s2216 + $0x38] sm:$0xff] %v2504
        $region76: #{supernet_forward.1} parent=63 // loop_footer
          %s2214 = sadd.s32 1, %s2210
        $region77: #{supernet_forward.1} parent=63 // loop_footer_branch
          %2209 = sbr.rel target = $region73
        $region78: #{supernet_forward.1} parent=63 // loop_exit
          _
        %v2513 = vld [vmem:[#allocation2] sm:$0xff]
        %v2514 = vld [vmem:[#allocation2 + $0x8] sm:$0xff]
        %v2515 = vld [vmem:[#allocation2 + $0x10] sm:$0xff]
        %v2516 = vld [vmem:[#allocation2 + $0x18] sm:$0xff]
        %v2517 = vld [vmem:[#allocation2 + $0x20] sm:$0xff]
        %v2518 = vld [vmem:[#allocation2 + $0x28] sm:$0xff]
        %v2519 = vld [vmem:[#allocation2 + $0x30] sm:$0xff]
        %v2520 = vld [vmem:[#allocation2 + $0x38] sm:$0xff]
        %v2521 = vld [vmem:[#allocation2 + $0x40] sm:$0xff]
        %v2522 = vld [vmem:[#allocation2 + $0x48] sm:$0xff]
        %v2523 = vld [vmem:[#allocation2 + $0x50] sm:$0xff]
        %v2524 = vld [vmem:[#allocation2 + $0x58] sm:$0xff]
        %v2525 = vld [vmem:[#allocation2 + $0x60] sm:$0xff]
        %v2526 = vld [vmem:[#allocation2 + $0x68] sm:$0xff]
        %v2527 = vld [vmem:[#allocation2 + $0x70] sm:$0xff]
        %v2528 = vld [vmem:[#allocation2 + $0x78] sm:$0xff]
        %v2529 = vld [vmem:[#allocation2 + $0x80] sm:$0xff]
        %v2530 = vld [vmem:[#allocation2 + $0x88] sm:$0xff]
        %v2531 = vld [vmem:[#allocation2 + $0x90] sm:$0xff]
        %v2532 = vld [vmem:[#allocation2 + $0x98] sm:$0xff]
        %v2533 = vld [vmem:[#allocation2 + $0xa0] sm:$0xff]
        %v2534 = vld [vmem:[#allocation2 + $0xa8] sm:$0xff]
        %v2535 = vld [vmem:[#allocation2 + $0xb0] sm:$0xff]
        %v2536 = vld [vmem:[#allocation2 + $0xb8] sm:$0xff]
        %v2537 = vld [vmem:[#allocation2 + $0xc0] sm:$0xff]
        %v2538 = vld [vmem:[#allocation2 + $0xc8] sm:$0xff]
        %v2539 = vld [vmem:[#allocation2 + $0xd0] sm:$0xff]
        %v2540 = vld [vmem:[#allocation2 + $0xd8] sm:$0xff]
        %v2541 = vld [vmem:[#allocation2 + $0xe0] sm:$0xff]
        %v2542 = vld [vmem:[#allocation2 + $0xe8] sm:$0xff]
        %v2543 = vld [vmem:[#allocation2 + $0xf0] sm:$0xff]
        %v2544 = vld [vmem:[#allocation2 + $0xf8] sm:$0xff]
        %v2545 = vpack.c.bf16 %v2514, %v2513
        %v2546 = vpack.c.bf16 %v2516, %v2515
        %v2547 = vpack.c.bf16 %v2518, %v2517
        %v2548 = vpack.c.bf16 %v2520, %v2519
        %v2549 = vpack.c.bf16 %v2522, %v2521
        %v2550 = vpack.c.bf16 %v2524, %v2523
        %v2551 = vpack.c.bf16 %v2526, %v2525
        %v2552 = vpack.c.bf16 %v2528, %v2527
        %v2553 = vpack.c.bf16 %v2530, %v2529
        %v2554 = vpack.c.bf16 %v2532, %v2531
        %v2555 = vpack.c.bf16 %v2534, %v2533
        %v2556 = vpack.c.bf16 %v2536, %v2535
        %v2557 = vpack.c.bf16 %v2538, %v2537
        %v2558 = vpack.c.bf16 %v2540, %v2539
        %v2559 = vpack.c.bf16 %v2542, %v2541
        %v2560 = vpack.c.bf16 %v2544, %v2543
        %v2561 = vld [vmem:[%s7] sm:$0xf]
        %v2562 = vld [vmem:[%s7 + $0x4] sm:$0xf]
        %v2563 = vld [vmem:[%s7 + $0x8] sm:$0xf]
        %v2564 = vld [vmem:[%s7 + $0xc] sm:$0xf]
        %v2565 = vld [vmem:[%s7 + $0x10] sm:$0xf]
        %v2566 = vld [vmem:[%s7 + $0x14] sm:$0xf]
        %v2567 = vld [vmem:[%s7 + $0x18] sm:$0xf]
        %v2568 = vld [vmem:[%s7 + $0x1c] sm:$0xf]
        %v2569 = vld [vmem:[%s7 + $0x20] sm:$0xf]
        %v2570 = vld [vmem:[%s7 + $0x24] sm:$0xf]
        %v2571 = vld [vmem:[%s7 + $0x28] sm:$0xf]
        %v2572 = vld [vmem:[%s7 + $0x2c] sm:$0xf]
        %v2573 = vld [vmem:[%s7 + $0x30] sm:$0xf]
        %v2574 = vld [vmem:[%s7 + $0x34] sm:$0xf]
        %v2575 = vld [vmem:[%s7 + $0x38] sm:$0xf]
        %v2576 = vld [vmem:[%s7 + $0x3c] sm:$0xf]
        %v2577 = vld [vmem:[%s10 + $0x6] sm:$0x1]
        %v2578 = vlaneseq
        %v2579 = vshrl.u32 %v2578, 7
        %v2580 = vsub.s32 0, %v2579
        %v2581 = vrot.slane %v2577, %v2580
        %v2598 = vunpack.c.l.b16 %v2561
        %v2599 = vunpack.c.l.b16 %v2562
        %v2600 = vunpack.c.l.b16 %v2563
        %v2601 = vunpack.c.l.b16 %v2564
        %v2602 = vunpack.c.l.b16 %v2565
        %v2603 = vunpack.c.l.b16 %v2566
        %v2604 = vunpack.c.l.b16 %v2567
        %v2605 = vunpack.c.l.b16 %v2568
        %v2606 = vunpack.c.l.b16 %v2569
        %v2607 = vunpack.c.l.b16 %v2570
        %v2608 = vunpack.c.l.b16 %v2571
        %v2609 = vunpack.c.l.b16 %v2572
        %v2610 = vunpack.c.l.b16 %v2573
        %v2611 = vunpack.c.l.b16 %v2574
        %v2612 = vunpack.c.l.b16 %v2575
        %v2613 = vunpack.c.l.b16 %v2576
        %v2614 = vpack.c.b16 %v2599, %v2598
        %v2615 = vpack.c.b16 %v2601, %v2600
        %v2616 = vpack.c.b16 %v2603, %v2602
        %v2617 = vpack.c.b16 %v2605, %v2604
        %v2618 = vpack.c.b16 %v2607, %v2606
        %v2619 = vpack.c.b16 %v2609, %v2608
        %v2620 = vpack.c.b16 %v2611, %v2610
        %v2621 = vpack.c.b16 %v2613, %v2612
        %2630 = vmatprep.subr.bf16.mxu0 0
        %2631 = vmatpush1.bf16.msra.mxu0 %v2614
        %2632 = vmatprep.subr.bf16.mxu0 0
        %2633 = vmatpush1.bf16.msra.mxu0 %v2615
        %2634 = vmatprep.subr.bf16.mxu0 0
        %2635 = vmatpush1.bf16.msra.mxu0 %v2616
        %2636 = vmatprep.subr.bf16.mxu0 0
        %2637 = vmatpush1.bf16.msra.mxu0 %v2617
        %2638 = vmatprep.subr.bf16.mxu0 0
        %2639 = vmatpush1.bf16.msra.mxu0 %v2618
        %2640 = vmatprep.subr.bf16.mxu0 0
        %2641 = vmatpush1.bf16.msra.mxu0 %v2619
        %2642 = vmatprep.subr.bf16.mxu0 0
        %2643 = vmatpush1.bf16.msra.mxu0 %v2620
        %2644 = vmatprep.subr.bf16.mxu0 0
        %2645 = vmatpush1.bf16.msra.mxu0 %v2621
        %2646 = vmatprep.subr.bf16.mxu0 0
        %2647 = vmatpush1.bf16.msra.mxu0 0
        %2648 = vmatprep.subr.bf16.mxu0 0
        %2649 = vmatpush1.bf16.msra.mxu0 0
        %2650 = vmatprep.subr.bf16.mxu0 0
        %2651 = vmatpush1.bf16.msra.mxu0 0
        %2652 = vmatprep.subr.bf16.mxu0 0
        %2653 = vmatpush1.bf16.msra.mxu0 0
        %2654 = vmatprep.subr.bf16.mxu0 0
        %2655 = vmatpush1.bf16.msra.mxu0 0
        %2656 = vmatprep.subr.bf16.mxu0 0
        %2657 = vmatpush1.bf16.msra.mxu0 0
        %2658 = vmatprep.subr.bf16.mxu0 0
        %2659 = vmatpush1.bf16.msra.mxu0 0
        %2660 = vmatprep.subr.bf16.mxu0 0
        %2661 = vmatpush1.bf16.msra.mxu0 0
        %2662 = vmatprep.mubr.bf16.mxu0 0
        %2663 = vmatmul.mubr.bf16.gmra.mrb[0].mxu0 %v2545
        %v2664 = vpop.f32.mrb[0].mxu0
        %v2665 = vadd.f32 %v2581, %v2664
        %v2666 = vpop.f32.mrb[0].mxu0
        %v2667 = vpop.f32.mrb[0].mxu0
        %v2668 = vadd.f32 %v2581, %v2667
        %v2669 = vpop.f32.mrb[0].mxu0
        %2670 = vmatprep.mubr.bf16.mxu0 0
        %2671 = vmatmul.mubr.bf16.gmra.mrb[0].mxu0 %v2546
        %v2672 = vpop.f32.mrb[0].mxu0
        %v2673 = vadd.f32 %v2581, %v2672
        %v2674 = vpop.f32.mrb[0].mxu0
        %v2675 = vpop.f32.mrb[0].mxu0
        %v2676 = vadd.f32 %v2581, %v2675
        %v2677 = vpop.f32.mrb[0].mxu0
        %2678 = vmatprep.mubr.bf16.mxu0 0
        %2679 = vmatmul.mubr.bf16.gmra.mrb[0].mxu0 %v2547
        %v2680 = vpop.f32.mrb[0].mxu0
        %v2681 = vadd.f32 %v2581, %v2680
        %v2682 = vpop.f32.mrb[0].mxu0
        %v2683 = vpop.f32.mrb[0].mxu0
        %v2684 = vadd.f32 %v2581, %v2683
        %v2685 = vpop.f32.mrb[0].mxu0
        %2686 = vmatprep.mubr.bf16.mxu0 0
        %2687 = vmatmul.mubr.bf16.gmra.mrb[0].mxu0 %v2548
        %v2688 = vpop.f32.mrb[0].mxu0
        %v2689 = vadd.f32 %v2581, %v2688
        %v2690 = vpop.f32.mrb[0].mxu0
        %v2691 = vpop.f32.mrb[0].mxu0
        %v2692 = vadd.f32 %v2581, %v2691
        %v2693 = vpop.f32.mrb[0].mxu0
        %2694 = vmatprep.mubr.bf16.mxu0 0
        %2695 = vmatmul.mubr.bf16.gmra.mrb[0].mxu0 %v2549
        %v2696 = vpop.f32.mrb[0].mxu0
        %v2697 = vadd.f32 %v2581, %v2696
        %v2698 = vpop.f32.mrb[0].mxu0
        %v2699 = vpop.f32.mrb[0].mxu0
        %v2700 = vadd.f32 %v2581, %v2699
        %v2701 = vpop.f32.mrb[0].mxu0
        %2702 = vmatprep.mubr.bf16.mxu0 0
        %2703 = vmatmul.mubr.bf16.gmra.mrb[0].mxu0 %v2550
        %v2704 = vpop.f32.mrb[0].mxu0
        %v2705 = vadd.f32 %v2581, %v2704
        %v2706 = vpop.f32.mrb[0].mxu0
        %v2707 = vpop.f32.mrb[0].mxu0
        %v2708 = vadd.f32 %v2581, %v2707
        %v2709 = vpop.f32.mrb[0].mxu0
        %2710 = vmatprep.mubr.bf16.mxu0 0
        %2711 = vmatmul.mubr.bf16.gmra.mrb[0].mxu0 %v2551
        %v2712 = vpop.f32.mrb[0].mxu0
        %v2713 = vadd.f32 %v2581, %v2712
        %v2714 = vpop.f32.mrb[0].mxu0
        %v2715 = vpop.f32.mrb[0].mxu0
        %v2716 = vadd.f32 %v2581, %v2715
        %v2717 = vpop.f32.mrb[0].mxu0
        %2718 = vmatprep.mubr.bf16.mxu0 0
        %2719 = vmatmul.mubr.bf16.gmra.mrb[0].mxu0 %v2552
        %v2720 = vpop.f32.mrb[0].mxu0
        %v2721 = vadd.f32 %v2581, %v2720
        %v2722 = vpop.f32.mrb[0].mxu0
        %v2723 = vpop.f32.mrb[0].mxu0
        %v2724 = vadd.f32 %v2581, %v2723
        %v2725 = vpop.f32.mrb[0].mxu0
        %2726 = vmatprep.mubr.bf16.mxu0 0
        %2727 = vmatmul.mubr.bf16.gmra.mrb[0].mxu0 %v2553
        %v2728 = vpop.f32.mrb[0].mxu0
        %v2729 = vadd.f32 %v2581, %v2728
        %v2730 = vpop.f32.mrb[0].mxu0
        %v2731 = vpop.f32.mrb[0].mxu0
        %v2732 = vadd.f32 %v2581, %v2731
        %v2733 = vpop.f32.mrb[0].mxu0
        %2734 = vmatprep.mubr.bf16.mxu0 0
        %2735 = vmatmul.mubr.bf16.gmra.mrb[0].mxu0 %v2554
        %v2736 = vpop.f32.mrb[0].mxu0
        %v2737 = vadd.f32 %v2581, %v2736
        %v2738 = vpop.f32.mrb[0].mxu0
        %v2739 = vpop.f32.mrb[0].mxu0
        %v2740 = vadd.f32 %v2581, %v2739
        %v2741 = vpop.f32.mrb[0].mxu0
        %2742 = vmatprep.mubr.bf16.mxu0 0
        %2743 = vmatmul.mubr.bf16.gmra.mrb[0].mxu0 %v2555
        %v2744 = vpop.f32.mrb[0].mxu0
        %v2745 = vadd.f32 %v2581, %v2744
        %v2746 = vpop.f32.mrb[0].mxu0
        %v2747 = vpop.f32.mrb[0].mxu0
        %v2748 = vadd.f32 %v2581, %v2747
        %v2749 = vpop.f32.mrb[0].mxu0
        %2750 = vmatprep.mubr.bf16.mxu0 0
        %2751 = vmatmul.mubr.bf16.gmra.mrb[0].mxu0 %v2556
        %v2752 = vpop.f32.mrb[0].mxu0
        %v2753 = vadd.f32 %v2581, %v2752
        %v2754 = vpop.f32.mrb[0].mxu0
        %v2755 = vpop.f32.mrb[0].mxu0
        %v2756 = vadd.f32 %v2581, %v2755
        %v2757 = vpop.f32.mrb[0].mxu0
        %2758 = vmatprep.mubr.bf16.mxu0 0
        %2759 = vmatmul.mubr.bf16.gmra.mrb[0].mxu0 %v2557
        %v2760 = vpop.f32.mrb[0].mxu0
        %v2761 = vadd.f32 %v2581, %v2760
        %v2762 = vpop.f32.mrb[0].mxu0
        %v2763 = vpop.f32.mrb[0].mxu0
        %v2764 = vadd.f32 %v2581, %v2763
        %v2765 = vpop.f32.mrb[0].mxu0
        %2766 = vmatprep.mubr.bf16.mxu0 0
        %2767 = vmatmul.mubr.bf16.gmra.mrb[0].mxu0 %v2558
        %v2768 = vpop.f32.mrb[0].mxu0
        %v2769 = vadd.f32 %v2581, %v2768
        %v2770 = vpop.f32.mrb[0].mxu0
        %v2771 = vpop.f32.mrb[0].mxu0
        %v2772 = vadd.f32 %v2581, %v2771
        %v2773 = vpop.f32.mrb[0].mxu0
        %2774 = vmatprep.mubr.bf16.mxu0 0
        %2775 = vmatmul.mubr.bf16.gmra.mrb[0].mxu0 %v2559
        %v2776 = vpop.f32.mrb[0].mxu0
        %v2777 = vadd.f32 %v2581, %v2776
        %v2778 = vpop.f32.mrb[0].mxu0
        %v2779 = vpop.f32.mrb[0].mxu0
        %v2780 = vadd.f32 %v2581, %v2779
        %v2781 = vpop.f32.mrb[0].mxu0
        %2782 = vmatprep.mubr.bf16.mxu0 0
        %2783 = vmatmul.mubr.bf16.gmra.mrb[0].mxu0 %v2560
        %v2784 = vpop.f32.mrb[0].mxu0
        %v2785 = vadd.f32 %v2581, %v2784
        %v2786 = vpop.f32.mrb[0].mxu0
        %v2787 = vpop.f32.mrb[0].mxu0
        %v2788 = vadd.f32 %v2581, %v2787
        %v2789 = vpop.f32.mrb[0].mxu0
        %2790 = vdwg.mxu0
        %v2791 = vld [vmem:[#allocation3] sm:$0xff]
        %v2792 = vld [vmem:[#allocation3 + $0x8] sm:$0xff]
        %v2793 = vld [vmem:[#allocation3 + $0x10] sm:$0xff]
        %v2794 = vld [vmem:[#allocation3 + $0x18] sm:$0xff]
        %v2795 = vld [vmem:[#allocation3 + $0x20] sm:$0xff]
        %v2796 = vld [vmem:[#allocation3 + $0x28] sm:$0xff]
        %v2797 = vld [vmem:[#allocation3 + $0x30] sm:$0xff]
        %v2798 = vld [vmem:[#allocation3 + $0x38] sm:$0xff]
        %v2799 = vld [vmem:[#allocation3 + $0x40] sm:$0xff]
        %v2800 = vld [vmem:[#allocation3 + $0x48] sm:$0xff]
        %v2801 = vld [vmem:[#allocation3 + $0x50] sm:$0xff]
        %v2802 = vld [vmem:[#allocation3 + $0x58] sm:$0xff]
        %v2803 = vld [vmem:[#allocation3 + $0x60] sm:$0xff]
        %v2804 = vld [vmem:[#allocation3 + $0x68] sm:$0xff]
        %v2805 = vld [vmem:[#allocation3 + $0x70] sm:$0xff]
        %v2806 = vld [vmem:[#allocation3 + $0x78] sm:$0xff]
        %v2807 = vld [vmem:[#allocation3 + $0x80] sm:$0xff]
        %v2808 = vld [vmem:[#allocation3 + $0x88] sm:$0xff]
        %v2809 = vld [vmem:[#allocation3 + $0x90] sm:$0xff]
        %v2810 = vld [vmem:[#allocation3 + $0x98] sm:$0xff]
        %v2811 = vld [vmem:[#allocation3 + $0xa0] sm:$0xff]
        %v2812 = vld [vmem:[#allocation3 + $0xa8] sm:$0xff]
        %v2813 = vld [vmem:[#allocation3 + $0xb0] sm:$0xff]
        %v2814 = vld [vmem:[#allocation3 + $0xb8] sm:$0xff]
        %v2815 = vld [vmem:[#allocation3 + $0xc0] sm:$0xff]
        %v2816 = vld [vmem:[#allocation3 + $0xc8] sm:$0xff]
        %v2817 = vld [vmem:[#allocation3 + $0xd0] sm:$0xff]
        %v2818 = vld [vmem:[#allocation3 + $0xd8] sm:$0xff]
        %v2819 = vld [vmem:[#allocation3 + $0xe0] sm:$0xff]
        %v2820 = vld [vmem:[#allocation3 + $0xe8] sm:$0xff]
        %v2821 = vld [vmem:[#allocation3 + $0xf0] sm:$0xff]
        %v2822 = vld [vmem:[#allocation3 + $0xf8] sm:$0xff]
        %v2823 = vadd.f32 %v2665, %v2791
        %v2824 = vadd.f32 %v2668, %v2792
        %v2825 = vadd.f32 %v2673, %v2793
        %v2826 = vadd.f32 %v2676, %v2794
        %v2827 = vadd.f32 %v2681, %v2795
        %v2828 = vadd.f32 %v2684, %v2796
        %v2829 = vadd.f32 %v2689, %v2797
        %v2830 = vadd.f32 %v2692, %v2798
        %v2831 = vadd.f32 %v2697, %v2799
        %v2832 = vadd.f32 %v2700, %v2800
        %v2833 = vadd.f32 %v2705, %v2801
        %v2834 = vadd.f32 %v2708, %v2802
        %v2835 = vadd.f32 %v2713, %v2803
        %v2836 = vadd.f32 %v2716, %v2804
        %v2837 = vadd.f32 %v2721, %v2805
        %v2838 = vadd.f32 %v2724, %v2806
        %v2839 = vadd.f32 %v2729, %v2807
        %v2840 = vadd.f32 %v2732, %v2808
        %v2841 = vadd.f32 %v2737, %v2809
        %v2842 = vadd.f32 %v2740, %v2810
        %v2843 = vadd.f32 %v2745, %v2811
        %v2844 = vadd.f32 %v2748, %v2812
        %v2845 = vadd.f32 %v2753, %v2813
        %v2846 = vadd.f32 %v2756, %v2814
        %v2847 = vadd.f32 %v2761, %v2815
        %v2848 = vadd.f32 %v2764, %v2816
        %v2849 = vadd.f32 %v2769, %v2817
        %v2850 = vadd.f32 %v2772, %v2818
        %v2851 = vadd.f32 %v2777, %v2819
        %v2852 = vadd.f32 %v2780, %v2820
        %v2853 = vadd.f32 %v2785, %v2821
        %v2854 = vadd.f32 %v2788, %v2822
        %v2855 = vpack.c.bf16 %v2824, %v2823
        %v2856 = vpack.c.bf16 %v2826, %v2825
        %v2857 = vpack.c.bf16 %v2828, %v2827
        %v2858 = vpack.c.bf16 %v2830, %v2829
        %v2859 = vpack.c.bf16 %v2832, %v2831
        %v2860 = vpack.c.bf16 %v2834, %v2833
        %v2861 = vpack.c.bf16 %v2836, %v2835
        %v2862 = vpack.c.bf16 %v2838, %v2837
        %v2863 = vpack.c.bf16 %v2840, %v2839
        %v2864 = vpack.c.bf16 %v2842, %v2841
        %v2865 = vpack.c.bf16 %v2844, %v2843
        %v2866 = vpack.c.bf16 %v2846, %v2845
        %v2867 = vpack.c.bf16 %v2848, %v2847
        %v2868 = vpack.c.bf16 %v2850, %v2849
        %v2869 = vpack.c.bf16 %v2852, %v2851
        %v2870 = vpack.c.bf16 %v2854, %v2853
        %v2871 = vld [vmem:[%s8] sm:$0xf]
        %v2872 = vld [vmem:[%s8 + $0x4] sm:$0xf]
        %v2873 = vld [vmem:[%s8 + $0x8] sm:$0xf]
        %v2874 = vld [vmem:[%s8 + $0xc] sm:$0xf]
        %v2875 = vld [vmem:[%s8 + $0x10] sm:$0xf]
        %v2876 = vld [vmem:[%s8 + $0x14] sm:$0xf]
        %v2877 = vld [vmem:[%s8 + $0x18] sm:$0xf]
        %v2878 = vld [vmem:[%s8 + $0x1c] sm:$0xf]
        %v2879 = vld [vmem:[%s8 + $0x20] sm:$0xf]
        %v2880 = vld [vmem:[%s8 + $0x24] sm:$0xf]
        %v2881 = vld [vmem:[%s8 + $0x28] sm:$0xf]
        %v2882 = vld [vmem:[%s8 + $0x2c] sm:$0xf]
        %v2883 = vld [vmem:[%s8 + $0x30] sm:$0xf]
        %v2884 = vld [vmem:[%s8 + $0x34] sm:$0xf]
        %v2885 = vld [vmem:[%s8 + $0x38] sm:$0xf]
        %v2886 = vld [vmem:[%s8 + $0x3c] sm:$0xf]
        %v2887 = vld [vmem:[%s10 + $0x7] sm:$0x1]
        %v2888 = vlaneseq
        %v2889 = vshrl.u32 %v2888, 7
        %v2890 = vsub.s32 0, %v2889
        %v2891 = vrot.slane %v2887, %v2890
        %v2908 = vunpack.c.l.b16 %v2871
        %v2909 = vunpack.c.l.b16 %v2872
        %v2910 = vunpack.c.l.b16 %v2873
        %v2911 = vunpack.c.l.b16 %v2874
        %v2912 = vunpack.c.l.b16 %v2875
        %v2913 = vunpack.c.l.b16 %v2876
        %v2914 = vunpack.c.l.b16 %v2877
        %v2915 = vunpack.c.l.b16 %v2878
        %v2916 = vunpack.c.l.b16 %v2879
        %v2917 = vunpack.c.l.b16 %v2880
        %v2918 = vunpack.c.l.b16 %v2881
        %v2919 = vunpack.c.l.b16 %v2882
        %v2920 = vunpack.c.l.b16 %v2883
        %v2921 = vunpack.c.l.b16 %v2884
        %v2922 = vunpack.c.l.b16 %v2885
        %v2923 = vunpack.c.l.b16 %v2886
        %v2924 = vpack.c.b16 %v2909, %v2908
        %v2925 = vpack.c.b16 %v2911, %v2910
        %v2926 = vpack.c.b16 %v2913, %v2912
        %v2927 = vpack.c.b16 %v2915, %v2914
        %v2928 = vpack.c.b16 %v2917, %v2916
        %v2929 = vpack.c.b16 %v2919, %v2918
        %v2930 = vpack.c.b16 %v2921, %v2920
        %v2931 = vpack.c.b16 %v2923, %v2922
        %2940 = vmatprep.subr.bf16.mxu0 0
        %2941 = vmatpush1.bf16.msra.mxu0 %v2924
        %2942 = vmatprep.subr.bf16.mxu0 0
        %2943 = vmatpush1.bf16.msra.mxu0 %v2925
        %2944 = vmatprep.subr.bf16.mxu0 0
        %2945 = vmatpush1.bf16.msra.mxu0 %v2926
        %2946 = vmatprep.subr.bf16.mxu0 0
        %2947 = vmatpush1.bf16.msra.mxu0 %v2927
        %2948 = vmatprep.subr.bf16.mxu0 0
        %2949 = vmatpush1.bf16.msra.mxu0 %v2928
        %2950 = vmatprep.subr.bf16.mxu0 0
        %2951 = vmatpush1.bf16.msra.mxu0 %v2929
        %2952 = vmatprep.subr.bf16.mxu0 0
        %2953 = vmatpush1.bf16.msra.mxu0 %v2930
        %2954 = vmatprep.subr.bf16.mxu0 0
        %2955 = vmatpush1.bf16.msra.mxu0 %v2931
        %2956 = vmatprep.subr.bf16.mxu0 0
        %2957 = vmatpush1.bf16.msra.mxu0 0
        %2958 = vmatprep.subr.bf16.mxu0 0
        %2959 = vmatpush1.bf16.msra.mxu0 0
        %2960 = vmatprep.subr.bf16.mxu0 0
        %2961 = vmatpush1.bf16.msra.mxu0 0
        %2962 = vmatprep.subr.bf16.mxu0 0
        %2963 = vmatpush1.bf16.msra.mxu0 0
        %2964 = vmatprep.subr.bf16.mxu0 0
        %2965 = vmatpush1.bf16.msra.mxu0 0
        %2966 = vmatprep.subr.bf16.mxu0 0
        %2967 = vmatpush1.bf16.msra.mxu0 0
        %2968 = vmatprep.subr.bf16.mxu0 0
        %2969 = vmatpush1.bf16.msra.mxu0 0
        %2970 = vmatprep.subr.bf16.mxu0 0
        %2971 = vmatpush1.bf16.msra.mxu0 0
        %2972 = vmatprep.mubr.bf16.mxu0 0
        %2973 = vmatmul.mubr.bf16.gmra.mrb[0].mxu0 %v2855
        %v2974 = vpop.f32.mrb[0].mxu0
        %v2975 = vadd.f32 %v2891, %v2974
        %v2976 = vpop.f32.mrb[0].mxu0
        %v2977 = vpop.f32.mrb[0].mxu0
        %v2978 = vadd.f32 %v2891, %v2977
        %v2979 = vpop.f32.mrb[0].mxu0
        %2980 = vmatprep.mubr.bf16.mxu0 0
        %2981 = vmatmul.mubr.bf16.gmra.mrb[0].mxu0 %v2856
        %v2982 = vpop.f32.mrb[0].mxu0
        %v2983 = vadd.f32 %v2891, %v2982
        %v2984 = vpop.f32.mrb[0].mxu0
        %v2985 = vpop.f32.mrb[0].mxu0
        %v2986 = vadd.f32 %v2891, %v2985
        %v2987 = vpop.f32.mrb[0].mxu0
        %2988 = vmatprep.mubr.bf16.mxu0 0
        %2989 = vmatmul.mubr.bf16.gmra.mrb[0].mxu0 %v2857
        %v2990 = vpop.f32.mrb[0].mxu0
        %v2991 = vadd.f32 %v2891, %v2990
        %v2992 = vpop.f32.mrb[0].mxu0
        %v2993 = vpop.f32.mrb[0].mxu0
        %v2994 = vadd.f32 %v2891, %v2993
        %v2995 = vpop.f32.mrb[0].mxu0
        %2996 = vmatprep.mubr.bf16.mxu0 0
        %2997 = vmatmul.mubr.bf16.gmra.mrb[0].mxu0 %v2858
        %v2998 = vpop.f32.mrb[0].mxu0
        %v2999 = vadd.f32 %v2891, %v2998
        %v3000 = vpop.f32.mrb[0].mxu0
        %v3001 = vpop.f32.mrb[0].mxu0
        %v3002 = vadd.f32 %v2891, %v3001
        %v3003 = vpop.f32.mrb[0].mxu0
        %3004 = vmatprep.mubr.bf16.mxu0 0
        %3005 = vmatmul.mubr.bf16.gmra.mrb[0].mxu0 %v2859
        %v3006 = vpop.f32.mrb[0].mxu0
        %v3007 = vadd.f32 %v2891, %v3006
        %v3008 = vpop.f32.mrb[0].mxu0
        %v3009 = vpop.f32.mrb[0].mxu0
        %v3010 = vadd.f32 %v2891, %v3009
        %v3011 = vpop.f32.mrb[0].mxu0
        %3012 = vmatprep.mubr.bf16.mxu0 0
        %3013 = vmatmul.mubr.bf16.gmra.mrb[0].mxu0 %v2860
        %v3014 = vpop.f32.mrb[0].mxu0
        %v3015 = vadd.f32 %v2891, %v3014
        %v3016 = vpop.f32.mrb[0].mxu0
        %v3017 = vpop.f32.mrb[0].mxu0
        %v3018 = vadd.f32 %v2891, %v3017
        %v3019 = vpop.f32.mrb[0].mxu0
        %3020 = vmatprep.mubr.bf16.mxu0 0
        %3021 = vmatmul.mubr.bf16.gmra.mrb[0].mxu0 %v2861
        %v3022 = vpop.f32.mrb[0].mxu0
        %v3023 = vadd.f32 %v2891, %v3022
        %v3024 = vpop.f32.mrb[0].mxu0
        %v3025 = vpop.f32.mrb[0].mxu0
        %v3026 = vadd.f32 %v2891, %v3025
        %v3027 = vpop.f32.mrb[0].mxu0
        %3028 = vmatprep.mubr.bf16.mxu0 0
        %3029 = vmatmul.mubr.bf16.gmra.mrb[0].mxu0 %v2862
        %v3030 = vpop.f32.mrb[0].mxu0
        %v3031 = vadd.f32 %v2891, %v3030
        %v3032 = vpop.f32.mrb[0].mxu0
        %v3033 = vpop.f32.mrb[0].mxu0
        %v3034 = vadd.f32 %v2891, %v3033
        %v3035 = vpop.f32.mrb[0].mxu0
        %3036 = vmatprep.mubr.bf16.mxu0 0
        %3037 = vmatmul.mubr.bf16.gmra.mrb[0].mxu0 %v2863
        %v3038 = vpop.f32.mrb[0].mxu0
        %v3039 = vadd.f32 %v2891, %v3038
        %v3040 = vpop.f32.mrb[0].mxu0
        %v3041 = vpop.f32.mrb[0].mxu0
        %v3042 = vadd.f32 %v2891, %v3041
        %v3043 = vpop.f32.mrb[0].mxu0
        %3044 = vmatprep.mubr.bf16.mxu0 0
        %3045 = vmatmul.mubr.bf16.gmra.mrb[0].mxu0 %v2864
        %v3046 = vpop.f32.mrb[0].mxu0
        %v3047 = vadd.f32 %v2891, %v3046
        %v3048 = vpop.f32.mrb[0].mxu0
        %v3049 = vpop.f32.mrb[0].mxu0
        %v3050 = vadd.f32 %v2891, %v3049
        %v3051 = vpop.f32.mrb[0].mxu0
        %3052 = vmatprep.mubr.bf16.mxu0 0
        %3053 = vmatmul.mubr.bf16.gmra.mrb[0].mxu0 %v2865
        %v3054 = vpop.f32.mrb[0].mxu0
        %v3055 = vadd.f32 %v2891, %v3054
        %v3056 = vpop.f32.mrb[0].mxu0
        %v3057 = vpop.f32.mrb[0].mxu0
        %v3058 = vadd.f32 %v2891, %v3057
        %v3059 = vpop.f32.mrb[0].mxu0
        %3060 = vmatprep.mubr.bf16.mxu0 0
        %3061 = vmatmul.mubr.bf16.gmra.mrb[0].mxu0 %v2866
        %v3062 = vpop.f32.mrb[0].mxu0
        %v3063 = vadd.f32 %v2891, %v3062
        %v3064 = vpop.f32.mrb[0].mxu0
        %v3065 = vpop.f32.mrb[0].mxu0
        %v3066 = vadd.f32 %v2891, %v3065
        %v3067 = vpop.f32.mrb[0].mxu0
        %3068 = vmatprep.mubr.bf16.mxu0 0
        %3069 = vmatmul.mubr.bf16.gmra.mrb[0].mxu0 %v2867
        %v3070 = vpop.f32.mrb[0].mxu0
        %v3071 = vadd.f32 %v2891, %v3070
        %v3072 = vpop.f32.mrb[0].mxu0
        %v3073 = vpop.f32.mrb[0].mxu0
        %v3074 = vadd.f32 %v2891, %v3073
        %v3075 = vpop.f32.mrb[0].mxu0
        %3076 = vmatprep.mubr.bf16.mxu0 0
        %3077 = vmatmul.mubr.bf16.gmra.mrb[0].mxu0 %v2868
        %v3078 = vpop.f32.mrb[0].mxu0
        %v3079 = vadd.f32 %v2891, %v3078
        %v3080 = vpop.f32.mrb[0].mxu0
        %v3081 = vpop.f32.mrb[0].mxu0
        %v3082 = vadd.f32 %v2891, %v3081
        %v3083 = vpop.f32.mrb[0].mxu0
        %3084 = vmatprep.mubr.bf16.mxu0 0
        %3085 = vmatmul.mubr.bf16.gmra.mrb[0].mxu0 %v2869
        %v3086 = vpop.f32.mrb[0].mxu0
        %v3087 = vadd.f32 %v2891, %v3086
        %v3088 = vpop.f32.mrb[0].mxu0
        %v3089 = vpop.f32.mrb[0].mxu0
        %v3090 = vadd.f32 %v2891, %v3089
        %v3091 = vpop.f32.mrb[0].mxu0
        %3092 = vmatprep.mubr.bf16.mxu0 0
        %3093 = vmatmul.mubr.bf16.gmra.mrb[0].mxu0 %v2870
        %v3094 = vpop.f32.mrb[0].mxu0
        %v3095 = vadd.f32 %v2891, %v3094
        %v3096 = vpop.f32.mrb[0].mxu0
        %v3097 = vpop.f32.mrb[0].mxu0
        %v3098 = vadd.f32 %v2891, %v3097
        %v3099 = vpop.f32.mrb[0].mxu0
        %3100 = vdwg.mxu0
        %v3101 = vadd.f32 %v2975, 3.0
        %v3102 = vadd.f32 %v2978, 3.0
        %v3103 = vadd.f32 %v2983, 3.0
        %v3104 = vadd.f32 %v2986, 3.0
        %v3105 = vadd.f32 %v2991, 3.0
        %v3106 = vadd.f32 %v2994, 3.0
        %v3107 = vadd.f32 %v2999, 3.0
        %v3108 = vadd.f32 %v3002, 3.0
        %v3109 = vadd.f32 %v3007, 3.0
        %v3110 = vadd.f32 %v3010, 3.0
        %v3111 = vadd.f32 %v3015, 3.0
        %v3112 = vadd.f32 %v3018, 3.0
        %v3113 = vadd.f32 %v3023, 3.0
        %v3114 = vadd.f32 %v3026, 3.0
        %v3115 = vadd.f32 %v3031, 3.0
        %v3116 = vadd.f32 %v3034, 3.0
        %v3117 = vadd.f32 %v3039, 3.0
        %v3118 = vadd.f32 %v3042, 3.0
        %v3119 = vadd.f32 %v3047, 3.0
        %v3120 = vadd.f32 %v3050, 3.0
        %v3121 = vadd.f32 %v3055, 3.0
        %v3122 = vadd.f32 %v3058, 3.0
        %v3123 = vadd.f32 %v3063, 3.0
        %v3124 = vadd.f32 %v3066, 3.0
        %v3125 = vadd.f32 %v3071, 3.0
        %v3126 = vadd.f32 %v3074, 3.0
        %v3127 = vadd.f32 %v3079, 3.0
        %v3128 = vadd.f32 %v3082, 3.0
        %v3129 = vadd.f32 %v3087, 3.0
        %v3130 = vadd.f32 %v3090, 3.0
        %v3131 = vadd.f32 %v3095, 3.0
        %v3132 = vadd.f32 %v3098, 3.0
        %v3133 = vmax.f32 %v3101, 0.0
        %v3134 = vmax.f32 %v3102, 0.0
        %v3135 = vmax.f32 %v3103, 0.0
        %v3136 = vmax.f32 %v3104, 0.0
        %v3137 = vmax.f32 %v3105, 0.0
        %v3138 = vmax.f32 %v3106, 0.0
        %v3139 = vmax.f32 %v3107, 0.0
        %v3140 = vmax.f32 %v3108, 0.0
        %v3141 = vmax.f32 %v3109, 0.0
        %v3142 = vmax.f32 %v3110, 0.0
        %v3143 = vmax.f32 %v3111, 0.0
        %v3144 = vmax.f32 %v3112, 0.0
        %v3145 = vmax.f32 %v3113, 0.0
        %v3146 = vmax.f32 %v3114, 0.0
        %v3147 = vmax.f32 %v3115, 0.0
        %v3148 = vmax.f32 %v3116, 0.0
        %v3149 = vmax.f32 %v3117, 0.0
        %v3150 = vmax.f32 %v3118, 0.0
        %v3151 = vmax.f32 %v3119, 0.0
        %v3152 = vmax.f32 %v3120, 0.0
        %v3153 = vmax.f32 %v3121, 0.0
        %v3154 = vmax.f32 %v3122, 0.0
        %v3155 = vmax.f32 %v3123, 0.0
        %v3156 = vmax.f32 %v3124, 0.0
        %v3157 = vmax.f32 %v3125, 0.0
        %v3158 = vmax.f32 %v3126, 0.0
        %v3159 = vmax.f32 %v3127, 0.0
        %v3160 = vmax.f32 %v3128, 0.0
        %v3161 = vmax.f32 %v3129, 0.0
        %v3162 = vmax.f32 %v3130, 0.0
        %v3163 = vmax.f32 %v3131, 0.0
        %v3164 = vmax.f32 %v3132, 0.0
        %v3165 = vmin.f32 %v3133, 6.0
        %v3166 = vmin.f32 %v3134, 6.0
        %v3167 = vmin.f32 %v3135, 6.0
        %v3168 = vmin.f32 %v3136, 6.0
        %v3169 = vmin.f32 %v3137, 6.0
        %v3170 = vmin.f32 %v3138, 6.0
        %v3171 = vmin.f32 %v3139, 6.0
        %v3172 = vmin.f32 %v3140, 6.0
        %v3173 = vmin.f32 %v3141, 6.0
        %v3174 = vmin.f32 %v3142, 6.0
        %v3175 = vmin.f32 %v3143, 6.0
        %v3176 = vmin.f32 %v3144, 6.0
        %v3177 = vmin.f32 %v3145, 6.0
        %v3178 = vmin.f32 %v3146, 6.0
        %v3179 = vmin.f32 %v3147, 6.0
        %v3180 = vmin.f32 %v3148, 6.0
        %v3181 = vmin.f32 %v3149, 6.0
        %v3182 = vmin.f32 %v3150, 6.0
        %v3183 = vmin.f32 %v3151, 6.0
        %v3184 = vmin.f32 %v3152, 6.0
        %v3185 = vmin.f32 %v3153, 6.0
        %v3186 = vmin.f32 %v3154, 6.0
        %v3187 = vmin.f32 %v3155, 6.0
        %v3188 = vmin.f32 %v3156, 6.0
        %v3189 = vmin.f32 %v3157, 6.0
        %v3190 = vmin.f32 %v3158, 6.0
        %v3191 = vmin.f32 %v3159, 6.0
        %v3192 = vmin.f32 %v3160, 6.0
        %v3193 = vmin.f32 %v3161, 6.0
        %v3194 = vmin.f32 %v3162, 6.0
        %v3195 = vmin.f32 %v3163, 6.0
        %v3196 = vmin.f32 %v3164, 6.0
        %v3197 = vmul.f32 %v2975, %v3165
        %v3198 = vmul.f32 %v2978, %v3166
        %v3199 = vmul.f32 %v2983, %v3167
        %v3200 = vmul.f32 %v2986, %v3168
        %v3201 = vmul.f32 %v2991, %v3169
        %v3202 = vmul.f32 %v2994, %v3170
        %v3203 = vmul.f32 %v2999, %v3171
        %v3204 = vmul.f32 %v3002, %v3172
        %v3205 = vmul.f32 %v3007, %v3173
        %v3206 = vmul.f32 %v3010, %v3174
        %v3207 = vmul.f32 %v3015, %v3175
        %v3208 = vmul.f32 %v3018, %v3176
        %v3209 = vmul.f32 %v3023, %v3177
        %v3210 = vmul.f32 %v3026, %v3178
        %v3211 = vmul.f32 %v3031, %v3179
        %v3212 = vmul.f32 %v3034, %v3180
        %v3213 = vmul.f32 %v3039, %v3181
        %v3214 = vmul.f32 %v3042, %v3182
        %v3215 = vmul.f32 %v3047, %v3183
        %v3216 = vmul.f32 %v3050, %v3184
        %v3217 = vmul.f32 %v3055, %v3185
        %v3218 = vmul.f32 %v3058, %v3186
        %v3219 = vmul.f32 %v3063, %v3187
        %v3220 = vmul.f32 %v3066, %v3188
        %v3221 = vmul.f32 %v3071, %v3189
        %v3222 = vmul.f32 %v3074, %v3190
        %v3223 = vmul.f32 %v3079, %v3191
        %v3224 = vmul.f32 %v3082, %v3192
        %v3225 = vmul.f32 %v3087, %v3193
        %v3226 = vmul.f32 %v3090, %v3194
        %v3227 = vmul.f32 %v3095, %v3195
        %v3228 = vmul.f32 %v3098, %v3196
        %v3229 = vmul.f32 %v3197, 0.16666667
        %v3230 = vmul.f32 %v3198, 0.16666667
        %v3231 = vmul.f32 %v3199, 0.16666667
        %v3232 = vmul.f32 %v3200, 0.16666667
        %v3233 = vmul.f32 %v3201, 0.16666667
        %v3234 = vmul.f32 %v3202, 0.16666667
        %v3235 = vmul.f32 %v3203, 0.16666667
        %v3236 = vmul.f32 %v3204, 0.16666667
        %v3237 = vmul.f32 %v3205, 0.16666667
        %v3238 = vmul.f32 %v3206, 0.16666667
        %v3239 = vmul.f32 %v3207, 0.16666667
        %v3240 = vmul.f32 %v3208, 0.16666667
        %v3241 = vmul.f32 %v3209, 0.16666667
        %v3242 = vmul.f32 %v3210, 0.16666667
        %v3243 = vmul.f32 %v3211, 0.16666667
        %v3244 = vmul.f32 %v3212, 0.16666667
        %v3245 = vmul.f32 %v3213, 0.16666667
        %v3246 = vmul.f32 %v3214, 0.16666667
        %v3247 = vmul.f32 %v3215, 0.16666667
        %v3248 = vmul.f32 %v3216, 0.16666667
        %v3249 = vmul.f32 %v3217, 0.16666667
        %v3250 = vmul.f32 %v3218, 0.16666667
        %v3251 = vmul.f32 %v3219, 0.16666667
        %v3252 = vmul.f32 %v3220, 0.16666667
        %v3253 = vmul.f32 %v3221, 0.16666667
        %v3254 = vmul.f32 %v3222, 0.16666667
        %v3255 = vmul.f32 %v3223, 0.16666667
        %v3256 = vmul.f32 %v3224, 0.16666667
        %v3257 = vmul.f32 %v3225, 0.16666667
        %v3258 = vmul.f32 %v3226, 0.16666667
        %v3259 = vmul.f32 %v3227, 0.16666667
        %v3260 = vmul.f32 %v3228, 0.16666667
        %v3261 = vadd.f32 %v3229, %v3230
        %v3262 = vadd.f32 %v3261, %v3231
        %v3263 = vadd.f32 %v3262, %v3232
        %v3264 = vadd.f32 %v3263, %v3233
        %v3265 = vadd.f32 %v3264, %v3234
        %v3266 = vadd.f32 %v3265, %v3235
        %v3267 = vadd.f32 %v3266, %v3236
        %v3268 = vrot.slane %v3267, 4
        %v3269 = vadd.f32 %v3267, %v3268
        %v3270 = vrot.slane %v3269, 2
        %v3271 = vadd.f32 %v3269, %v3270
        %v3272 = vrot.slane %v3271, 1
        %v3273 = vadd.f32 %v3271, %v3272
        %v3274 = vadd.f32 %v3237, %v3238
        %v3275 = vadd.f32 %v3274, %v3239
        %v3276 = vadd.f32 %v3275, %v3240
        %v3277 = vadd.f32 %v3276, %v3241
        %v3278 = vadd.f32 %v3277, %v3242
        %v3279 = vadd.f32 %v3278, %v3243
        %v3280 = vadd.f32 %v3279, %v3244
        %v3281 = vrot.slane %v3280, 4
        %v3282 = vadd.f32 %v3280, %v3281
        %v3283 = vrot.slane %v3282, 2
        %v3284 = vadd.f32 %v3282, %v3283
        %v3285 = vrot.slane %v3284, 1
        %v3286 = vadd.f32 %v3284, %v3285
        %v3287 = vadd.f32 %v3245, %v3246
        %v3288 = vadd.f32 %v3287, %v3247
        %v3289 = vadd.f32 %v3288, %v3248
        %v3290 = vadd.f32 %v3289, %v3249
        %v3291 = vadd.f32 %v3290, %v3250
        %v3292 = vadd.f32 %v3291, %v3251
        %v3293 = vadd.f32 %v3292, %v3252
        %v3294 = vrot.slane %v3293, 4
        %v3295 = vadd.f32 %v3293, %v3294
        %v3296 = vrot.slane %v3295, 2
        %v3297 = vadd.f32 %v3295, %v3296
        %v3298 = vrot.slane %v3297, 1
        %v3299 = vadd.f32 %v3297, %v3298
        %v3300 = vadd.f32 %v3253, %v3254
        %v3301 = vadd.f32 %v3300, %v3255
        %v3302 = vadd.f32 %v3301, %v3256
        %v3303 = vadd.f32 %v3302, %v3257
        %v3304 = vadd.f32 %v3303, %v3258
        %v3305 = vadd.f32 %v3304, %v3259
        %v3306 = vadd.f32 %v3305, %v3260
        %v3307 = vrot.slane %v3306, 4
        %v3308 = vadd.f32 %v3306, %v3307
        %v3309 = vrot.slane %v3308, 2
        %v3310 = vadd.f32 %v3308, %v3309
        %v3311 = vrot.slane %v3310, 1
        %v3312 = vadd.f32 %v3310, %v3311
        %v3313 = vpack.c.bf16 %v3273, %v3273
        %v3314 = vpack.c.bf16 %v3286, %v3286
        %v3315 = vpack.c.bf16 %v3299, %v3299
        %v3316 = vpack.c.bf16 %v3312, %v3312
        %v3317 = vld [vmem:[%s9] sm:$0xf]
        %v3318 = vld [vmem:[%s9 + $0x4] sm:$0xf]
        %v3319 = vld [vmem:[%s9 + $0x8] sm:$0xf]
        %v3320 = vld [vmem:[%s9 + $0xc] sm:$0xf]
        %v3321 = vld [vmem:[%s9 + $0x10] sm:$0xf]
        %v3322 = vld [vmem:[%s9 + $0x14] sm:$0xf]
        %v3323 = vld [vmem:[%s9 + $0x18] sm:$0xf]
        %v3324 = vld [vmem:[%s9 + $0x1c] sm:$0xf]
        %v3325 = vld [vmem:[%s9 + $0x20] sm:$0xf]
        %v3326 = vld [vmem:[%s9 + $0x24] sm:$0xf]
        %v3327 = vld [vmem:[%s9 + $0x28] sm:$0xf]
        %v3328 = vld [vmem:[%s9 + $0x2c] sm:$0xf]
        %v3329 = vld [vmem:[%s9 + $0x30] sm:$0xf]
        %v3330 = vld [vmem:[%s9 + $0x34] sm:$0xf]
        %v3331 = vld [vmem:[%s9 + $0x38] sm:$0xf]
        %v3332 = vld [vmem:[%s9 + $0x3c] sm:$0xf]
        %v3333 = vld [vmem:[%s10 + $0x8] sm:$0x1]
        %v3334 = vlaneseq
        %v3335 = vshrl.u32 %v3334, 7
        %v3336 = vsub.s32 0, %v3335
        %v3337 = vrot.slane %v3333, %v3336
        %v3342 = vunpack.c.l.b16 %v3313
        %v3343 = vunpack.c.l.b16 %v3314
        %v3344 = vunpack.c.l.b16 %v3315
        %v3345 = vunpack.c.l.b16 %v3316
        %vm3346 = vcmask 1041409
        %v3347 = vsel %vm3346, %v3343, %v3342
        %vm3348 = vcmask 1042434
        %v3349 = vsel %vm3348, %v3344, %v3347
        %vm3350 = vcmask 1043459
        %v3351 = vsel %vm3350, %v3345, %v3349
        %v3352 = vpack.c.b16 %v3351, %v3351
        %v3370 = vunpack.c.l.b16 %v3317
        %v3371 = vunpack.c.l.b16 %v3318
        %v3372 = vunpack.c.l.b16 %v3319
        %v3373 = vunpack.c.l.b16 %v3320
        %v3374 = vunpack.c.l.b16 %v3321
        %v3375 = vunpack.c.l.b16 %v3322
        %v3376 = vunpack.c.l.b16 %v3323
        %v3377 = vunpack.c.l.b16 %v3324
        %v3378 = vunpack.c.l.b16 %v3325
        %v3379 = vunpack.c.l.b16 %v3326
        %v3380 = vunpack.c.l.b16 %v3327
        %v3381 = vunpack.c.l.b16 %v3328
        %v3382 = vunpack.c.l.b16 %v3329
        %v3383 = vunpack.c.l.b16 %v3330
        %v3384 = vunpack.c.l.b16 %v3331
        %v3385 = vunpack.c.l.b16 %v3332
        %v3386 = vpack.c.b16 %v3371, %v3370
        %v3387 = vpack.c.b16 %v3373, %v3372
        %v3388 = vpack.c.b16 %v3375, %v3374
        %v3389 = vpack.c.b16 %v3377, %v3376
        %v3390 = vpack.c.b16 %v3379, %v3378
        %v3391 = vpack.c.b16 %v3381, %v3380
        %v3392 = vpack.c.b16 %v3383, %v3382
        %v3393 = vpack.c.b16 %v3385, %v3384
        %3402 = vmatprep.subr.bf16.mxu0 0
        %3403 = vmatpush1.bf16.msra.mxu0 %v3386
        %3404 = vmatprep.subr.bf16.mxu0 0
        %3405 = vmatpush1.bf16.msra.mxu0 %v3387
        %3406 = vmatprep.subr.bf16.mxu0 0
        %3407 = vmatpush1.bf16.msra.mxu0 %v3388
        %3408 = vmatprep.subr.bf16.mxu0 0
        %3409 = vmatpush1.bf16.msra.mxu0 %v3389
        %3410 = vmatprep.subr.bf16.mxu0 0
        %3411 = vmatpush1.bf16.msra.mxu0 %v3390
        %3412 = vmatprep.subr.bf16.mxu0 0
        %3413 = vmatpush1.bf16.msra.mxu0 %v3391
        %3414 = vmatprep.subr.bf16.mxu0 0
        %3415 = vmatpush1.bf16.msra.mxu0 %v3392
        %3416 = vmatprep.subr.bf16.mxu0 0
        %3417 = vmatpush1.bf16.msra.mxu0 %v3393
        %3418 = vmatprep.subr.bf16.mxu0 0
        %3419 = vmatpush1.bf16.msra.mxu0 0
        %3420 = vmatprep.subr.bf16.mxu0 0
        %3421 = vmatpush1.bf16.msra.mxu0 0
        %3422 = vmatprep.subr.bf16.mxu0 0
        %3423 = vmatpush1.bf16.msra.mxu0 0
        %3424 = vmatprep.subr.bf16.mxu0 0
        %3425 = vmatpush1.bf16.msra.mxu0 0
        %3426 = vmatprep.subr.bf16.mxu0 0
        %3427 = vmatpush1.bf16.msra.mxu0 0
        %3428 = vmatprep.subr.bf16.mxu0 0
        %3429 = vmatpush1.bf16.msra.mxu0 0
        %3430 = vmatprep.subr.bf16.mxu0 0
        %3431 = vmatpush1.bf16.msra.mxu0 0
        %3432 = vmatprep.subr.bf16.mxu0 0
        %3433 = vmatpush1.bf16.msra.mxu0 0
        %3434 = vmatprep.mubr.bf16.mxu0 0
        %3435 = vmatmul.mubr.bf16.gmra.mrb[0].mxu0 %v3352
        %v3436 = vpop.f32.mrb[0].mxu0
        %v3437 = vadd.f32 %v3337, %v3436
        %v3438 = vpop.f32.mrb[0].mxu0
        %v3439 = vpop.f32.mrb[0].mxu0
        %v3440 = vpop.f32.mrb[0].mxu0
        %3441 = vdwg.mxu0
        %3442 = vst [vmem:[%s382] sm:$0xf] %v3437
        %s3443 = sand.u32 %s269, 1
        %s3444 = scalar_lea.sflag [#allocation5], %s3443
        %s3445 = sand.u32 %s269, 1
        %s3446 = smul.addr %s3445, 4
        %s3447 = scalar_lea.vmem [#allocation4], %s3446
        // Predicated region
        $region79: #{supernet_forward.1} parent=63 // pred_check
          %p3448 = pneg %p279
        $region80: #{supernet_forward.1} parent=63 // pred_check_branch
          %3450 = sbr.rel (%p3448) target = $region82
        $region81: #{supernet_forward.1} parent=63 // pred_region
          %s3452 = ssub.s32 64, 64
          %3453 = vsyncadd %s3444, %s3452
          %s3454 = smul.addr %s25, 64
          %s3455 = scalar_lea.hbm %s11, %s3454
          %s3457 = sshll.u32 %s3447, 4
          %s3458 = int_to_ptr.vmem [resolvable:$true] %s3457
          %3460 = dma.vmem_to_hbm [thread:$0]  %s3458, 64, %s3455, %s3444
        $region82: #{supernet_forward.1} parent=63 // pred_fallthru
          _
      $region64: #{supernet_forward.1} parent=5 // pred_fallthru
        _
      %p3461 = scmp.le.s32.totalorder 2, %s20
      // Predicated region
      $region83: #{supernet_forward.1} parent=5 // pred_check
        %p3462 = pneg %p3461
      $region84: #{supernet_forward.1} parent=5 // pred_check_branch
        %3464 = sbr.rel (%p3462) target = $region86
      $region85: #{supernet_forward.1} parent=5 // pred_region
        %s3465 = ssub.s32 %s20, 2
        // Predicated region
        $region87: #{supernet_forward.1} parent=85 // pred_check
          %p3466 = pneg %p285
        $region88: #{supernet_forward.1} parent=85 // pred_check_branch
          %3468 = sbr.rel (%p3466) target = $region90
        $region89: #{supernet_forward.1} parent=85 // pred_region
          %s3469 = sand.u32 %s270, 1
          %s3470 = scalar_lea.sflag [#allocation5], %s3469
          %s3471 = sand.u32 %s270, 1
          %s3472 = smul.addr %s3471, 4
          %s3473 = scalar_lea.vmem [#allocation4], %s3472
          %3474 = dma.done %s3470, 64
        $region90: #{supernet_forward.1} parent=85 // pred_fallthru
          _
      $region86: #{supernet_forward.1} parent=5 // pred_fallthru
        _
    $region6: #{supernet_forward.1} parent=1 // loop_footer
      %s24 = sadd.s32 1, %s20
    $region7: #{supernet_forward.1} parent=1 // loop_footer_branch
      %19 = sbr.rel target = $region3
    $region8: #{supernet_forward.1} parent=1 // loop_exit
      _
    %3475 = vsyncpa [#allocation5], 1
    %s3476 = scalar_lea.sflag [#allocation5], 1
    %3477 = vsyncpa %s3476, 1

</llo_original>
